<compile_context>
chip_gen: v7x
topology: tpu7x:2x2x1
jax: 0.10.0
libtpu: 0.0.40
codegen_flags: <defaults>
</compile_context>

<pallas_src>
import functools

import numpy as np
import jax
import jax.numpy as jnp
from jax import lax
from jax.experimental import pallas as pl
from jax.experimental.pallas import tpu as pltpu


def _round_up(v, m):
    return (v + m - 1) // m * m


# ----------------------------- Pallas kernel --------------------------------
def _coord_conv_kernel(x_ref, w_ref, b_ref, o_ref, im2col_ref, *,
                       K, Ho, Wo, stride, c_pad, B):
    """Fused CoordConv for one batch block of B images.

    x_ref:      (B, Hp, Wp, c_pad)   spatially padded NHWC input block (bf16)
    w_ref:      (co8, K*K*c_pad)     weight, rows = out-ch, cols = (kh,kw,c) (bf16)
    b_ref:      (co8, 1)             bias (f32, zero-padded)
    o_ref:      (B, co8, Ho*Wo)      output, NCHW-flat, lane-dense last dim (f32)
    im2col_ref: (Ho*Wo, K*K*c_pad)   VMEM scratch slab (bf16)
    """
    HW = Ho * Wo
    co8 = o_ref.shape[1]

    w = w_ref[...]                                        # VMEM resident weight
    bias = jnp.broadcast_to(b_ref[...], (co8, HW))        # hoisted: one broadcast

    for b in range(B):                                    # small block, unrolled
        # Build the im2col slab once in VMEM: each (kh, kw) tap is a shifted
        # window of the resident input block.
        for kh in range(K):
            for kw in range(K):
                if stride == 1:
                    win = x_ref[b, kh:kh + Ho, kw:kw + Wo, :]
                else:
                    # TODO(synk): strided ref slice path not exercised by the test.
                    win = x_ref[b, pl.ds(kh, Ho, stride), pl.ds(kw, Wo, stride), :]
                tap = kh * K + kw
                im2col_ref[:, tap * c_pad:(tap + 1) * c_pad] = win.reshape(HW, c_pad)

        # Single deep contraction on the MXU (f32 accumulation):
        #   res[c, p] = sum_k w[c, k] * im2col[p, k]
        res = lax.dot_general(w, im2col_ref[...],
                              (((1,), (1,)), ((), ())),
                              preferred_element_type=jnp.float32)
        o_ref[b] = (res + bias).astype(o_ref.dtype)       # (co8, Ho*Wo) lane-dense


# ----------------------------- CoordConv2d -----------------------------------
def coord_conv2d(x, coords, weight, bias, *, stride=1, padding=0,
                 dilation=1, groups=1):
    """x: [N, C_in, H, W], coords: [N, 2(+1), H, W] (NCHW).
    weight: [C_out, C_in+extra, K, K], bias: [C_out].  Returns NCHW output."""
    assert dilation == 1 and groups == 1, (
        "TODO(synk): dilation != 1 / groups != 1 not implemented")

    xc = jnp.concatenate([x, coords], axis=1)              # (N, Ct, H, W)
    N, Ct, H, W = xc.shape
    C_out, Ct_w, K, K2 = weight.shape
    assert Ct_w == Ct, "weight in_channels must equal C_in + coord channels"
    assert K == K2

    Ho = (H + 2 * padding - K) // stride + 1
    Wo = (W + 2 * padding - K) // stride + 1
    Hp = H + 2 * padding
    Wp = W + 2 * padding

    c_pad = _round_up(Ct, 8)        # contraction sub-axis (channels per tap)
    co8 = _round_up(C_out, 8)       # output sublane axis (NOT padded to 128)
    kd = K * K * c_pad              # full contraction depth

    # Batch block per grid step (amortize per-step overhead).
    B_blk = min(N, 8)
    N_pad = _round_up(N, B_blk)

    # Glue: NCHW -> NHWC, spatial zero-pad, channel zero-pad, batch pad, bf16.
    x_nhwc = jnp.transpose(xc, (0, 2, 3, 1))
    xp = jnp.pad(x_nhwc, ((0, N_pad - N), (padding, padding),
                          (padding, padding), (0, c_pad - Ct)))
    xp = xp.astype(jnp.bfloat16)

    # Weight (C_out, Ct, K, K) -> (co8, K*K*c_pad), column order (kh, kw, c).
    w = jnp.transpose(weight, (0, 2, 3, 1))                 # (C_out, K, K, Ct)
    w = jnp.pad(w, ((0, co8 - C_out), (0, 0), (0, 0), (0, c_pad - Ct)))
    w_ck = w.reshape(co8, kd).astype(jnp.bfloat16)

    b2 = jnp.pad(bias, (0, co8 - C_out)).reshape(co8, 1).astype(jnp.float32)

    kernel = functools.partial(_coord_conv_kernel, K=K, Ho=Ho, Wo=Wo,
                               stride=stride, c_pad=c_pad, B=B_blk)

    out = pl.pallas_call(
        kernel,
        out_shape=jax.ShapeDtypeStruct((N_pad, co8, Ho * Wo), jnp.float32),
        grid_spec=pltpu.PrefetchScalarGridSpec(
            num_scalar_prefetch=0,
            grid=(N_pad // B_blk,),                         # one image block / step
            in_specs=[
                pl.BlockSpec((B_blk, Hp, Wp, c_pad), lambda n: (n, 0, 0, 0)),
                pl.BlockSpec((co8, kd), lambda n: (0, 0)),  # VMEM-resident weight
                pl.BlockSpec((co8, 1), lambda n: (0, 0)),   # VMEM-resident bias
            ],
            out_specs=pl.BlockSpec((B_blk, co8, Ho * Wo), lambda n: (n, 0, 0)),
            scratch_shapes=[pltpu.VMEM((Ho * Wo, kd), jnp.bfloat16)],  # im2col slab
        ),
        compiler_params=pltpu.CompilerParams(
            dimension_semantics=("parallel",)),             # batch shards across TCs
    )(xp, w_ck, b2)

    # Output is already NCHW-flat: just drop padding and split the spatial axis.
    out = out[:N, :C_out, :].reshape(N, C_out, Ho, Wo)
    return out


# ------------------------------- main ----------------------------------------
if __name__ == "__main__":
    key = jax.random.PRNGKey(0)
    k_x, k_c, k_w, k_b = jax.random.split(key, 4)

    # Small shapes consistent with the module
    N, C_in, H, W = 2, 4, 16, 16
    C_out, K = 8, 3
    stride, padding = 1, 1
    with_r = False
    extra = 2 + int(with_r)
    Ct = C_in + extra

    x = jax.random.normal(k_x, (N, C_in, H, W), dtype=jnp.float32)
    # coords channels (normally a [-1, 1] meshgrid supplied by the caller)
    yy = jnp.linspace(-1.0, 1.0, H)[None, None, :, None]
    xx = jnp.linspace(-1.0, 1.0, W)[None, None, None, :]
    coords = jnp.concatenate(
        [jnp.broadcast_to(yy, (N, 1, H, W)), jnp.broadcast_to(xx, (N, 1, H, W))],
        axis=1).astype(jnp.float32)

    # Deterministic Conv2d-style init: weight [C_out, Ct, K, K], bias [C_out]
    fan_in = Ct * K * K
    bound = 1.0 / np.sqrt(fan_in)
    weight = jax.random.uniform(k_w, (C_out, Ct, K, K), jnp.float32, -bound, bound)
    bias = jax.random.uniform(k_b, (C_out,), jnp.float32, -bound, bound)

    conv_fn = jax.jit(functools.partial(coord_conv2d, stride=stride, padding=padding))
    out = conv_fn(x, coords, weight, bias)
    out = jax.block_until_ready(out)

    # Reference check with lax conv (NCHW / OIHW), f32.
    xc = jnp.concatenate([x, coords], axis=1)
    ref = lax.conv_general_dilated(
        xc, weight, window_strides=(stride, stride),
        padding=[(padding, padding), (padding, padding)],
        dimension_numbers=("NCHW", "OIHW", "NCHW"))
    ref = ref + bias[None, :, None, None]

    assert out.shape == (N, C_out, H, W)
    # bf16 operands (f32 accumulate) => slightly loose tolerance vs f32 reference.
    assert np.allclose(np.asarray(out), np.asarray(ref), atol=5e-2, rtol=5e-2)

    print("KERNEL_OK")
</pallas_src>

<mosaic_0001>
module attributes {stable_mosaic.version = 11 : i64} {
  func.func @_coord_conv_kernel(%arg0: i32, %arg1: memref<2x18x18x8xbf16, #tpu.memory_space<vmem>>, %arg2: memref<8x72xbf16, #tpu.memory_space<vmem>>, %arg3: memref<8x1xf32, #tpu.memory_space<vmem>>, %arg4: memref<2x8x256xf32, #tpu.memory_space<vmem>>, %arg5: memref<256x72xbf16, #tpu.memory_space<vmem>>) attributes {dimension_semantics = [#tpu.dimension_semantics<parallel>], iteration_bounds = array<i64: 1>, scalar_prefetch = 0 : i64, scratch_operands = 1 : i64, tpu.core_type = #tpu.core_type<tc>, window_params = [{transform_indices = @transform_0, window_bounds = array<i64: 2, 18, 18, 8>}, {pipeline_mode = #tpu.pipeline_mode<synchronous>, transform_indices = @transform_1, window_bounds = array<i64: 8, 72>}, {pipeline_mode = #tpu.pipeline_mode<synchronous>, transform_indices = @transform_2, window_bounds = array<i64: 8, 1>}, {transform_indices = @transform_3, window_bounds = array<i64: 2, 8, 256>}]} {
    %c0 = arith.constant 0 : index
    %c0_0 = arith.constant 0 : index
    %0 = vector.load %arg2[%c0, %c0_0] : memref<8x72xbf16, #tpu.memory_space<vmem>>, vector<8x72xbf16>
    %c0_1 = arith.constant 0 : index
    %c0_2 = arith.constant 0 : index
    %1 = vector.load %arg3[%c0_1, %c0_2] : memref<8x1xf32, #tpu.memory_space<vmem>>, vector<8x1xf32>
    %2 = vector.shape_cast %1 : vector<8x1xf32> to vector<8x1xf32>
    %3 = vector.broadcast %2 : vector<8x1xf32> to vector<8x256xf32>
    %c0_3 = arith.constant 0 : index
    %c0_4 = arith.constant 0 : index
    %c0_5 = arith.constant 0 : index
    %c0_6 = arith.constant 0 : index
    %4 = vector.load %arg1[%c0_3, %c0_4, %c0_5, %c0_6] : memref<2x18x18x8xbf16, #tpu.memory_space<vmem>>, vector<1x16x16x8xbf16>
    %5 = vector.shape_cast %4 : vector<1x16x16x8xbf16> to vector<16x16x8xbf16>
    %6 = vector.shape_cast %5 : vector<16x16x8xbf16> to vector<256x8xbf16>
    %c0_7 = arith.constant 0 : index
    %c0_8 = arith.constant 0 : index
    %7 = vector.load %arg5[%c0_7, %c0_8] : memref<256x72xbf16, #tpu.memory_space<vmem>>, vector<256x8xbf16>
    tpu.vector_store %arg5[%c0_7, %c0_8], %6 {strides = array<i32>} : memref<256x72xbf16, #tpu.memory_space<vmem>>, vector<256x8xbf16>,
    %c0_9 = arith.constant 0 : index
    %c0_10 = arith.constant 0 : index
    %c1 = arith.constant 1 : index
    %c0_11 = arith.constant 0 : index
    %8 = vector.load %arg1[%c0_9, %c0_10, %c1, %c0_11] : memref<2x18x18x8xbf16, #tpu.memory_space<vmem>>, vector<1x16x16x8xbf16>
    %9 = vector.shape_cast %8 : vector<1x16x16x8xbf16> to vector<16x16x8xbf16>
    %10 = vector.shape_cast %9 : vector<16x16x8xbf16> to vector<256x8xbf16>
    %c0_12 = arith.constant 0 : index
    %c8 = arith.constant 8 : index
    %11 = vector.load %arg5[%c0_12, %c8] : memref<256x72xbf16, #tpu.memory_space<vmem>>, vector<256x8xbf16>
    tpu.vector_store %arg5[%c0_12, %c8], %10 {strides = array<i32>} : memref<256x72xbf16, #tpu.memory_space<vmem>>, vector<256x8xbf16>,
    %c0_13 = arith.constant 0 : index
    %c0_14 = arith.constant 0 : index
    %c2 = arith.constant 2 : index
    %c0_15 = arith.constant 0 : index
    %12 = vector.load %arg1[%c0_13, %c0_14, %c2, %c0_15] : memref<2x18x18x8xbf16, #tpu.memory_space<vmem>>, vector<1x16x16x8xbf16>
    %13 = vector.shape_cast %12 : vector<1x16x16x8xbf16> to vector<16x16x8xbf16>
    %14 = vector.shape_cast %13 : vector<16x16x8xbf16> to vector<256x8xbf16>
    %c0_16 = arith.constant 0 : index
    %c16 = arith.constant 16 : index
    %15 = vector.load %arg5[%c0_16, %c16] : memref<256x72xbf16, #tpu.memory_space<vmem>>, vector<256x8xbf16>
    tpu.vector_store %arg5[%c0_16, %c16], %14 {strides = array<i32>} : memref<256x72xbf16, #tpu.memory_space<vmem>>, vector<256x8xbf16>,
    %c0_17 = arith.constant 0 : index
    %c1_18 = arith.constant 1 : index
    %c0_19 = arith.constant 0 : index
    %c0_20 = arith.constant 0 : index
    %16 = vector.load %arg1[%c0_17, %c1_18, %c0_19, %c0_20] : memref<2x18x18x8xbf16, #tpu.memory_space<vmem>>, vector<1x16x16x8xbf16>
    %17 = vector.shape_cast %16 : vector<1x16x16x8xbf16> to vector<16x16x8xbf16>
    %18 = vector.shape_cast %17 : vector<16x16x8xbf16> to vector<256x8xbf16>
    %c0_21 = arith.constant 0 : index
    %c24 = arith.constant 24 : index
    %19 = vector.load %arg5[%c0_21, %c24] : memref<256x72xbf16, #tpu.memory_space<vmem>>, vector<256x8xbf16>
    tpu.vector_store %arg5[%c0_21, %c24], %18 {strides = array<i32>} : memref<256x72xbf16, #tpu.memory_space<vmem>>, vector<256x8xbf16>,
    %c0_22 = arith.constant 0 : index
    %c1_23 = arith.constant 1 : index
    %c1_24 = arith.constant 1 : index
    %c0_25 = arith.constant 0 : index
    %20 = vector.load %arg1[%c0_22, %c1_23, %c1_24, %c0_25] : memref<2x18x18x8xbf16, #tpu.memory_space<vmem>>, vector<1x16x16x8xbf16>
    %21 = vector.shape_cast %20 : vector<1x16x16x8xbf16> to vector<16x16x8xbf16>
    %22 = vector.shape_cast %21 : vector<16x16x8xbf16> to vector<256x8xbf16>
    %c0_26 = arith.constant 0 : index
    %c32 = arith.constant 32 : index
    %23 = vector.load %arg5[%c0_26, %c32] : memref<256x72xbf16, #tpu.memory_space<vmem>>, vector<256x8xbf16>
    tpu.vector_store %arg5[%c0_26, %c32], %22 {strides = array<i32>} : memref<256x72xbf16, #tpu.memory_space<vmem>>, vector<256x8xbf16>,
    %c0_27 = arith.constant 0 : index
    %c1_28 = arith.constant 1 : index
    %c2_29 = arith.constant 2 : index
    %c0_30 = arith.constant 0 : index
    %24 = vector.load %arg1[%c0_27, %c1_28, %c2_29, %c0_30] : memref<2x18x18x8xbf16, #tpu.memory_space<vmem>>, vector<1x16x16x8xbf16>
    %25 = vector.shape_cast %24 : vector<1x16x16x8xbf16> to vector<16x16x8xbf16>
    %26 = vector.shape_cast %25 : vector<16x16x8xbf16> to vector<256x8xbf16>
    %c0_31 = arith.constant 0 : index
    %c40 = arith.constant 40 : index
    %27 = vector.load %arg5[%c0_31, %c40] : memref<256x72xbf16, #tpu.memory_space<vmem>>, vector<256x8xbf16>
    tpu.vector_store %arg5[%c0_31, %c40], %26 {strides = array<i32>} : memref<256x72xbf16, #tpu.memory_space<vmem>>, vector<256x8xbf16>,
    %c0_32 = arith.constant 0 : index
    %c2_33 = arith.constant 2 : index
    %c0_34 = arith.constant 0 : index
    %c0_35 = arith.constant 0 : index
    %28 = vector.load %arg1[%c0_32, %c2_33, %c0_34, %c0_35] : memref<2x18x18x8xbf16, #tpu.memory_space<vmem>>, vector<1x16x16x8xbf16>
    %29 = vector.shape_cast %28 : vector<1x16x16x8xbf16> to vector<16x16x8xbf16>
    %30 = vector.shape_cast %29 : vector<16x16x8xbf16> to vector<256x8xbf16>
    %c0_36 = arith.constant 0 : index
    %c48 = arith.constant 48 : index
    %31 = vector.load %arg5[%c0_36, %c48] : memref<256x72xbf16, #tpu.memory_space<vmem>>, vector<256x8xbf16>
    tpu.vector_store %arg5[%c0_36, %c48], %30 {strides = array<i32>} : memref<256x72xbf16, #tpu.memory_space<vmem>>, vector<256x8xbf16>,
    %c0_37 = arith.constant 0 : index
    %c2_38 = arith.constant 2 : index
    %c1_39 = arith.constant 1 : index
    %c0_40 = arith.constant 0 : index
    %32 = vector.load %arg1[%c0_37, %c2_38, %c1_39, %c0_40] : memref<2x18x18x8xbf16, #tpu.memory_space<vmem>>, vector<1x16x16x8xbf16>
    %33 = vector.shape_cast %32 : vector<1x16x16x8xbf16> to vector<16x16x8xbf16>
    %34 = vector.shape_cast %33 : vector<16x16x8xbf16> to vector<256x8xbf16>
    %c0_41 = arith.constant 0 : index
    %c56 = arith.constant 56 : index
    %35 = vector.load %arg5[%c0_41, %c56] : memref<256x72xbf16, #tpu.memory_space<vmem>>, vector<256x8xbf16>
    tpu.vector_store %arg5[%c0_41, %c56], %34 {strides = array<i32>} : memref<256x72xbf16, #tpu.memory_space<vmem>>, vector<256x8xbf16>,
    %c0_42 = arith.constant 0 : index
    %c2_43 = arith.constant 2 : index
    %c2_44 = arith.constant 2 : index
    %c0_45 = arith.constant 0 : index
    %36 = vector.load %arg1[%c0_42, %c2_43, %c2_44, %c0_45] : memref<2x18x18x8xbf16, #tpu.memory_space<vmem>>, vector<1x16x16x8xbf16>
    %37 = vector.shape_cast %36 : vector<1x16x16x8xbf16> to vector<16x16x8xbf16>
    %38 = vector.shape_cast %37 : vector<16x16x8xbf16> to vector<256x8xbf16>
    %c0_46 = arith.constant 0 : index
    %c64 = arith.constant 64 : index
    %39 = vector.load %arg5[%c0_46, %c64] : memref<256x72xbf16, #tpu.memory_space<vmem>>, vector<256x8xbf16>
    tpu.vector_store %arg5[%c0_46, %c64], %38 {strides = array<i32>} : memref<256x72xbf16, #tpu.memory_space<vmem>>, vector<256x8xbf16>,
    %c0_47 = arith.constant 0 : index
    %c0_48 = arith.constant 0 : index
    %40 = vector.load %arg5[%c0_47, %c0_48] : memref<256x72xbf16, #tpu.memory_space<vmem>>, vector<256x72xbf16>
    %cst = arith.constant dense<0.000000e+00> : vector<8x256xf32>
    %41 = tpu.matmul %0, %40, %cst {dimension_numbers = #tpu.dot_dimension_numbers<[1], [1], [0], [0], [0, 0, 1, 0], [], []>} : vector<8x72xbf16>, vector<256x72xbf16>, vector<8x256xf32> -> vector<8x256xf32>
    %42 = arith.addf %41, %3 : vector<8x256xf32>
    %c0_49 = arith.constant 0 : index
    %c0_50 = arith.constant 0 : index
    %c0_51 = arith.constant 0 : index
    %43 = vector.load %arg4[%c0_49, %c0_50, %c0_51] : memref<2x8x256xf32, #tpu.memory_space<vmem>>, vector<1x8x256xf32>
    %44 = vector.shape_cast %43 : vector<1x8x256xf32> to vector<8x256xf32>
    %45 = vector.shape_cast %42 : vector<8x256xf32> to vector<1x8x256xf32>
    tpu.vector_store %arg4[%c0_49, %c0_50, %c0_51], %45 {strides = array<i32>} : memref<2x8x256xf32, #tpu.memory_space<vmem>>, vector<1x8x256xf32>,
    %c1_52 = arith.constant 1 : index
    %c0_53 = arith.constant 0 : index
    %c0_54 = arith.constant 0 : index
    %c0_55 = arith.constant 0 : index
    %46 = vector.load %arg1[%c1_52, %c0_53, %c0_54, %c0_55] : memref<2x18x18x8xbf16, #tpu.memory_space<vmem>>, vector<1x16x16x8xbf16>
    %47 = vector.shape_cast %46 : vector<1x16x16x8xbf16> to vector<16x16x8xbf16>
    %48 = vector.shape_cast %47 : vector<16x16x8xbf16> to vector<256x8xbf16>
    %c0_56 = arith.constant 0 : index
    %c0_57 = arith.constant 0 : index
    %49 = vector.load %arg5[%c0_56, %c0_57] : memref<256x72xbf16, #tpu.memory_space<vmem>>, vector<256x8xbf16>
    tpu.vector_store %arg5[%c0_56, %c0_57], %48 {strides = array<i32>} : memref<256x72xbf16, #tpu.memory_space<vmem>>, vector<256x8xbf16>,
    %c1_58 = arith.constant 1 : index
    %c0_59 = arith.constant 0 : index
    %c1_60 = arith.constant 1 : index
    %c0_61 = arith.constant 0 : index
    %50 = vector.load %arg1[%c1_58, %c0_59, %c1_60, %c0_61] : memref<2x18x18x8xbf16, #tpu.memory_space<vmem>>, vector<1x16x16x8xbf16>
    %51 = vector.shape_cast %50 : vector<1x16x16x8xbf16> to vector<16x16x8xbf16>
    %52 = vector.shape_cast %51 : vector<16x16x8xbf16> to vector<256x8xbf16>
    %c0_62 = arith.constant 0 : index
    %c8_63 = arith.constant 8 : index
    %53 = vector.load %arg5[%c0_62, %c8_63] : memref<256x72xbf16, #tpu.memory_space<vmem>>, vector<256x8xbf16>
    tpu.vector_store %arg5[%c0_62, %c8_63], %52 {strides = array<i32>} : memref<256x72xbf16, #tpu.memory_space<vmem>>, vector<256x8xbf16>,
    %c1_64 = arith.constant 1 : index
    %c0_65 = arith.constant 0 : index
    %c2_66 = arith.constant 2 : index
    %c0_67 = arith.constant 0 : index
    %54 = vector.load %arg1[%c1_64, %c0_65, %c2_66, %c0_67] : memref<2x18x18x8xbf16, #tpu.memory_space<vmem>>, vector<1x16x16x8xbf16>
    %55 = vector.shape_cast %54 : vector<1x16x16x8xbf16> to vector<16x16x8xbf16>
    %56 = vector.shape_cast %55 : vector<16x16x8xbf16> to vector<256x8xbf16>
    %c0_68 = arith.constant 0 : index
    %c16_69 = arith.constant 16 : index
    %57 = vector.load %arg5[%c0_68, %c16_69] : memref<256x72xbf16, #tpu.memory_space<vmem>>, vector<256x8xbf16>
    tpu.vector_store %arg5[%c0_68, %c16_69], %56 {strides = array<i32>} : memref<256x72xbf16, #tpu.memory_space<vmem>>, vector<256x8xbf16>,
    %c1_70 = arith.constant 1 : index
    %c1_71 = arith.constant 1 : index
    %c0_72 = arith.constant 0 : index
    %c0_73 = arith.constant 0 : index
    %58 = vector.load %arg1[%c1_70, %c1_71, %c0_72, %c0_73] : memref<2x18x18x8xbf16, #tpu.memory_space<vmem>>, vector<1x16x16x8xbf16>
    %59 = vector.shape_cast %58 : vector<1x16x16x8xbf16> to vector<16x16x8xbf16>
    %60 = vector.shape_cast %59 : vector<16x16x8xbf16> to vector<256x8xbf16>
    %c0_74 = arith.constant 0 : index
    %c24_75 = arith.constant 24 : index
    %61 = vector.load %arg5[%c0_74, %c24_75] : memref<256x72xbf16, #tpu.memory_space<vmem>>, vector<256x8xbf16>
    tpu.vector_store %arg5[%c0_74, %c24_75], %60 {strides = array<i32>} : memref<256x72xbf16, #tpu.memory_space<vmem>>, vector<256x8xbf16>,
    %c1_76 = arith.constant 1 : index
    %c1_77 = arith.constant 1 : index
    %c1_78 = arith.constant 1 : index
    %c0_79 = arith.constant 0 : index
    %62 = vector.load %arg1[%c1_76, %c1_77, %c1_78, %c0_79] : memref<2x18x18x8xbf16, #tpu.memory_space<vmem>>, vector<1x16x16x8xbf16>
    %63 = vector.shape_cast %62 : vector<1x16x16x8xbf16> to vector<16x16x8xbf16>
    %64 = vector.shape_cast %63 : vector<16x16x8xbf16> to vector<256x8xbf16>
    %c0_80 = arith.constant 0 : index
    %c32_81 = arith.constant 32 : index
    %65 = vector.load %arg5[%c0_80, %c32_81] : memref<256x72xbf16, #tpu.memory_space<vmem>>, vector<256x8xbf16>
    tpu.vector_store %arg5[%c0_80, %c32_81], %64 {strides = array<i32>} : memref<256x72xbf16, #tpu.memory_space<vmem>>, vector<256x8xbf16>,
    %c1_82 = arith.constant 1 : index
    %c1_83 = arith.constant 1 : index
    %c2_84 = arith.constant 2 : index
    %c0_85 = arith.constant 0 : index
    %66 = vector.load %arg1[%c1_82, %c1_83, %c2_84, %c0_85] : memref<2x18x18x8xbf16, #tpu.memory_space<vmem>>, vector<1x16x16x8xbf16>
    %67 = vector.shape_cast %66 : vector<1x16x16x8xbf16> to vector<16x16x8xbf16>
    %68 = vector.shape_cast %67 : vector<16x16x8xbf16> to vector<256x8xbf16>
    %c0_86 = arith.constant 0 : index
    %c40_87 = arith.constant 40 : index
    %69 = vector.load %arg5[%c0_86, %c40_87] : memref<256x72xbf16, #tpu.memory_space<vmem>>, vector<256x8xbf16>
    tpu.vector_store %arg5[%c0_86, %c40_87], %68 {strides = array<i32>} : memref<256x72xbf16, #tpu.memory_space<vmem>>, vector<256x8xbf16>,
    %c1_88 = arith.constant 1 : index
    %c2_89 = arith.constant 2 : index
    %c0_90 = arith.constant 0 : index
    %c0_91 = arith.constant 0 : index
    %70 = vector.load %arg1[%c1_88, %c2_89, %c0_90, %c0_91] : memref<2x18x18x8xbf16, #tpu.memory_space<vmem>>, vector<1x16x16x8xbf16>
    %71 = vector.shape_cast %70 : vector<1x16x16x8xbf16> to vector<16x16x8xbf16>
    %72 = vector.shape_cast %71 : vector<16x16x8xbf16> to vector<256x8xbf16>
    %c0_92 = arith.constant 0 : index
    %c48_93 = arith.constant 48 : index
    %73 = vector.load %arg5[%c0_92, %c48_93] : memref<256x72xbf16, #tpu.memory_space<vmem>>, vector<256x8xbf16>
    tpu.vector_store %arg5[%c0_92, %c48_93], %72 {strides = array<i32>} : memref<256x72xbf16, #tpu.memory_space<vmem>>, vector<256x8xbf16>,
    %c1_94 = arith.constant 1 : index
    %c2_95 = arith.constant 2 : index
    %c1_96 = arith.constant 1 : index
    %c0_97 = arith.constant 0 : index
    %74 = vector.load %arg1[%c1_94, %c2_95, %c1_96, %c0_97] : memref<2x18x18x8xbf16, #tpu.memory_space<vmem>>, vector<1x16x16x8xbf16>
    %75 = vector.shape_cast %74 : vector<1x16x16x8xbf16> to vector<16x16x8xbf16>
    %76 = vector.shape_cast %75 : vector<16x16x8xbf16> to vector<256x8xbf16>
    %c0_98 = arith.constant 0 : index
    %c56_99 = arith.constant 56 : index
    %77 = vector.load %arg5[%c0_98, %c56_99] : memref<256x72xbf16, #tpu.memory_space<vmem>>, vector<256x8xbf16>
    tpu.vector_store %arg5[%c0_98, %c56_99], %76 {strides = array<i32>} : memref<256x72xbf16, #tpu.memory_space<vmem>>, vector<256x8xbf16>,
    %c1_100 = arith.constant 1 : index
    %c2_101 = arith.constant 2 : index
    %c2_102 = arith.constant 2 : index
    %c0_103 = arith.constant 0 : index
    %78 = vector.load %arg1[%c1_100, %c2_101, %c2_102, %c0_103] : memref<2x18x18x8xbf16, #tpu.memory_space<vmem>>, vector<1x16x16x8xbf16>
    %79 = vector.shape_cast %78 : vector<1x16x16x8xbf16> to vector<16x16x8xbf16>
    %80 = vector.shape_cast %79 : vector<16x16x8xbf16> to vector<256x8xbf16>
    %c0_104 = arith.constant 0 : index
    %c64_105 = arith.constant 64 : index
    %81 = vector.load %arg5[%c0_104, %c64_105] : memref<256x72xbf16, #tpu.memory_space<vmem>>, vector<256x8xbf16>
    tpu.vector_store %arg5[%c0_104, %c64_105], %80 {strides = array<i32>} : memref<256x72xbf16, #tpu.memory_space<vmem>>, vector<256x8xbf16>,
    %c0_106 = arith.constant 0 : index
    %c0_107 = arith.constant 0 : index
    %82 = vector.load %arg5[%c0_106, %c0_107] : memref<256x72xbf16, #tpu.memory_space<vmem>>, vector<256x72xbf16>
    %cst_108 = arith.constant dense<0.000000e+00> : vector<8x256xf32>
    %83 = tpu.matmul %0, %82, %cst_108 {dimension_numbers = #tpu.dot_dimension_numbers<[1], [1], [0], [0], [0, 0, 1, 0], [], []>} : vector<8x72xbf16>, vector<256x72xbf16>, vector<8x256xf32> -> vector<8x256xf32>
    %84 = arith.addf %83, %3 : vector<8x256xf32>
    %c1_109 = arith.constant 1 : index
    %c0_110 = arith.constant 0 : index
    %c0_111 = arith.constant 0 : index
    %85 = vector.load %arg4[%c1_109, %c0_110, %c0_111] : memref<2x8x256xf32, #tpu.memory_space<vmem>>, vector<1x8x256xf32>
    %86 = vector.shape_cast %85 : vector<1x8x256xf32> to vector<8x256xf32>
    %87 = vector.shape_cast %84 : vector<8x256xf32> to vector<1x8x256xf32>
    tpu.vector_store %arg4[%c1_109, %c0_110, %c0_111], %87 {strides = array<i32>} : memref<2x8x256xf32, #tpu.memory_space<vmem>>, vector<1x8x256xf32>,
    return
  }
  func.func @transform_0(%arg0: i32) -> (i32, i32, i32, i32) {
    %c0_i32 = arith.constant 0 : i32
    %c0_i32_0 = arith.constant 0 : i32
    %c0_i32_1 = arith.constant 0 : i32
    %c0_i32_2 = arith.constant 0 : i32
    return %arg0, %c0_i32, %c0_i32_0, %c0_i32_1 : i32, i32, i32, i32
  }
  func.func @transform_1(%arg0: i32) -> (i32, i32) {
    %c0_i32 = arith.constant 0 : i32
    %c0_i32_0 = arith.constant 0 : i32
    %c0_i32_1 = arith.constant 0 : i32
    return %c0_i32, %c0_i32_0 : i32, i32
  }
  func.func @transform_2(%arg0: i32) -> (i32, i32) {
    %c0_i32 = arith.constant 0 : i32
    %c0_i32_0 = arith.constant 0 : i32
    %c0_i32_1 = arith.constant 0 : i32
    return %c0_i32, %c0_i32_0 : i32, i32
  }
  func.func @transform_3(%arg0: i32) -> (i32, i32, i32) {
    %c0_i32 = arith.constant 0 : i32
    %c0_i32_0 = arith.constant 0 : i32
    %c0_i32_1 = arith.constant 0 : i32
    return %arg0, %c0_i32, %c0_i32_0 : i32, i32, i32
  }
}

</mosaic_0001>

<llo_original>
// kernel: coord_conv2d.1
$region0: #{coord_conv2d.1}
  #allocation0 [shape = 'u32[]', space=smem, size = 0x4, offset = 0x4, fixed_abs, tag = 'smem constant byte address 0x4 - core index']
  #allocation1 [shape = 'u32[144,128]{1,0:T(1,128)}', space=vmem, size = 0x12000, scoped, tag = 'internal scratch']
  #allocation2 [shape = 'bf16[256,72]{1,0:T(16,128)(2,1)}', space=vmem, size = 0x10000, scoped, tag = 'scratch operand']
  %s0 = inlined_call_operand.vmem [shape: bf16[2,18,18,8], index: 0, kind: input, shape index: {}]
  %s1 = inlined_call_operand.vmem [shape: bf16[8,72], index: 1, kind: input, shape index: {}]
  %s2 = inlined_call_operand.vmem [shape: f32[8,1], index: 2, kind: input, shape index: {}]
  %s3 = inlined_call_operand.vmem [shape: f32[2,8,256], index: 3, kind: output, shape index: {}]
  %s4 = sld [smem:[#allocation0]]
  $region22: #{coord_conv2d.1} parent=0
    _
  %s6 = ssub.s32 1, %s4
  %s7 = scalar_select 0, %s6, %s4
  // Predicated region
  $region2: #{coord_conv2d.1} parent=0 // pred_check
    _
  $region3: #{coord_conv2d.1} parent=0 // pred_check_branch
    %9 = sbr.rel (0) target = $region5
  $region4: #{coord_conv2d.1} parent=0 // pred_region
    _
  $region5: #{coord_conv2d.1} parent=0 // pred_fallthru
    _
  // Predicated region
  $region6: #{coord_conv2d.1} parent=0 // pred_check
    _
  $region7: #{coord_conv2d.1} parent=0 // pred_check_branch
    %11 = sbr.rel (0) target = $region9
  $region8: #{coord_conv2d.1} parent=0 // pred_region
    _
  $region9: #{coord_conv2d.1} parent=0 // pred_fallthru
    _
  // Predicated region
  $region10: #{coord_conv2d.1} parent=0 // pred_check
    _
  $region11: #{coord_conv2d.1} parent=0 // pred_check_branch
    %13 = sbr.rel (0) target = $region13
  $region12: #{coord_conv2d.1} parent=0 // pred_region
    _
  $region13: #{coord_conv2d.1} parent=0 // pred_fallthru
    _
  %v15 = vld [vmem:[%s1] sm:$0xf]
  %v16 = vld [vmem:[%s2] sm:$0xff]
  %18 = vset.pattern.permute.xlu0 0
  %19 = vperm.xlu0 %18, %v16
  %v20 = vpop.permute.xlu0 %19
  %v22 = vld [vmem:[%s0] sm:$0xf]
  %v23 = vld [vmem:[%s0 + $0x4] sm:$0xf]
  %v24 = vld [vmem:[%s0 + $0xc] sm:$0xf]
  %v25 = vld [vmem:[%s0 + $0x10] sm:$0xf]
  %v26 = vld [vmem:[%s0 + $0x18] sm:$0xf]
  %v27 = vld [vmem:[%s0 + $0x1c] sm:$0xf]
  %v28 = vld [vmem:[%s0 + $0x24] sm:$0xf]
  %v29 = vld [vmem:[%s0 + $0x28] sm:$0xf]
  %v30 = vld [vmem:[%s0 + $0x30] sm:$0xf]
  %v31 = vld [vmem:[%s0 + $0x34] sm:$0xf]
  %v32 = vld [vmem:[%s0 + $0x3c] sm:$0xf]
  %v33 = vld [vmem:[%s0 + $0x40] sm:$0xf]
  %v34 = vld [vmem:[%s0 + $0x48] sm:$0xf]
  %v35 = vld [vmem:[%s0 + $0x4c] sm:$0xf]
  %v36 = vld [vmem:[%s0 + $0x54] sm:$0xf]
  %v37 = vld [vmem:[%s0 + $0x58] sm:$0xf]
  %v38 = vld [vmem:[%s0 + $0x60] sm:$0xf]
  %v39 = vld [vmem:[%s0 + $0x64] sm:$0xf]
  %v40 = vld [vmem:[%s0 + $0x6c] sm:$0xf]
  %v41 = vld [vmem:[%s0 + $0x70] sm:$0xf]
  %v42 = vld [vmem:[%s0 + $0x78] sm:$0xf]
  %v43 = vld [vmem:[%s0 + $0x7c] sm:$0xf]
  %v44 = vld [vmem:[%s0 + $0x84] sm:$0xf]
  %v45 = vld [vmem:[%s0 + $0x88] sm:$0xf]
  %v46 = vld [vmem:[%s0 + $0x90] sm:$0xf]
  %v47 = vld [vmem:[%s0 + $0x94] sm:$0xf]
  %v48 = vld [vmem:[%s0 + $0x9c] sm:$0xf]
  %v49 = vld [vmem:[%s0 + $0xa0] sm:$0xf]
  %v50 = vld [vmem:[%s0 + $0xa8] sm:$0xf]
  %v51 = vld [vmem:[%s0 + $0xac] sm:$0xf]
  %v52 = vld [vmem:[%s0 + $0xb4] sm:$0xf]
  %v53 = vld [vmem:[%s0 + $0xb8] sm:$0xf]
  %v86 = vunpack.c.l.b16 %v22
  %v87 = vunpack.c.l.b16 %v23
  %v88 = vunpack.c.l.b16 %v24
  %v89 = vunpack.c.l.b16 %v25
  %v90 = vunpack.c.l.b16 %v26
  %v91 = vunpack.c.l.b16 %v27
  %v92 = vunpack.c.l.b16 %v28
  %v93 = vunpack.c.l.b16 %v29
  %v94 = vunpack.c.l.b16 %v30
  %v95 = vunpack.c.l.b16 %v31
  %v96 = vunpack.c.l.b16 %v32
  %v97 = vunpack.c.l.b16 %v33
  %v98 = vunpack.c.l.b16 %v34
  %v99 = vunpack.c.l.b16 %v35
  %v100 = vunpack.c.l.b16 %v36
  %v101 = vunpack.c.l.b16 %v37
  %v102 = vunpack.c.l.b16 %v38
  %v103 = vunpack.c.l.b16 %v39
  %v104 = vunpack.c.l.b16 %v40
  %v105 = vunpack.c.l.b16 %v41
  %v106 = vunpack.c.l.b16 %v42
  %v107 = vunpack.c.l.b16 %v43
  %v108 = vunpack.c.l.b16 %v44
  %v109 = vunpack.c.l.b16 %v45
  %v110 = vunpack.c.l.b16 %v46
  %v111 = vunpack.c.l.b16 %v47
  %v112 = vunpack.c.l.b16 %v48
  %v113 = vunpack.c.l.b16 %v49
  %v114 = vunpack.c.l.b16 %v50
  %v115 = vunpack.c.l.b16 %v51
  %v116 = vunpack.c.l.b16 %v52
  %v117 = vunpack.c.l.b16 %v53
  %v118 = vpack.c.b16 %v87, %v86
  %v119 = vpack.c.b16 %v89, %v88
  %v120 = vpack.c.b16 %v91, %v90
  %v121 = vpack.c.b16 %v93, %v92
  %v122 = vpack.c.b16 %v95, %v94
  %v123 = vpack.c.b16 %v97, %v96
  %v124 = vpack.c.b16 %v99, %v98
  %v125 = vpack.c.b16 %v101, %v100
  %v126 = vpack.c.b16 %v103, %v102
  %v127 = vpack.c.b16 %v105, %v104
  %v128 = vpack.c.b16 %v107, %v106
  %v129 = vpack.c.b16 %v109, %v108
  %v130 = vpack.c.b16 %v111, %v110
  %v131 = vpack.c.b16 %v113, %v112
  %v132 = vpack.c.b16 %v115, %v114
  %v133 = vpack.c.b16 %v117, %v116
  %vm150 = vcmask 64512
  %151 = vst.msk [vmem:[#allocation2] sm:$0xff] %vm150, %v118
  %152 = vst.msk [vmem:[#allocation2 + $0x8] sm:$0xff] %vm150, %v119
  %153 = vst.msk [vmem:[#allocation2 + $0x10] sm:$0xff] %vm150, %v120
  %154 = vst.msk [vmem:[#allocation2 + $0x18] sm:$0xff] %vm150, %v121
  %155 = vst.msk [vmem:[#allocation2 + $0x20] sm:$0xff] %vm150, %v122
  %156 = vst.msk [vmem:[#allocation2 + $0x28] sm:$0xff] %vm150, %v123
  %157 = vst.msk [vmem:[#allocation2 + $0x30] sm:$0xff] %vm150, %v124
  %158 = vst.msk [vmem:[#allocation2 + $0x38] sm:$0xff] %vm150, %v125
  %159 = vst.msk [vmem:[#allocation2 + $0x40] sm:$0xff] %vm150, %v126
  %160 = vst.msk [vmem:[#allocation2 + $0x48] sm:$0xff] %vm150, %v127
  %161 = vst.msk [vmem:[#allocation2 + $0x50] sm:$0xff] %vm150, %v128
  %162 = vst.msk [vmem:[#allocation2 + $0x58] sm:$0xff] %vm150, %v129
  %163 = vst.msk [vmem:[#allocation2 + $0x60] sm:$0xff] %vm150, %v130
  %164 = vst.msk [vmem:[#allocation2 + $0x68] sm:$0xff] %vm150, %v131
  %165 = vst.msk [vmem:[#allocation2 + $0x70] sm:$0xff] %vm150, %v132
  %166 = vst.msk [vmem:[#allocation2 + $0x78] sm:$0xff] %vm150, %v133
  %v167 = vld [vmem:[%s0] sm:$0xf]
  %v168 = vld [vmem:[%s0 + $0x4] sm:$0xf]
  %v169 = vld [vmem:[%s0 + $0x8] sm:$0x1]
  %v170 = vld [vmem:[%s0 + $0xc] sm:$0xf]
  %v171 = vld [vmem:[%s0 + $0x10] sm:$0xf]
  %v172 = vld [vmem:[%s0 + $0x14] sm:$0x1]
  %v173 = vld [vmem:[%s0 + $0x18] sm:$0xf]
  %v174 = vld [vmem:[%s0 + $0x1c] sm:$0xf]
  %v175 = vld [vmem:[%s0 + $0x20] sm:$0x1]
  %v176 = vld [vmem:[%s0 + $0x24] sm:$0xf]
  %v177 = vld [vmem:[%s0 + $0x28] sm:$0xf]
  %v178 = vld [vmem:[%s0 + $0x2c] sm:$0x1]
  %v179 = vld [vmem:[%s0 + $0x30] sm:$0xf]
  %v180 = vld [vmem:[%s0 + $0x34] sm:$0xf]
  %v181 = vld [vmem:[%s0 + $0x38] sm:$0x1]
  %v182 = vld [vmem:[%s0 + $0x3c] sm:$0xf]
  %v183 = vld [vmem:[%s0 + $0x40] sm:$0xf]
  %v184 = vld [vmem:[%s0 + $0x44] sm:$0x1]
  %v185 = vld [vmem:[%s0 + $0x48] sm:$0xf]
  %v186 = vld [vmem:[%s0 + $0x4c] sm:$0xf]
  %v187 = vld [vmem:[%s0 + $0x50] sm:$0x1]
  %v188 = vld [vmem:[%s0 + $0x54] sm:$0xf]
  %v189 = vld [vmem:[%s0 + $0x58] sm:$0xf]
  %v190 = vld [vmem:[%s0 + $0x5c] sm:$0x1]
  %v191 = vld [vmem:[%s0 + $0x60] sm:$0xf]
  %v192 = vld [vmem:[%s0 + $0x64] sm:$0xf]
  %v193 = vld [vmem:[%s0 + $0x68] sm:$0x1]
  %v194 = vld [vmem:[%s0 + $0x6c] sm:$0xf]
  %v195 = vld [vmem:[%s0 + $0x70] sm:$0xf]
  %v196 = vld [vmem:[%s0 + $0x74] sm:$0x1]
  %v197 = vld [vmem:[%s0 + $0x78] sm:$0xf]
  %v198 = vld [vmem:[%s0 + $0x7c] sm:$0xf]
  %v199 = vld [vmem:[%s0 + $0x80] sm:$0x1]
  %v200 = vld [vmem:[%s0 + $0x84] sm:$0xf]
  %v201 = vld [vmem:[%s0 + $0x88] sm:$0xf]
  %v202 = vld [vmem:[%s0 + $0x8c] sm:$0x1]
  %v203 = vld [vmem:[%s0 + $0x90] sm:$0xf]
  %v204 = vld [vmem:[%s0 + $0x94] sm:$0xf]
  %v205 = vld [vmem:[%s0 + $0x98] sm:$0x1]
  %v206 = vld [vmem:[%s0 + $0x9c] sm:$0xf]
  %v207 = vld [vmem:[%s0 + $0xa0] sm:$0xf]
  %v208 = vld [vmem:[%s0 + $0xa4] sm:$0x1]
  %v209 = vld [vmem:[%s0 + $0xa8] sm:$0xf]
  %v210 = vld [vmem:[%s0 + $0xac] sm:$0xf]
  %v211 = vld [vmem:[%s0 + $0xb0] sm:$0x1]
  %v212 = vld [vmem:[%s0 + $0xb4] sm:$0xf]
  %v213 = vld [vmem:[%s0 + $0xb8] sm:$0xf]
  %v214 = vld [vmem:[%s0 + $0xbc] sm:$0x1]
  %vm215 = vsmask.f32 3328
  %vm216 = vsmask.f32 7440
  %vm217 = vmor %vm215, %vm216
  %v219 = vshrl.u32 %v167, 16
  %v221 = vrot.slane %v219, 4
  %v222 = vshll.u32 %v167, 16
  %v224 = vrot.slane %v222, 5
  %v225 = vor.u32 %v221, %v224
  %v226 = vrot.slane %v225, 4
  %v228 = vshll.u32 %v168, 16
  %v230 = vrot.slane %v228, 5
  %v231 = vsel %vm217, %v226, %v230
  %v232 = vshrl.u32 %v168, 16
  %v234 = vrot.slane %v232, 4
  %v235 = vor.u32 %v234, %v230
  %v236 = vrot.slane %v235, 4
  %v238 = vshll.u32 %v169, 16
  %v240 = vrot.slane %v238, 5
  %v241 = vsel %vm217, %v236, %v240
  %v243 = vshrl.u32 %v170, 16
  %v245 = vrot.slane %v243, 4
  %v246 = vshll.u32 %v170, 16
  %v248 = vrot.slane %v246, 5
  %v249 = vor.u32 %v245, %v248
  %v250 = vrot.slane %v249, 4
  %v252 = vshll.u32 %v171, 16
  %v254 = vrot.slane %v252, 5
  %v255 = vsel %vm217, %v250, %v254
  %v256 = vshrl.u32 %v171, 16
  %v258 = vrot.slane %v256, 4
  %v259 = vor.u32 %v258, %v254
  %v260 = vrot.slane %v259, 4
  %v262 = vshll.u32 %v172, 16
  %v264 = vrot.slane %v262, 5
  %v265 = vsel %vm217, %v260, %v264
  %v267 = vshrl.u32 %v173, 16
  %v269 = vrot.slane %v267, 4
  %v270 = vshll.u32 %v173, 16
  %v272 = vrot.slane %v270, 5
  %v273 = vor.u32 %v269, %v272
  %v274 = vrot.slane %v273, 4
  %v276 = vshll.u32 %v174, 16
  %v278 = vrot.slane %v276, 5
  %v279 = vsel %vm217, %v274, %v278
  %v280 = vshrl.u32 %v174, 16
  %v282 = vrot.slane %v280, 4
  %v283 = vor.u32 %v282, %v278
  %v284 = vrot.slane %v283, 4
  %v286 = vshll.u32 %v175, 16
  %v288 = vrot.slane %v286, 5
  %v289 = vsel %vm217, %v284, %v288
  %v291 = vshrl.u32 %v176, 16
  %v293 = vrot.slane %v291, 4
  %v294 = vshll.u32 %v176, 16
  %v296 = vrot.slane %v294, 5
  %v297 = vor.u32 %v293, %v296
  %v298 = vrot.slane %v297, 4
  %v300 = vshll.u32 %v177, 16
  %v302 = vrot.slane %v300, 5
  %v303 = vsel %vm217, %v298, %v302
  %v304 = vshrl.u32 %v177, 16
  %v306 = vrot.slane %v304, 4
  %v307 = vor.u32 %v306, %v302
  %v308 = vrot.slane %v307, 4
  %v310 = vshll.u32 %v178, 16
  %v312 = vrot.slane %v310, 5
  %v313 = vsel %vm217, %v308, %v312
  %v315 = vshrl.u32 %v179, 16
  %v317 = vrot.slane %v315, 4
  %v318 = vshll.u32 %v179, 16
  %v320 = vrot.slane %v318, 5
  %v321 = vor.u32 %v317, %v320
  %v322 = vrot.slane %v321, 4
  %v324 = vshll.u32 %v180, 16
  %v326 = vrot.slane %v324, 5
  %v327 = vsel %vm217, %v322, %v326
  %v328 = vshrl.u32 %v180, 16
  %v330 = vrot.slane %v328, 4
  %v331 = vor.u32 %v330, %v326
  %v332 = vrot.slane %v331, 4
  %v334 = vshll.u32 %v181, 16
  %v336 = vrot.slane %v334, 5
  %v337 = vsel %vm217, %v332, %v336
  %v339 = vshrl.u32 %v182, 16
  %v341 = vrot.slane %v339, 4
  %v342 = vshll.u32 %v182, 16
  %v344 = vrot.slane %v342, 5
  %v345 = vor.u32 %v341, %v344
  %v346 = vrot.slane %v345, 4
  %v348 = vshll.u32 %v183, 16
  %v350 = vrot.slane %v348, 5
  %v351 = vsel %vm217, %v346, %v350
  %v352 = vshrl.u32 %v183, 16
  %v354 = vrot.slane %v352, 4
  %v355 = vor.u32 %v354, %v350
  %v356 = vrot.slane %v355, 4
  %v358 = vshll.u32 %v184, 16
  %v360 = vrot.slane %v358, 5
  %v361 = vsel %vm217, %v356, %v360
  %v363 = vshrl.u32 %v185, 16
  %v365 = vrot.slane %v363, 4
  %v366 = vshll.u32 %v185, 16
  %v368 = vrot.slane %v366, 5
  %v369 = vor.u32 %v365, %v368
  %v370 = vrot.slane %v369, 4
  %v372 = vshll.u32 %v186, 16
  %v374 = vrot.slane %v372, 5
  %v375 = vsel %vm217, %v370, %v374
  %v376 = vshrl.u32 %v186, 16
  %v378 = vrot.slane %v376, 4
  %v379 = vor.u32 %v378, %v374
  %v380 = vrot.slane %v379, 4
  %v382 = vshll.u32 %v187, 16
  %v384 = vrot.slane %v382, 5
  %v385 = vsel %vm217, %v380, %v384
  %v387 = vshrl.u32 %v188, 16
  %v389 = vrot.slane %v387, 4
  %v390 = vshll.u32 %v188, 16
  %v392 = vrot.slane %v390, 5
  %v393 = vor.u32 %v389, %v392
  %v394 = vrot.slane %v393, 4
  %v396 = vshll.u32 %v189, 16
  %v398 = vrot.slane %v396, 5
  %v399 = vsel %vm217, %v394, %v398
  %v400 = vshrl.u32 %v189, 16
  %v402 = vrot.slane %v400, 4
  %v403 = vor.u32 %v402, %v398
  %v404 = vrot.slane %v403, 4
  %v406 = vshll.u32 %v190, 16
  %v408 = vrot.slane %v406, 5
  %v409 = vsel %vm217, %v404, %v408
  %v411 = vshrl.u32 %v191, 16
  %v413 = vrot.slane %v411, 4
  %v414 = vshll.u32 %v191, 16
  %v416 = vrot.slane %v414, 5
  %v417 = vor.u32 %v413, %v416
  %v418 = vrot.slane %v417, 4
  %v420 = vshll.u32 %v192, 16
  %v422 = vrot.slane %v420, 5
  %v423 = vsel %vm217, %v418, %v422
  %v424 = vshrl.u32 %v192, 16
  %v426 = vrot.slane %v424, 4
  %v427 = vor.u32 %v426, %v422
  %v428 = vrot.slane %v427, 4
  %v430 = vshll.u32 %v193, 16
  %v432 = vrot.slane %v430, 5
  %v433 = vsel %vm217, %v428, %v432
  %v435 = vshrl.u32 %v194, 16
  %v437 = vrot.slane %v435, 4
  %v438 = vshll.u32 %v194, 16
  %v440 = vrot.slane %v438, 5
  %v441 = vor.u32 %v437, %v440
  %v442 = vrot.slane %v441, 4
  %v444 = vshll.u32 %v195, 16
  %v446 = vrot.slane %v444, 5
  %v447 = vsel %vm217, %v442, %v446
  %v448 = vshrl.u32 %v195, 16
  %v450 = vrot.slane %v448, 4
  %v451 = vor.u32 %v450, %v446
  %v452 = vrot.slane %v451, 4
  %v454 = vshll.u32 %v196, 16
  %v456 = vrot.slane %v454, 5
  %v457 = vsel %vm217, %v452, %v456
  %v459 = vshrl.u32 %v197, 16
  %v461 = vrot.slane %v459, 4
  %v462 = vshll.u32 %v197, 16
  %v464 = vrot.slane %v462, 5
  %v465 = vor.u32 %v461, %v464
  %v466 = vrot.slane %v465, 4
  %v468 = vshll.u32 %v198, 16
  %v470 = vrot.slane %v468, 5
  %v471 = vsel %vm217, %v466, %v470
  %v472 = vshrl.u32 %v198, 16
  %v474 = vrot.slane %v472, 4
  %v475 = vor.u32 %v474, %v470
  %v476 = vrot.slane %v475, 4
  %v478 = vshll.u32 %v199, 16
  %v480 = vrot.slane %v478, 5
  %v481 = vsel %vm217, %v476, %v480
  %v483 = vshrl.u32 %v200, 16
  %v485 = vrot.slane %v483, 4
  %v486 = vshll.u32 %v200, 16
  %v488 = vrot.slane %v486, 5
  %v489 = vor.u32 %v485, %v488
  %v490 = vrot.slane %v489, 4
  %v492 = vshll.u32 %v201, 16
  %v494 = vrot.slane %v492, 5
  %v495 = vsel %vm217, %v490, %v494
  %v496 = vshrl.u32 %v201, 16
  %v498 = vrot.slane %v496, 4
  %v499 = vor.u32 %v498, %v494
  %v500 = vrot.slane %v499, 4
  %v502 = vshll.u32 %v202, 16
  %v504 = vrot.slane %v502, 5
  %v505 = vsel %vm217, %v500, %v504
  %v507 = vshrl.u32 %v203, 16
  %v509 = vrot.slane %v507, 4
  %v510 = vshll.u32 %v203, 16
  %v512 = vrot.slane %v510, 5
  %v513 = vor.u32 %v509, %v512
  %v514 = vrot.slane %v513, 4
  %v516 = vshll.u32 %v204, 16
  %v518 = vrot.slane %v516, 5
  %v519 = vsel %vm217, %v514, %v518
  %v520 = vshrl.u32 %v204, 16
  %v522 = vrot.slane %v520, 4
  %v523 = vor.u32 %v522, %v518
  %v524 = vrot.slane %v523, 4
  %v526 = vshll.u32 %v205, 16
  %v528 = vrot.slane %v526, 5
  %v529 = vsel %vm217, %v524, %v528
  %v531 = vshrl.u32 %v206, 16
  %v533 = vrot.slane %v531, 4
  %v534 = vshll.u32 %v206, 16
  %v536 = vrot.slane %v534, 5
  %v537 = vor.u32 %v533, %v536
  %v538 = vrot.slane %v537, 4
  %v540 = vshll.u32 %v207, 16
  %v542 = vrot.slane %v540, 5
  %v543 = vsel %vm217, %v538, %v542
  %v544 = vshrl.u32 %v207, 16
  %v546 = vrot.slane %v544, 4
  %v547 = vor.u32 %v546, %v542
  %v548 = vrot.slane %v547, 4
  %v550 = vshll.u32 %v208, 16
  %v552 = vrot.slane %v550, 5
  %v553 = vsel %vm217, %v548, %v552
  %v555 = vshrl.u32 %v209, 16
  %v557 = vrot.slane %v555, 4
  %v558 = vshll.u32 %v209, 16
  %v560 = vrot.slane %v558, 5
  %v561 = vor.u32 %v557, %v560
  %v562 = vrot.slane %v561, 4
  %v564 = vshll.u32 %v210, 16
  %v566 = vrot.slane %v564, 5
  %v567 = vsel %vm217, %v562, %v566
  %v568 = vshrl.u32 %v210, 16
  %v570 = vrot.slane %v568, 4
  %v571 = vor.u32 %v570, %v566
  %v572 = vrot.slane %v571, 4
  %v574 = vshll.u32 %v211, 16
  %v576 = vrot.slane %v574, 5
  %v577 = vsel %vm217, %v572, %v576
  %v579 = vshrl.u32 %v212, 16
  %v581 = vrot.slane %v579, 4
  %v582 = vshll.u32 %v212, 16
  %v584 = vrot.slane %v582, 5
  %v585 = vor.u32 %v581, %v584
  %v586 = vrot.slane %v585, 4
  %v588 = vshll.u32 %v213, 16
  %v590 = vrot.slane %v588, 5
  %v591 = vsel %vm217, %v586, %v590
  %v592 = vshrl.u32 %v213, 16
  %v594 = vrot.slane %v592, 4
  %v595 = vor.u32 %v594, %v590
  %v596 = vrot.slane %v595, 4
  %v598 = vshll.u32 %v214, 16
  %v600 = vrot.slane %v598, 5
  %v601 = vsel %vm217, %v596, %v600
  %v602 = vunpack.c.l.b16 %v231
  %v603 = vunpack.c.l.b16 %v241
  %v604 = vunpack.c.l.b16 %v255
  %v605 = vunpack.c.l.b16 %v265
  %v606 = vunpack.c.l.b16 %v279
  %v607 = vunpack.c.l.b16 %v289
  %v608 = vunpack.c.l.b16 %v303
  %v609 = vunpack.c.l.b16 %v313
  %v610 = vunpack.c.l.b16 %v327
  %v611 = vunpack.c.l.b16 %v337
  %v612 = vunpack.c.l.b16 %v351
  %v613 = vunpack.c.l.b16 %v361
  %v614 = vunpack.c.l.b16 %v375
  %v615 = vunpack.c.l.b16 %v385
  %v616 = vunpack.c.l.b16 %v399
  %v617 = vunpack.c.l.b16 %v409
  %v618 = vunpack.c.l.b16 %v423
  %v619 = vunpack.c.l.b16 %v433
  %v620 = vunpack.c.l.b16 %v447
  %v621 = vunpack.c.l.b16 %v457
  %v622 = vunpack.c.l.b16 %v471
  %v623 = vunpack.c.l.b16 %v481
  %v624 = vunpack.c.l.b16 %v495
  %v625 = vunpack.c.l.b16 %v505
  %v626 = vunpack.c.l.b16 %v519
  %v627 = vunpack.c.l.b16 %v529
  %v628 = vunpack.c.l.b16 %v543
  %v629 = vunpack.c.l.b16 %v553
  %v630 = vunpack.c.l.b16 %v567
  %v631 = vunpack.c.l.b16 %v577
  %v632 = vunpack.c.l.b16 %v591
  %v633 = vunpack.c.l.b16 %v601
  %v634 = vpack.c.b16 %v603, %v602
  %v635 = vpack.c.b16 %v605, %v604
  %v636 = vpack.c.b16 %v607, %v606
  %v637 = vpack.c.b16 %v609, %v608
  %v638 = vpack.c.b16 %v611, %v610
  %v639 = vpack.c.b16 %v613, %v612
  %v640 = vpack.c.b16 %v615, %v614
  %v641 = vpack.c.b16 %v617, %v616
  %v642 = vpack.c.b16 %v619, %v618
  %v643 = vpack.c.b16 %v621, %v620
  %v644 = vpack.c.b16 %v623, %v622
  %v645 = vpack.c.b16 %v625, %v624
  %v646 = vpack.c.b16 %v627, %v626
  %v647 = vpack.c.b16 %v629, %v628
  %v648 = vpack.c.b16 %v631, %v630
  %v649 = vpack.c.b16 %v633, %v632
  %650 = vrot.lane.b32.xlu0 %v634, 8
  %v651 = vpop.permute.xlu0 %650
  %652 = vrot.lane.b32.xlu0 %v635, 8
  %v653 = vpop.permute.xlu0 %652
  %654 = vrot.lane.b32.xlu0 %v636, 8
  %v655 = vpop.permute.xlu0 %654
  %656 = vrot.lane.b32.xlu0 %v637, 8
  %v657 = vpop.permute.xlu0 %656
  %658 = vrot.lane.b32.xlu0 %v638, 8
  %v659 = vpop.permute.xlu0 %658
  %660 = vrot.lane.b32.xlu0 %v639, 8
  %v661 = vpop.permute.xlu0 %660
  %662 = vrot.lane.b32.xlu0 %v640, 8
  %v663 = vpop.permute.xlu0 %662
  %664 = vrot.lane.b32.xlu0 %v641, 8
  %v665 = vpop.permute.xlu0 %664
  %666 = vrot.lane.b32.xlu0 %v642, 8
  %v667 = vpop.permute.xlu0 %666
  %668 = vrot.lane.b32.xlu0 %v643, 8
  %v669 = vpop.permute.xlu0 %668
  %670 = vrot.lane.b32.xlu0 %v644, 8
  %v671 = vpop.permute.xlu0 %670
  %672 = vrot.lane.b32.xlu0 %v645, 8
  %v673 = vpop.permute.xlu0 %672
  %674 = vrot.lane.b32.xlu0 %v646, 8
  %v675 = vpop.permute.xlu0 %674
  %676 = vrot.lane.b32.xlu0 %v647, 8
  %v677 = vpop.permute.xlu0 %676
  %678 = vrot.lane.b32.xlu0 %v648, 8
  %v679 = vpop.permute.xlu0 %678
  %680 = vrot.lane.b32.xlu0 %v649, 8
  %v681 = vpop.permute.xlu0 %680
  %vm698 = vcmask 130112
  %699 = vst.msk [vmem:[#allocation2] sm:$0xff] %vm698, %v651
  %700 = vst.msk [vmem:[#allocation2 + $0x8] sm:$0xff] %vm698, %v653
  %701 = vst.msk [vmem:[#allocation2 + $0x10] sm:$0xff] %vm698, %v655
  %702 = vst.msk [vmem:[#allocation2 + $0x18] sm:$0xff] %vm698, %v657
  %703 = vst.msk [vmem:[#allocation2 + $0x20] sm:$0xff] %vm698, %v659
  %704 = vst.msk [vmem:[#allocation2 + $0x28] sm:$0xff] %vm698, %v661
  %705 = vst.msk [vmem:[#allocation2 + $0x30] sm:$0xff] %vm698, %v663
  %706 = vst.msk [vmem:[#allocation2 + $0x38] sm:$0xff] %vm698, %v665
  %707 = vst.msk [vmem:[#allocation2 + $0x40] sm:$0xff] %vm698, %v667
  %708 = vst.msk [vmem:[#allocation2 + $0x48] sm:$0xff] %vm698, %v669
  %709 = vst.msk [vmem:[#allocation2 + $0x50] sm:$0xff] %vm698, %v671
  %710 = vst.msk [vmem:[#allocation2 + $0x58] sm:$0xff] %vm698, %v673
  %711 = vst.msk [vmem:[#allocation2 + $0x60] sm:$0xff] %vm698, %v675
  %712 = vst.msk [vmem:[#allocation2 + $0x68] sm:$0xff] %vm698, %v677
  %713 = vst.msk [vmem:[#allocation2 + $0x70] sm:$0xff] %vm698, %v679
  %714 = vst.msk [vmem:[#allocation2 + $0x78] sm:$0xff] %vm698, %v681
  %v715 = vld [vmem:[%s0] sm:$0xe]
  %v716 = vld [vmem:[%s0 + $0x4] sm:$0xf]
  %v717 = vld [vmem:[%s0 + $0x8] sm:$0x1]
  %v718 = vld [vmem:[%s0 + $0xc] sm:$0xe]
  %v719 = vld [vmem:[%s0 + $0x10] sm:$0xf]
  %v720 = vld [vmem:[%s0 + $0x14] sm:$0x1]
  %v721 = vld [vmem:[%s0 + $0x18] sm:$0xe]
  %v722 = vld [vmem:[%s0 + $0x1c] sm:$0xf]
  %v723 = vld [vmem:[%s0 + $0x20] sm:$0x1]
  %v724 = vld [vmem:[%s0 + $0x24] sm:$0xe]
  %v725 = vld [vmem:[%s0 + $0x28] sm:$0xf]
  %v726 = vld [vmem:[%s0 + $0x2c] sm:$0x1]
  %v727 = vld [vmem:[%s0 + $0x30] sm:$0xe]
  %v728 = vld [vmem:[%s0 + $0x34] sm:$0xf]
  %v729 = vld [vmem:[%s0 + $0x38] sm:$0x1]
  %v730 = vld [vmem:[%s0 + $0x3c] sm:$0xe]
  %v731 = vld [vmem:[%s0 + $0x40] sm:$0xf]
  %v732 = vld [vmem:[%s0 + $0x44] sm:$0x1]
  %v733 = vld [vmem:[%s0 + $0x48] sm:$0xe]
  %v734 = vld [vmem:[%s0 + $0x4c] sm:$0xf]
  %v735 = vld [vmem:[%s0 + $0x50] sm:$0x1]
  %v736 = vld [vmem:[%s0 + $0x54] sm:$0xe]
  %v737 = vld [vmem:[%s0 + $0x58] sm:$0xf]
  %v738 = vld [vmem:[%s0 + $0x5c] sm:$0x1]
  %v739 = vld [vmem:[%s0 + $0x60] sm:$0xe]
  %v740 = vld [vmem:[%s0 + $0x64] sm:$0xf]
  %v741 = vld [vmem:[%s0 + $0x68] sm:$0x1]
  %v742 = vld [vmem:[%s0 + $0x6c] sm:$0xe]
  %v743 = vld [vmem:[%s0 + $0x70] sm:$0xf]
  %v744 = vld [vmem:[%s0 + $0x74] sm:$0x1]
  %v745 = vld [vmem:[%s0 + $0x78] sm:$0xe]
  %v746 = vld [vmem:[%s0 + $0x7c] sm:$0xf]
  %v747 = vld [vmem:[%s0 + $0x80] sm:$0x1]
  %v748 = vld [vmem:[%s0 + $0x84] sm:$0xe]
  %v749 = vld [vmem:[%s0 + $0x88] sm:$0xf]
  %v750 = vld [vmem:[%s0 + $0x8c] sm:$0x1]
  %v751 = vld [vmem:[%s0 + $0x90] sm:$0xe]
  %v752 = vld [vmem:[%s0 + $0x94] sm:$0xf]
  %v753 = vld [vmem:[%s0 + $0x98] sm:$0x1]
  %v754 = vld [vmem:[%s0 + $0x9c] sm:$0xe]
  %v755 = vld [vmem:[%s0 + $0xa0] sm:$0xf]
  %v756 = vld [vmem:[%s0 + $0xa4] sm:$0x1]
  %v757 = vld [vmem:[%s0 + $0xa8] sm:$0xe]
  %v758 = vld [vmem:[%s0 + $0xac] sm:$0xf]
  %v759 = vld [vmem:[%s0 + $0xb0] sm:$0x1]
  %v760 = vld [vmem:[%s0 + $0xb4] sm:$0xe]
  %v761 = vld [vmem:[%s0 + $0xb8] sm:$0xf]
  %v762 = vld [vmem:[%s0 + $0xbc] sm:$0x1]
  %vm811 = vcmask 1042432
  %vm812 = vcmask 1046532
  %vm813 = vmor %vm811, %vm812
  %v814 = vrot.slane %v715, 5
  %v815 = vrot.slane %v814, 4
  %v816 = vrot.slane %v716, 5
  %v817 = vsel %vm813, %v815, %v816
  %v818 = vrot.slane %v816, 4
  %v819 = vrot.slane %v717, 5
  %v820 = vsel %vm813, %v818, %v819
  %v821 = vrot.slane %v718, 5
  %v822 = vrot.slane %v821, 4
  %v823 = vrot.slane %v719, 5
  %v824 = vsel %vm813, %v822, %v823
  %v825 = vrot.slane %v823, 4
  %v826 = vrot.slane %v720, 5
  %v827 = vsel %vm813, %v825, %v826
  %v828 = vrot.slane %v721, 5
  %v829 = vrot.slane %v828, 4
  %v830 = vrot.slane %v722, 5
  %v831 = vsel %vm813, %v829, %v830
  %v832 = vrot.slane %v830, 4
  %v833 = vrot.slane %v723, 5
  %v834 = vsel %vm813, %v832, %v833
  %v835 = vrot.slane %v724, 5
  %v836 = vrot.slane %v835, 4
  %v837 = vrot.slane %v725, 5
  %v838 = vsel %vm813, %v836, %v837
  %v839 = vrot.slane %v837, 4
  %v840 = vrot.slane %v726, 5
  %v841 = vsel %vm813, %v839, %v840
  %v842 = vrot.slane %v727, 5
  %v843 = vrot.slane %v842, 4
  %v844 = vrot.slane %v728, 5
  %v845 = vsel %vm813, %v843, %v844
  %v846 = vrot.slane %v844, 4
  %v847 = vrot.slane %v729, 5
  %v848 = vsel %vm813, %v846, %v847
  %v849 = vrot.slane %v730, 5
  %v850 = vrot.slane %v849, 4
  %v851 = vrot.slane %v731, 5
  %v852 = vsel %vm813, %v850, %v851
  %v853 = vrot.slane %v851, 4
  %v854 = vrot.slane %v732, 5
  %v855 = vsel %vm813, %v853, %v854
  %v856 = vrot.slane %v733, 5
  %v857 = vrot.slane %v856, 4
  %v858 = vrot.slane %v734, 5
  %v859 = vsel %vm813, %v857, %v858
  %v860 = vrot.slane %v858, 4
  %v861 = vrot.slane %v735, 5
  %v862 = vsel %vm813, %v860, %v861
  %v863 = vrot.slane %v736, 5
  %v864 = vrot.slane %v863, 4
  %v865 = vrot.slane %v737, 5
  %v866 = vsel %vm813, %v864, %v865
  %v867 = vrot.slane %v865, 4
  %v868 = vrot.slane %v738, 5
  %v869 = vsel %vm813, %v867, %v868
  %v870 = vrot.slane %v739, 5
  %v871 = vrot.slane %v870, 4
  %v872 = vrot.slane %v740, 5
  %v873 = vsel %vm813, %v871, %v872
  %v874 = vrot.slane %v872, 4
  %v875 = vrot.slane %v741, 5
  %v876 = vsel %vm813, %v874, %v875
  %v877 = vrot.slane %v742, 5
  %v878 = vrot.slane %v877, 4
  %v879 = vrot.slane %v743, 5
  %v880 = vsel %vm813, %v878, %v879
  %v881 = vrot.slane %v879, 4
  %v882 = vrot.slane %v744, 5
  %v883 = vsel %vm813, %v881, %v882
  %v884 = vrot.slane %v745, 5
  %v885 = vrot.slane %v884, 4
  %v886 = vrot.slane %v746, 5
  %v887 = vsel %vm813, %v885, %v886
  %v888 = vrot.slane %v886, 4
  %v889 = vrot.slane %v747, 5
  %v890 = vsel %vm813, %v888, %v889
  %v891 = vrot.slane %v748, 5
  %v892 = vrot.slane %v891, 4
  %v893 = vrot.slane %v749, 5
  %v894 = vsel %vm813, %v892, %v893
  %v895 = vrot.slane %v893, 4
  %v896 = vrot.slane %v750, 5
  %v897 = vsel %vm813, %v895, %v896
  %v898 = vrot.slane %v751, 5
  %v899 = vrot.slane %v898, 4
  %v900 = vrot.slane %v752, 5
  %v901 = vsel %vm813, %v899, %v900
  %v902 = vrot.slane %v900, 4
  %v903 = vrot.slane %v753, 5
  %v904 = vsel %vm813, %v902, %v903
  %v905 = vrot.slane %v754, 5
  %v906 = vrot.slane %v905, 4
  %v907 = vrot.slane %v755, 5
  %v908 = vsel %vm813, %v906, %v907
  %v909 = vrot.slane %v907, 4
  %v910 = vrot.slane %v756, 5
  %v911 = vsel %vm813, %v909, %v910
  %v912 = vrot.slane %v757, 5
  %v913 = vrot.slane %v912, 4
  %v914 = vrot.slane %v758, 5
  %v915 = vsel %vm813, %v913, %v914
  %v916 = vrot.slane %v914, 4
  %v917 = vrot.slane %v759, 5
  %v918 = vsel %vm813, %v916, %v917
  %v919 = vrot.slane %v760, 5
  %v920 = vrot.slane %v919, 4
  %v921 = vrot.slane %v761, 5
  %v922 = vsel %vm813, %v920, %v921
  %v923 = vrot.slane %v921, 4
  %v924 = vrot.slane %v762, 5
  %v925 = vsel %vm813, %v923, %v924
  %v926 = vunpack.c.l.b16 %v817
  %v927 = vunpack.c.l.b16 %v820
  %v928 = vunpack.c.l.b16 %v824
  %v929 = vunpack.c.l.b16 %v827
  %v930 = vunpack.c.l.b16 %v831
  %v931 = vunpack.c.l.b16 %v834
  %v932 = vunpack.c.l.b16 %v838
  %v933 = vunpack.c.l.b16 %v841
  %v934 = vunpack.c.l.b16 %v845
  %v935 = vunpack.c.l.b16 %v848
  %v936 = vunpack.c.l.b16 %v852
  %v937 = vunpack.c.l.b16 %v855
  %v938 = vunpack.c.l.b16 %v859
  %v939 = vunpack.c.l.b16 %v862
  %v940 = vunpack.c.l.b16 %v866
  %v941 = vunpack.c.l.b16 %v869
  %v942 = vunpack.c.l.b16 %v873
  %v943 = vunpack.c.l.b16 %v876
  %v944 = vunpack.c.l.b16 %v880
  %v945 = vunpack.c.l.b16 %v883
  %v946 = vunpack.c.l.b16 %v887
  %v947 = vunpack.c.l.b16 %v890
  %v948 = vunpack.c.l.b16 %v894
  %v949 = vunpack.c.l.b16 %v897
  %v950 = vunpack.c.l.b16 %v901
  %v951 = vunpack.c.l.b16 %v904
  %v952 = vunpack.c.l.b16 %v908
  %v953 = vunpack.c.l.b16 %v911
  %v954 = vunpack.c.l.b16 %v915
  %v955 = vunpack.c.l.b16 %v918
  %v956 = vunpack.c.l.b16 %v922
  %v957 = vunpack.c.l.b16 %v925
  %v958 = vpack.c.b16 %v927, %v926
  %v959 = vpack.c.b16 %v929, %v928
  %v960 = vpack.c.b16 %v931, %v930
  %v961 = vpack.c.b16 %v933, %v932
  %v962 = vpack.c.b16 %v935, %v934
  %v963 = vpack.c.b16 %v937, %v936
  %v964 = vpack.c.b16 %v939, %v938
  %v965 = vpack.c.b16 %v941, %v940
  %v966 = vpack.c.b16 %v943, %v942
  %v967 = vpack.c.b16 %v945, %v944
  %v968 = vpack.c.b16 %v947, %v946
  %v969 = vpack.c.b16 %v949, %v948
  %v970 = vpack.c.b16 %v951, %v950
  %v971 = vpack.c.b16 %v953, %v952
  %v972 = vpack.c.b16 %v955, %v954
  %v973 = vpack.c.b16 %v957, %v956
  %974 = vrot.lane.b32.xlu0 %v958, 16
  %v975 = vpop.permute.xlu0 %974
  %976 = vrot.lane.b32.xlu0 %v959, 16
  %v977 = vpop.permute.xlu0 %976
  %978 = vrot.lane.b32.xlu0 %v960, 16
  %v979 = vpop.permute.xlu0 %978
  %980 = vrot.lane.b32.xlu0 %v961, 16
  %v981 = vpop.permute.xlu0 %980
  %982 = vrot.lane.b32.xlu0 %v962, 16
  %v983 = vpop.permute.xlu0 %982
  %984 = vrot.lane.b32.xlu0 %v963, 16
  %v985 = vpop.permute.xlu0 %984
  %986 = vrot.lane.b32.xlu0 %v964, 16
  %v987 = vpop.permute.xlu0 %986
  %988 = vrot.lane.b32.xlu0 %v965, 16
  %v989 = vpop.permute.xlu0 %988
  %990 = vrot.lane.b32.xlu0 %v966, 16
  %v991 = vpop.permute.xlu0 %990
  %992 = vrot.lane.b32.xlu0 %v967, 16
  %v993 = vpop.permute.xlu0 %992
  %994 = vrot.lane.b32.xlu0 %v968, 16
  %v995 = vpop.permute.xlu0 %994
  %996 = vrot.lane.b32.xlu0 %v969, 16
  %v997 = vpop.permute.xlu0 %996
  %998 = vrot.lane.b32.xlu0 %v970, 16
  %v999 = vpop.permute.xlu0 %998
  %1000 = vrot.lane.b32.xlu0 %v971, 16
  %v1001 = vpop.permute.xlu0 %1000
  %1002 = vrot.lane.b32.xlu0 %v972, 16
  %v1003 = vpop.permute.xlu0 %1002
  %1004 = vrot.lane.b32.xlu0 %v973, 16
  %v1005 = vpop.permute.xlu0 %1004
  %vm1022 = vcmask 195712
  %1023 = vst.msk [vmem:[#allocation2] sm:$0xff] %vm1022, %v975
  %1024 = vst.msk [vmem:[#allocation2 + $0x8] sm:$0xff] %vm1022, %v977
  %1025 = vst.msk [vmem:[#allocation2 + $0x10] sm:$0xff] %vm1022, %v979
  %1026 = vst.msk [vmem:[#allocation2 + $0x18] sm:$0xff] %vm1022, %v981
  %1027 = vst.msk [vmem:[#allocation2 + $0x20] sm:$0xff] %vm1022, %v983
  %1028 = vst.msk [vmem:[#allocation2 + $0x28] sm:$0xff] %vm1022, %v985
  %1029 = vst.msk [vmem:[#allocation2 + $0x30] sm:$0xff] %vm1022, %v987
  %1030 = vst.msk [vmem:[#allocation2 + $0x38] sm:$0xff] %vm1022, %v989
  %1031 = vst.msk [vmem:[#allocation2 + $0x40] sm:$0xff] %vm1022, %v991
  %1032 = vst.msk [vmem:[#allocation2 + $0x48] sm:$0xff] %vm1022, %v993
  %1033 = vst.msk [vmem:[#allocation2 + $0x50] sm:$0xff] %vm1022, %v995
  %1034 = vst.msk [vmem:[#allocation2 + $0x58] sm:$0xff] %vm1022, %v997
  %1035 = vst.msk [vmem:[#allocation2 + $0x60] sm:$0xff] %vm1022, %v999
  %1036 = vst.msk [vmem:[#allocation2 + $0x68] sm:$0xff] %vm1022, %v1001
  %1037 = vst.msk [vmem:[#allocation2 + $0x70] sm:$0xff] %vm1022, %v1003
  %1038 = vst.msk [vmem:[#allocation2 + $0x78] sm:$0xff] %vm1022, %v1005
  %s1039 = scalar_lea.vmem %s0, 12
  %v1040 = vld [vmem:[%s1039] sm:$0xf]
  %v1041 = vld [vmem:[%s1039 + $0x4] sm:$0xf]
  %v1042 = vld [vmem:[%s1039 + $0xc] sm:$0xf]
  %v1043 = vld [vmem:[%s1039 + $0x10] sm:$0xf]
  %v1044 = vld [vmem:[%s1039 + $0x18] sm:$0xf]
  %v1045 = vld [vmem:[%s1039 + $0x1c] sm:$0xf]
  %v1046 = vld [vmem:[%s1039 + $0x24] sm:$0xf]
  %v1047 = vld [vmem:[%s1039 + $0x28] sm:$0xf]
  %v1048 = vld [vmem:[%s1039 + $0x30] sm:$0xf]
  %v1049 = vld [vmem:[%s1039 + $0x34] sm:$0xf]
  %v1050 = vld [vmem:[%s1039 + $0x3c] sm:$0xf]
  %v1051 = vld [vmem:[%s1039 + $0x40] sm:$0xf]
  %v1052 = vld [vmem:[%s1039 + $0x48] sm:$0xf]
  %v1053 = vld [vmem:[%s1039 + $0x4c] sm:$0xf]
  %v1054 = vld [vmem:[%s1039 + $0x54] sm:$0xf]
  %v1055 = vld [vmem:[%s1039 + $0x58] sm:$0xf]
  %v1056 = vld [vmem:[%s1039 + $0x60] sm:$0xf]
  %v1057 = vld [vmem:[%s1039 + $0x64] sm:$0xf]
  %v1058 = vld [vmem:[%s1039 + $0x6c] sm:$0xf]
  %v1059 = vld [vmem:[%s1039 + $0x70] sm:$0xf]
  %v1060 = vld [vmem:[%s1039 + $0x78] sm:$0xf]
  %v1061 = vld [vmem:[%s1039 + $0x7c] sm:$0xf]
  %v1062 = vld [vmem:[%s1039 + $0x84] sm:$0xf]
  %v1063 = vld [vmem:[%s1039 + $0x88] sm:$0xf]
  %v1064 = vld [vmem:[%s1039 + $0x90] sm:$0xf]
  %v1065 = vld [vmem:[%s1039 + $0x94] sm:$0xf]
  %v1066 = vld [vmem:[%s1039 + $0x9c] sm:$0xf]
  %v1067 = vld [vmem:[%s1039 + $0xa0] sm:$0xf]
  %v1068 = vld [vmem:[%s1039 + $0xa8] sm:$0xf]
  %v1069 = vld [vmem:[%s1039 + $0xac] sm:$0xf]
  %v1070 = vld [vmem:[%s1039 + $0xb4] sm:$0xf]
  %v1071 = vld [vmem:[%s1039 + $0xb8] sm:$0xf]
  %v1104 = vunpack.c.l.b16 %v1040
  %v1105 = vunpack.c.l.b16 %v1041
  %v1106 = vunpack.c.l.b16 %v1042
  %v1107 = vunpack.c.l.b16 %v1043
  %v1108 = vunpack.c.l.b16 %v1044
  %v1109 = vunpack.c.l.b16 %v1045
  %v1110 = vunpack.c.l.b16 %v1046
  %v1111 = vunpack.c.l.b16 %v1047
  %v1112 = vunpack.c.l.b16 %v1048
  %v1113 = vunpack.c.l.b16 %v1049
  %v1114 = vunpack.c.l.b16 %v1050
  %v1115 = vunpack.c.l.b16 %v1051
  %v1116 = vunpack.c.l.b16 %v1052
  %v1117 = vunpack.c.l.b16 %v1053
  %v1118 = vunpack.c.l.b16 %v1054
  %v1119 = vunpack.c.l.b16 %v1055
  %v1120 = vunpack.c.l.b16 %v1056
  %v1121 = vunpack.c.l.b16 %v1057
  %v1122 = vunpack.c.l.b16 %v1058
  %v1123 = vunpack.c.l.b16 %v1059
  %v1124 = vunpack.c.l.b16 %v1060
  %v1125 = vunpack.c.l.b16 %v1061
  %v1126 = vunpack.c.l.b16 %v1062
  %v1127 = vunpack.c.l.b16 %v1063
  %v1128 = vunpack.c.l.b16 %v1064
  %v1129 = vunpack.c.l.b16 %v1065
  %v1130 = vunpack.c.l.b16 %v1066
  %v1131 = vunpack.c.l.b16 %v1067
  %v1132 = vunpack.c.l.b16 %v1068
  %v1133 = vunpack.c.l.b16 %v1069
  %v1134 = vunpack.c.l.b16 %v1070
  %v1135 = vunpack.c.l.b16 %v1071
  %v1136 = vpack.c.b16 %v1105, %v1104
  %v1137 = vpack.c.b16 %v1107, %v1106
  %v1138 = vpack.c.b16 %v1109, %v1108
  %v1139 = vpack.c.b16 %v1111, %v1110
  %v1140 = vpack.c.b16 %v1113, %v1112
  %v1141 = vpack.c.b16 %v1115, %v1114
  %v1142 = vpack.c.b16 %v1117, %v1116
  %v1143 = vpack.c.b16 %v1119, %v1118
  %v1144 = vpack.c.b16 %v1121, %v1120
  %v1145 = vpack.c.b16 %v1123, %v1122
  %v1146 = vpack.c.b16 %v1125, %v1124
  %v1147 = vpack.c.b16 %v1127, %v1126
  %v1148 = vpack.c.b16 %v1129, %v1128
  %v1149 = vpack.c.b16 %v1131, %v1130
  %v1150 = vpack.c.b16 %v1133, %v1132
  %v1151 = vpack.c.b16 %v1135, %v1134
  %1152 = vrot.lane.b32.xlu0 %v1136, 24
  %v1153 = vpop.permute.xlu0 %1152
  %1154 = vrot.lane.b32.xlu0 %v1137, 24
  %v1155 = vpop.permute.xlu0 %1154
  %1156 = vrot.lane.b32.xlu0 %v1138, 24
  %v1157 = vpop.permute.xlu0 %1156
  %1158 = vrot.lane.b32.xlu0 %v1139, 24
  %v1159 = vpop.permute.xlu0 %1158
  %1160 = vrot.lane.b32.xlu0 %v1140, 24
  %v1161 = vpop.permute.xlu0 %1160
  %1162 = vrot.lane.b32.xlu0 %v1141, 24
  %v1163 = vpop.permute.xlu0 %1162
  %1164 = vrot.lane.b32.xlu0 %v1142, 24
  %v1165 = vpop.permute.xlu0 %1164
  %1166 = vrot.lane.b32.xlu0 %v1143, 24
  %v1167 = vpop.permute.xlu0 %1166
  %1168 = vrot.lane.b32.xlu0 %v1144, 24
  %v1169 = vpop.permute.xlu0 %1168
  %1170 = vrot.lane.b32.xlu0 %v1145, 24
  %v1171 = vpop.permute.xlu0 %1170
  %1172 = vrot.lane.b32.xlu0 %v1146, 24
  %v1173 = vpop.permute.xlu0 %1172
  %1174 = vrot.lane.b32.xlu0 %v1147, 24
  %v1175 = vpop.permute.xlu0 %1174
  %1176 = vrot.lane.b32.xlu0 %v1148, 24
  %v1177 = vpop.permute.xlu0 %1176
  %1178 = vrot.lane.b32.xlu0 %v1149, 24
  %v1179 = vpop.permute.xlu0 %1178
  %1180 = vrot.lane.b32.xlu0 %v1150, 24
  %v1181 = vpop.permute.xlu0 %1180
  %1182 = vrot.lane.b32.xlu0 %v1151, 24
  %v1183 = vpop.permute.xlu0 %1182
  %vm1200 = vcmask 261312
  %1201 = vst.msk [vmem:[#allocation2] sm:$0xff] %vm1200, %v1153
  %1202 = vst.msk [vmem:[#allocation2 + $0x8] sm:$0xff] %vm1200, %v1155
  %1203 = vst.msk [vmem:[#allocation2 + $0x10] sm:$0xff] %vm1200, %v1157
  %1204 = vst.msk [vmem:[#allocation2 + $0x18] sm:$0xff] %vm1200, %v1159
  %1205 = vst.msk [vmem:[#allocation2 + $0x20] sm:$0xff] %vm1200, %v1161
  %1206 = vst.msk [vmem:[#allocation2 + $0x28] sm:$0xff] %vm1200, %v1163
  %1207 = vst.msk [vmem:[#allocation2 + $0x30] sm:$0xff] %vm1200, %v1165
  %1208 = vst.msk [vmem:[#allocation2 + $0x38] sm:$0xff] %vm1200, %v1167
  %1209 = vst.msk [vmem:[#allocation2 + $0x40] sm:$0xff] %vm1200, %v1169
  %1210 = vst.msk [vmem:[#allocation2 + $0x48] sm:$0xff] %vm1200, %v1171
  %1211 = vst.msk [vmem:[#allocation2 + $0x50] sm:$0xff] %vm1200, %v1173
  %1212 = vst.msk [vmem:[#allocation2 + $0x58] sm:$0xff] %vm1200, %v1175
  %1213 = vst.msk [vmem:[#allocation2 + $0x60] sm:$0xff] %vm1200, %v1177
  %1214 = vst.msk [vmem:[#allocation2 + $0x68] sm:$0xff] %vm1200, %v1179
  %1215 = vst.msk [vmem:[#allocation2 + $0x70] sm:$0xff] %vm1200, %v1181
  %1216 = vst.msk [vmem:[#allocation2 + $0x78] sm:$0xff] %vm1200, %v1183
  %v1217 = vld [vmem:[%s1039] sm:$0xf]
  %v1218 = vld [vmem:[%s1039 + $0x4] sm:$0xf]
  %v1219 = vld [vmem:[%s1039 + $0x8] sm:$0x1]
  %v1220 = vld [vmem:[%s1039 + $0xc] sm:$0xf]
  %v1221 = vld [vmem:[%s1039 + $0x10] sm:$0xf]
  %v1222 = vld [vmem:[%s1039 + $0x14] sm:$0x1]
  %v1223 = vld [vmem:[%s1039 + $0x18] sm:$0xf]
  %v1224 = vld [vmem:[%s1039 + $0x1c] sm:$0xf]
  %v1225 = vld [vmem:[%s1039 + $0x20] sm:$0x1]
  %v1226 = vld [vmem:[%s1039 + $0x24] sm:$0xf]
  %v1227 = vld [vmem:[%s1039 + $0x28] sm:$0xf]
  %v1228 = vld [vmem:[%s1039 + $0x2c] sm:$0x1]
  %v1229 = vld [vmem:[%s1039 + $0x30] sm:$0xf]
  %v1230 = vld [vmem:[%s1039 + $0x34] sm:$0xf]
  %v1231 = vld [vmem:[%s1039 + $0x38] sm:$0x1]
  %v1232 = vld [vmem:[%s1039 + $0x3c] sm:$0xf]
  %v1233 = vld [vmem:[%s1039 + $0x40] sm:$0xf]
  %v1234 = vld [vmem:[%s1039 + $0x44] sm:$0x1]
  %v1235 = vld [vmem:[%s1039 + $0x48] sm:$0xf]
  %v1236 = vld [vmem:[%s1039 + $0x4c] sm:$0xf]
  %v1237 = vld [vmem:[%s1039 + $0x50] sm:$0x1]
  %v1238 = vld [vmem:[%s1039 + $0x54] sm:$0xf]
  %v1239 = vld [vmem:[%s1039 + $0x58] sm:$0xf]
  %v1240 = vld [vmem:[%s1039 + $0x5c] sm:$0x1]
  %v1241 = vld [vmem:[%s1039 + $0x60] sm:$0xf]
  %v1242 = vld [vmem:[%s1039 + $0x64] sm:$0xf]
  %v1243 = vld [vmem:[%s1039 + $0x68] sm:$0x1]
  %v1244 = vld [vmem:[%s1039 + $0x6c] sm:$0xf]
  %v1245 = vld [vmem:[%s1039 + $0x70] sm:$0xf]
  %v1246 = vld [vmem:[%s1039 + $0x74] sm:$0x1]
  %v1247 = vld [vmem:[%s1039 + $0x78] sm:$0xf]
  %v1248 = vld [vmem:[%s1039 + $0x7c] sm:$0xf]
  %v1249 = vld [vmem:[%s1039 + $0x80] sm:$0x1]
  %v1250 = vld [vmem:[%s1039 + $0x84] sm:$0xf]
  %v1251 = vld [vmem:[%s1039 + $0x88] sm:$0xf]
  %v1252 = vld [vmem:[%s1039 + $0x8c] sm:$0x1]
  %v1253 = vld [vmem:[%s1039 + $0x90] sm:$0xf]
  %v1254 = vld [vmem:[%s1039 + $0x94] sm:$0xf]
  %v1255 = vld [vmem:[%s1039 + $0x98] sm:$0x1]
  %v1256 = vld [vmem:[%s1039 + $0x9c] sm:$0xf]
  %v1257 = vld [vmem:[%s1039 + $0xa0] sm:$0xf]
  %v1258 = vld [vmem:[%s1039 + $0xa4] sm:$0x1]
  %v1259 = vld [vmem:[%s1039 + $0xa8] sm:$0xf]
  %v1260 = vld [vmem:[%s1039 + $0xac] sm:$0xf]
  %v1261 = vld [vmem:[%s1039 + $0xb0] sm:$0x1]
  %v1262 = vld [vmem:[%s1039 + $0xb4] sm:$0xf]
  %v1263 = vld [vmem:[%s1039 + $0xb8] sm:$0xf]
  %v1264 = vld [vmem:[%s1039 + $0xbc] sm:$0x1]
  %v1266 = vshrl.u32 %v1217, 16
  %v1268 = vrot.slane %v1266, 4
  %v1269 = vshll.u32 %v1217, 16
  %v1271 = vrot.slane %v1269, 5
  %v1272 = vor.u32 %v1268, %v1271
  %v1273 = vrot.slane %v1272, 4
  %v1275 = vshll.u32 %v1218, 16
  %v1277 = vrot.slane %v1275, 5
  %v1278 = vsel %vm217, %v1273, %v1277
  %v1279 = vshrl.u32 %v1218, 16
  %v1281 = vrot.slane %v1279, 4
  %v1282 = vor.u32 %v1281, %v1277
  %v1283 = vrot.slane %v1282, 4
  %v1285 = vshll.u32 %v1219, 16
  %v1287 = vrot.slane %v1285, 5
  %v1288 = vsel %vm217, %v1283, %v1287
  %v1290 = vshrl.u32 %v1220, 16
  %v1292 = vrot.slane %v1290, 4
  %v1293 = vshll.u32 %v1220, 16
  %v1295 = vrot.slane %v1293, 5
  %v1296 = vor.u32 %v1292, %v1295
  %v1297 = vrot.slane %v1296, 4
  %v1299 = vshll.u32 %v1221, 16
  %v1301 = vrot.slane %v1299, 5
  %v1302 = vsel %vm217, %v1297, %v1301
  %v1303 = vshrl.u32 %v1221, 16
  %v1305 = vrot.slane %v1303, 4
  %v1306 = vor.u32 %v1305, %v1301
  %v1307 = vrot.slane %v1306, 4
  %v1309 = vshll.u32 %v1222, 16
  %v1311 = vrot.slane %v1309, 5
  %v1312 = vsel %vm217, %v1307, %v1311
  %v1314 = vshrl.u32 %v1223, 16
  %v1316 = vrot.slane %v1314, 4
  %v1317 = vshll.u32 %v1223, 16
  %v1319 = vrot.slane %v1317, 5
  %v1320 = vor.u32 %v1316, %v1319
  %v1321 = vrot.slane %v1320, 4
  %v1323 = vshll.u32 %v1224, 16
  %v1325 = vrot.slane %v1323, 5
  %v1326 = vsel %vm217, %v1321, %v1325
  %v1327 = vshrl.u32 %v1224, 16
  %v1329 = vrot.slane %v1327, 4
  %v1330 = vor.u32 %v1329, %v1325
  %v1331 = vrot.slane %v1330, 4
  %v1333 = vshll.u32 %v1225, 16
  %v1335 = vrot.slane %v1333, 5
  %v1336 = vsel %vm217, %v1331, %v1335
  %v1338 = vshrl.u32 %v1226, 16
  %v1340 = vrot.slane %v1338, 4
  %v1341 = vshll.u32 %v1226, 16
  %v1343 = vrot.slane %v1341, 5
  %v1344 = vor.u32 %v1340, %v1343
  %v1345 = vrot.slane %v1344, 4
  %v1347 = vshll.u32 %v1227, 16
  %v1349 = vrot.slane %v1347, 5
  %v1350 = vsel %vm217, %v1345, %v1349
  %v1351 = vshrl.u32 %v1227, 16
  %v1353 = vrot.slane %v1351, 4
  %v1354 = vor.u32 %v1353, %v1349
  %v1355 = vrot.slane %v1354, 4
  %v1357 = vshll.u32 %v1228, 16
  %v1359 = vrot.slane %v1357, 5
  %v1360 = vsel %vm217, %v1355, %v1359
  %v1362 = vshrl.u32 %v1229, 16
  %v1364 = vrot.slane %v1362, 4
  %v1365 = vshll.u32 %v1229, 16
  %v1367 = vrot.slane %v1365, 5
  %v1368 = vor.u32 %v1364, %v1367
  %v1369 = vrot.slane %v1368, 4
  %v1371 = vshll.u32 %v1230, 16
  %v1373 = vrot.slane %v1371, 5
  %v1374 = vsel %vm217, %v1369, %v1373
  %v1375 = vshrl.u32 %v1230, 16
  %v1377 = vrot.slane %v1375, 4
  %v1378 = vor.u32 %v1377, %v1373
  %v1379 = vrot.slane %v1378, 4
  %v1381 = vshll.u32 %v1231, 16
  %v1383 = vrot.slane %v1381, 5
  %v1384 = vsel %vm217, %v1379, %v1383
  %v1386 = vshrl.u32 %v1232, 16
  %v1388 = vrot.slane %v1386, 4
  %v1389 = vshll.u32 %v1232, 16
  %v1391 = vrot.slane %v1389, 5
  %v1392 = vor.u32 %v1388, %v1391
  %v1393 = vrot.slane %v1392, 4
  %v1395 = vshll.u32 %v1233, 16
  %v1397 = vrot.slane %v1395, 5
  %v1398 = vsel %vm217, %v1393, %v1397
  %v1399 = vshrl.u32 %v1233, 16
  %v1401 = vrot.slane %v1399, 4
  %v1402 = vor.u32 %v1401, %v1397
  %v1403 = vrot.slane %v1402, 4
  %v1405 = vshll.u32 %v1234, 16
  %v1407 = vrot.slane %v1405, 5
  %v1408 = vsel %vm217, %v1403, %v1407
  %v1410 = vshrl.u32 %v1235, 16
  %v1412 = vrot.slane %v1410, 4
  %v1413 = vshll.u32 %v1235, 16
  %v1415 = vrot.slane %v1413, 5
  %v1416 = vor.u32 %v1412, %v1415
  %v1417 = vrot.slane %v1416, 4
  %v1419 = vshll.u32 %v1236, 16
  %v1421 = vrot.slane %v1419, 5
  %v1422 = vsel %vm217, %v1417, %v1421
  %v1423 = vshrl.u32 %v1236, 16
  %v1425 = vrot.slane %v1423, 4
  %v1426 = vor.u32 %v1425, %v1421
  %v1427 = vrot.slane %v1426, 4
  %v1429 = vshll.u32 %v1237, 16
  %v1431 = vrot.slane %v1429, 5
  %v1432 = vsel %vm217, %v1427, %v1431
  %v1434 = vshrl.u32 %v1238, 16
  %v1436 = vrot.slane %v1434, 4
  %v1437 = vshll.u32 %v1238, 16
  %v1439 = vrot.slane %v1437, 5
  %v1440 = vor.u32 %v1436, %v1439
  %v1441 = vrot.slane %v1440, 4
  %v1443 = vshll.u32 %v1239, 16
  %v1445 = vrot.slane %v1443, 5
  %v1446 = vsel %vm217, %v1441, %v1445
  %v1447 = vshrl.u32 %v1239, 16
  %v1449 = vrot.slane %v1447, 4
  %v1450 = vor.u32 %v1449, %v1445
  %v1451 = vrot.slane %v1450, 4
  %v1453 = vshll.u32 %v1240, 16
  %v1455 = vrot.slane %v1453, 5
  %v1456 = vsel %vm217, %v1451, %v1455
  %v1458 = vshrl.u32 %v1241, 16
  %v1460 = vrot.slane %v1458, 4
  %v1461 = vshll.u32 %v1241, 16
  %v1463 = vrot.slane %v1461, 5
  %v1464 = vor.u32 %v1460, %v1463
  %v1465 = vrot.slane %v1464, 4
  %v1467 = vshll.u32 %v1242, 16
  %v1469 = vrot.slane %v1467, 5
  %v1470 = vsel %vm217, %v1465, %v1469
  %v1471 = vshrl.u32 %v1242, 16
  %v1473 = vrot.slane %v1471, 4
  %v1474 = vor.u32 %v1473, %v1469
  %v1475 = vrot.slane %v1474, 4
  %v1477 = vshll.u32 %v1243, 16
  %v1479 = vrot.slane %v1477, 5
  %v1480 = vsel %vm217, %v1475, %v1479
  %v1482 = vshrl.u32 %v1244, 16
  %v1484 = vrot.slane %v1482, 4
  %v1485 = vshll.u32 %v1244, 16
  %v1487 = vrot.slane %v1485, 5
  %v1488 = vor.u32 %v1484, %v1487
  %v1489 = vrot.slane %v1488, 4
  %v1491 = vshll.u32 %v1245, 16
  %v1493 = vrot.slane %v1491, 5
  %v1494 = vsel %vm217, %v1489, %v1493
  %v1495 = vshrl.u32 %v1245, 16
  %v1497 = vrot.slane %v1495, 4
  %v1498 = vor.u32 %v1497, %v1493
  %v1499 = vrot.slane %v1498, 4
  %v1501 = vshll.u32 %v1246, 16
  %v1503 = vrot.slane %v1501, 5
  %v1504 = vsel %vm217, %v1499, %v1503
  %v1506 = vshrl.u32 %v1247, 16
  %v1508 = vrot.slane %v1506, 4
  %v1509 = vshll.u32 %v1247, 16
  %v1511 = vrot.slane %v1509, 5
  %v1512 = vor.u32 %v1508, %v1511
  %v1513 = vrot.slane %v1512, 4
  %v1515 = vshll.u32 %v1248, 16
  %v1517 = vrot.slane %v1515, 5
  %v1518 = vsel %vm217, %v1513, %v1517
  %v1519 = vshrl.u32 %v1248, 16
  %v1521 = vrot.slane %v1519, 4
  %v1522 = vor.u32 %v1521, %v1517
  %v1523 = vrot.slane %v1522, 4
  %v1525 = vshll.u32 %v1249, 16
  %v1527 = vrot.slane %v1525, 5
  %v1528 = vsel %vm217, %v1523, %v1527
  %v1530 = vshrl.u32 %v1250, 16
  %v1532 = vrot.slane %v1530, 4
  %v1533 = vshll.u32 %v1250, 16
  %v1535 = vrot.slane %v1533, 5
  %v1536 = vor.u32 %v1532, %v1535
  %v1537 = vrot.slane %v1536, 4
  %v1539 = vshll.u32 %v1251, 16
  %v1541 = vrot.slane %v1539, 5
  %v1542 = vsel %vm217, %v1537, %v1541
  %v1543 = vshrl.u32 %v1251, 16
  %v1545 = vrot.slane %v1543, 4
  %v1546 = vor.u32 %v1545, %v1541
  %v1547 = vrot.slane %v1546, 4
  %v1549 = vshll.u32 %v1252, 16
  %v1551 = vrot.slane %v1549, 5
  %v1552 = vsel %vm217, %v1547, %v1551
  %v1554 = vshrl.u32 %v1253, 16
  %v1556 = vrot.slane %v1554, 4
  %v1557 = vshll.u32 %v1253, 16
  %v1559 = vrot.slane %v1557, 5
  %v1560 = vor.u32 %v1556, %v1559
  %v1561 = vrot.slane %v1560, 4
  %v1563 = vshll.u32 %v1254, 16
  %v1565 = vrot.slane %v1563, 5
  %v1566 = vsel %vm217, %v1561, %v1565
  %v1567 = vshrl.u32 %v1254, 16
  %v1569 = vrot.slane %v1567, 4
  %v1570 = vor.u32 %v1569, %v1565
  %v1571 = vrot.slane %v1570, 4
  %v1573 = vshll.u32 %v1255, 16
  %v1575 = vrot.slane %v1573, 5
  %v1576 = vsel %vm217, %v1571, %v1575
  %v1578 = vshrl.u32 %v1256, 16
  %v1580 = vrot.slane %v1578, 4
  %v1581 = vshll.u32 %v1256, 16
  %v1583 = vrot.slane %v1581, 5
  %v1584 = vor.u32 %v1580, %v1583
  %v1585 = vrot.slane %v1584, 4
  %v1587 = vshll.u32 %v1257, 16
  %v1589 = vrot.slane %v1587, 5
  %v1590 = vsel %vm217, %v1585, %v1589
  %v1591 = vshrl.u32 %v1257, 16
  %v1593 = vrot.slane %v1591, 4
  %v1594 = vor.u32 %v1593, %v1589
  %v1595 = vrot.slane %v1594, 4
  %v1597 = vshll.u32 %v1258, 16
  %v1599 = vrot.slane %v1597, 5
  %v1600 = vsel %vm217, %v1595, %v1599
  %v1602 = vshrl.u32 %v1259, 16
  %v1604 = vrot.slane %v1602, 4
  %v1605 = vshll.u32 %v1259, 16
  %v1607 = vrot.slane %v1605, 5
  %v1608 = vor.u32 %v1604, %v1607
  %v1609 = vrot.slane %v1608, 4
  %v1611 = vshll.u32 %v1260, 16
  %v1613 = vrot.slane %v1611, 5
  %v1614 = vsel %vm217, %v1609, %v1613
  %v1615 = vshrl.u32 %v1260, 16
  %v1617 = vrot.slane %v1615, 4
  %v1618 = vor.u32 %v1617, %v1613
  %v1619 = vrot.slane %v1618, 4
  %v1621 = vshll.u32 %v1261, 16
  %v1623 = vrot.slane %v1621, 5
  %v1624 = vsel %vm217, %v1619, %v1623
  %v1626 = vshrl.u32 %v1262, 16
  %v1628 = vrot.slane %v1626, 4
  %v1629 = vshll.u32 %v1262, 16
  %v1631 = vrot.slane %v1629, 5
  %v1632 = vor.u32 %v1628, %v1631
  %v1633 = vrot.slane %v1632, 4
  %v1635 = vshll.u32 %v1263, 16
  %v1637 = vrot.slane %v1635, 5
  %v1638 = vsel %vm217, %v1633, %v1637
  %v1639 = vshrl.u32 %v1263, 16
  %v1641 = vrot.slane %v1639, 4
  %v1642 = vor.u32 %v1641, %v1637
  %v1643 = vrot.slane %v1642, 4
  %v1645 = vshll.u32 %v1264, 16
  %v1647 = vrot.slane %v1645, 5
  %v1648 = vsel %vm217, %v1643, %v1647
  %v1649 = vunpack.c.l.b16 %v1278
  %v1650 = vunpack.c.l.b16 %v1288
  %v1651 = vunpack.c.l.b16 %v1302
  %v1652 = vunpack.c.l.b16 %v1312
  %v1653 = vunpack.c.l.b16 %v1326
  %v1654 = vunpack.c.l.b16 %v1336
  %v1655 = vunpack.c.l.b16 %v1350
  %v1656 = vunpack.c.l.b16 %v1360
  %v1657 = vunpack.c.l.b16 %v1374
  %v1658 = vunpack.c.l.b16 %v1384
  %v1659 = vunpack.c.l.b16 %v1398
  %v1660 = vunpack.c.l.b16 %v1408
  %v1661 = vunpack.c.l.b16 %v1422
  %v1662 = vunpack.c.l.b16 %v1432
  %v1663 = vunpack.c.l.b16 %v1446
  %v1664 = vunpack.c.l.b16 %v1456
  %v1665 = vunpack.c.l.b16 %v1470
  %v1666 = vunpack.c.l.b16 %v1480
  %v1667 = vunpack.c.l.b16 %v1494
  %v1668 = vunpack.c.l.b16 %v1504
  %v1669 = vunpack.c.l.b16 %v1518
  %v1670 = vunpack.c.l.b16 %v1528
  %v1671 = vunpack.c.l.b16 %v1542
  %v1672 = vunpack.c.l.b16 %v1552
  %v1673 = vunpack.c.l.b16 %v1566
  %v1674 = vunpack.c.l.b16 %v1576
  %v1675 = vunpack.c.l.b16 %v1590
  %v1676 = vunpack.c.l.b16 %v1600
  %v1677 = vunpack.c.l.b16 %v1614
  %v1678 = vunpack.c.l.b16 %v1624
  %v1679 = vunpack.c.l.b16 %v1638
  %v1680 = vunpack.c.l.b16 %v1648
  %v1681 = vpack.c.b16 %v1650, %v1649
  %v1682 = vpack.c.b16 %v1652, %v1651
  %v1683 = vpack.c.b16 %v1654, %v1653
  %v1684 = vpack.c.b16 %v1656, %v1655
  %v1685 = vpack.c.b16 %v1658, %v1657
  %v1686 = vpack.c.b16 %v1660, %v1659
  %v1687 = vpack.c.b16 %v1662, %v1661
  %v1688 = vpack.c.b16 %v1664, %v1663
  %v1689 = vpack.c.b16 %v1666, %v1665
  %v1690 = vpack.c.b16 %v1668, %v1667
  %v1691 = vpack.c.b16 %v1670, %v1669
  %v1692 = vpack.c.b16 %v1672, %v1671
  %v1693 = vpack.c.b16 %v1674, %v1673
  %v1694 = vpack.c.b16 %v1676, %v1675
  %v1695 = vpack.c.b16 %v1678, %v1677
  %v1696 = vpack.c.b16 %v1680, %v1679
  %1697 = vrot.lane.b32.xlu0 %v1681, 32
  %v1698 = vpop.permute.xlu0 %1697
  %1699 = vrot.lane.b32.xlu0 %v1682, 32
  %v1700 = vpop.permute.xlu0 %1699
  %1701 = vrot.lane.b32.xlu0 %v1683, 32
  %v1702 = vpop.permute.xlu0 %1701
  %1703 = vrot.lane.b32.xlu0 %v1684, 32
  %v1704 = vpop.permute.xlu0 %1703
  %1705 = vrot.lane.b32.xlu0 %v1685, 32
  %v1706 = vpop.permute.xlu0 %1705
  %1707 = vrot.lane.b32.xlu0 %v1686, 32
  %v1708 = vpop.permute.xlu0 %1707
  %1709 = vrot.lane.b32.xlu0 %v1687, 32
  %v1710 = vpop.permute.xlu0 %1709
  %1711 = vrot.lane.b32.xlu0 %v1688, 32
  %v1712 = vpop.permute.xlu0 %1711
  %1713 = vrot.lane.b32.xlu0 %v1689, 32
  %v1714 = vpop.permute.xlu0 %1713
  %1715 = vrot.lane.b32.xlu0 %v1690, 32
  %v1716 = vpop.permute.xlu0 %1715
  %1717 = vrot.lane.b32.xlu0 %v1691, 32
  %v1718 = vpop.permute.xlu0 %1717
  %1719 = vrot.lane.b32.xlu0 %v1692, 32
  %v1720 = vpop.permute.xlu0 %1719
  %1721 = vrot.lane.b32.xlu0 %v1693, 32
  %v1722 = vpop.permute.xlu0 %1721
  %1723 = vrot.lane.b32.xlu0 %v1694, 32
  %v1724 = vpop.permute.xlu0 %1723
  %1725 = vrot.lane.b32.xlu0 %v1695, 32
  %v1726 = vpop.permute.xlu0 %1725
  %1727 = vrot.lane.b32.xlu0 %v1696, 32
  %v1728 = vpop.permute.xlu0 %1727
  %vm1745 = vcmask 326912
  %1746 = vst.msk [vmem:[#allocation2] sm:$0xff] %vm1745, %v1698
  %1747 = vst.msk [vmem:[#allocation2 + $0x8] sm:$0xff] %vm1745, %v1700
  %1748 = vst.msk [vmem:[#allocation2 + $0x10] sm:$0xff] %vm1745, %v1702
  %1749 = vst.msk [vmem:[#allocation2 + $0x18] sm:$0xff] %vm1745, %v1704
  %1750 = vst.msk [vmem:[#allocation2 + $0x20] sm:$0xff] %vm1745, %v1706
  %1751 = vst.msk [vmem:[#allocation2 + $0x28] sm:$0xff] %vm1745, %v1708
  %1752 = vst.msk [vmem:[#allocation2 + $0x30] sm:$0xff] %vm1745, %v1710
  %1753 = vst.msk [vmem:[#allocation2 + $0x38] sm:$0xff] %vm1745, %v1712
  %1754 = vst.msk [vmem:[#allocation2 + $0x40] sm:$0xff] %vm1745, %v1714
  %1755 = vst.msk [vmem:[#allocation2 + $0x48] sm:$0xff] %vm1745, %v1716
  %1756 = vst.msk [vmem:[#allocation2 + $0x50] sm:$0xff] %vm1745, %v1718
  %1757 = vst.msk [vmem:[#allocation2 + $0x58] sm:$0xff] %vm1745, %v1720
  %1758 = vst.msk [vmem:[#allocation2 + $0x60] sm:$0xff] %vm1745, %v1722
  %1759 = vst.msk [vmem:[#allocation2 + $0x68] sm:$0xff] %vm1745, %v1724
  %1760 = vst.msk [vmem:[#allocation2 + $0x70] sm:$0xff] %vm1745, %v1726
  %1761 = vst.msk [vmem:[#allocation2 + $0x78] sm:$0xff] %vm1745, %v1728
  %v1762 = vld [vmem:[%s1039] sm:$0xe]
  %v1763 = vld [vmem:[%s1039 + $0x4] sm:$0xf]
  %v1764 = vld [vmem:[%s1039 + $0x8] sm:$0x1]
  %v1765 = vld [vmem:[%s1039 + $0xc] sm:$0xe]
  %v1766 = vld [vmem:[%s1039 + $0x10] sm:$0xf]
  %v1767 = vld [vmem:[%s1039 + $0x14] sm:$0x1]
  %v1768 = vld [vmem:[%s1039 + $0x18] sm:$0xe]
  %v1769 = vld [vmem:[%s1039 + $0x1c] sm:$0xf]
  %v1770 = vld [vmem:[%s1039 + $0x20] sm:$0x1]
  %v1771 = vld [vmem:[%s1039 + $0x24] sm:$0xe]
  %v1772 = vld [vmem:[%s1039 + $0x28] sm:$0xf]
  %v1773 = vld [vmem:[%s1039 + $0x2c] sm:$0x1]
  %v1774 = vld [vmem:[%s1039 + $0x30] sm:$0xe]
  %v1775 = vld [vmem:[%s1039 + $0x34] sm:$0xf]
  %v1776 = vld [vmem:[%s1039 + $0x38] sm:$0x1]
  %v1777 = vld [vmem:[%s1039 + $0x3c] sm:$0xe]
  %v1778 = vld [vmem:[%s1039 + $0x40] sm:$0xf]
  %v1779 = vld [vmem:[%s1039 + $0x44] sm:$0x1]
  %v1780 = vld [vmem:[%s1039 + $0x48] sm:$0xe]
  %v1781 = vld [vmem:[%s1039 + $0x4c] sm:$0xf]
  %v1782 = vld [vmem:[%s1039 + $0x50] sm:$0x1]
  %v1783 = vld [vmem:[%s1039 + $0x54] sm:$0xe]
  %v1784 = vld [vmem:[%s1039 + $0x58] sm:$0xf]
  %v1785 = vld [vmem:[%s1039 + $0x5c] sm:$0x1]
  %v1786 = vld [vmem:[%s1039 + $0x60] sm:$0xe]
  %v1787 = vld [vmem:[%s1039 + $0x64] sm:$0xf]
  %v1788 = vld [vmem:[%s1039 + $0x68] sm:$0x1]
  %v1789 = vld [vmem:[%s1039 + $0x6c] sm:$0xe]
  %v1790 = vld [vmem:[%s1039 + $0x70] sm:$0xf]
  %v1791 = vld [vmem:[%s1039 + $0x74] sm:$0x1]
  %v1792 = vld [vmem:[%s1039 + $0x78] sm:$0xe]
  %v1793 = vld [vmem:[%s1039 + $0x7c] sm:$0xf]
  %v1794 = vld [vmem:[%s1039 + $0x80] sm:$0x1]
  %v1795 = vld [vmem:[%s1039 + $0x84] sm:$0xe]
  %v1796 = vld [vmem:[%s1039 + $0x88] sm:$0xf]
  %v1797 = vld [vmem:[%s1039 + $0x8c] sm:$0x1]
  %v1798 = vld [vmem:[%s1039 + $0x90] sm:$0xe]
  %v1799 = vld [vmem:[%s1039 + $0x94] sm:$0xf]
  %v1800 = vld [vmem:[%s1039 + $0x98] sm:$0x1]
  %v1801 = vld [vmem:[%s1039 + $0x9c] sm:$0xe]
  %v1802 = vld [vmem:[%s1039 + $0xa0] sm:$0xf]
  %v1803 = vld [vmem:[%s1039 + $0xa4] sm:$0x1]
  %v1804 = vld [vmem:[%s1039 + $0xa8] sm:$0xe]
  %v1805 = vld [vmem:[%s1039 + $0xac] sm:$0xf]
  %v1806 = vld [vmem:[%s1039 + $0xb0] sm:$0x1]
  %v1807 = vld [vmem:[%s1039 + $0xb4] sm:$0xe]
  %v1808 = vld [vmem:[%s1039 + $0xb8] sm:$0xf]
  %v1809 = vld [vmem:[%s1039 + $0xbc] sm:$0x1]
  %v1858 = vrot.slane %v1762, 5
  %v1859 = vrot.slane %v1858, 4
  %v1860 = vrot.slane %v1763, 5
  %v1861 = vsel %vm813, %v1859, %v1860
  %v1862 = vrot.slane %v1860, 4
  %v1863 = vrot.slane %v1764, 5
  %v1864 = vsel %vm813, %v1862, %v1863
  %v1865 = vrot.slane %v1765, 5
  %v1866 = vrot.slane %v1865, 4
  %v1867 = vrot.slane %v1766, 5
  %v1868 = vsel %vm813, %v1866, %v1867
  %v1869 = vrot.slane %v1867, 4
  %v1870 = vrot.slane %v1767, 5
  %v1871 = vsel %vm813, %v1869, %v1870
  %v1872 = vrot.slane %v1768, 5
  %v1873 = vrot.slane %v1872, 4
  %v1874 = vrot.slane %v1769, 5
  %v1875 = vsel %vm813, %v1873, %v1874
  %v1876 = vrot.slane %v1874, 4
  %v1877 = vrot.slane %v1770, 5
  %v1878 = vsel %vm813, %v1876, %v1877
  %v1879 = vrot.slane %v1771, 5
  %v1880 = vrot.slane %v1879, 4
  %v1881 = vrot.slane %v1772, 5
  %v1882 = vsel %vm813, %v1880, %v1881
  %v1883 = vrot.slane %v1881, 4
  %v1884 = vrot.slane %v1773, 5
  %v1885 = vsel %vm813, %v1883, %v1884
  %v1886 = vrot.slane %v1774, 5
  %v1887 = vrot.slane %v1886, 4
  %v1888 = vrot.slane %v1775, 5
  %v1889 = vsel %vm813, %v1887, %v1888
  %v1890 = vrot.slane %v1888, 4
  %v1891 = vrot.slane %v1776, 5
  %v1892 = vsel %vm813, %v1890, %v1891
  %v1893 = vrot.slane %v1777, 5
  %v1894 = vrot.slane %v1893, 4
  %v1895 = vrot.slane %v1778, 5
  %v1896 = vsel %vm813, %v1894, %v1895
  %v1897 = vrot.slane %v1895, 4
  %v1898 = vrot.slane %v1779, 5
  %v1899 = vsel %vm813, %v1897, %v1898
  %v1900 = vrot.slane %v1780, 5
  %v1901 = vrot.slane %v1900, 4
  %v1902 = vrot.slane %v1781, 5
  %v1903 = vsel %vm813, %v1901, %v1902
  %v1904 = vrot.slane %v1902, 4
  %v1905 = vrot.slane %v1782, 5
  %v1906 = vsel %vm813, %v1904, %v1905
  %v1907 = vrot.slane %v1783, 5
  %v1908 = vrot.slane %v1907, 4
  %v1909 = vrot.slane %v1784, 5
  %v1910 = vsel %vm813, %v1908, %v1909
  %v1911 = vrot.slane %v1909, 4
  %v1912 = vrot.slane %v1785, 5
  %v1913 = vsel %vm813, %v1911, %v1912
  %v1914 = vrot.slane %v1786, 5
  %v1915 = vrot.slane %v1914, 4
  %v1916 = vrot.slane %v1787, 5
  %v1917 = vsel %vm813, %v1915, %v1916
  %v1918 = vrot.slane %v1916, 4
  %v1919 = vrot.slane %v1788, 5
  %v1920 = vsel %vm813, %v1918, %v1919
  %v1921 = vrot.slane %v1789, 5
  %v1922 = vrot.slane %v1921, 4
  %v1923 = vrot.slane %v1790, 5
  %v1924 = vsel %vm813, %v1922, %v1923
  %v1925 = vrot.slane %v1923, 4
  %v1926 = vrot.slane %v1791, 5
  %v1927 = vsel %vm813, %v1925, %v1926
  %v1928 = vrot.slane %v1792, 5
  %v1929 = vrot.slane %v1928, 4
  %v1930 = vrot.slane %v1793, 5
  %v1931 = vsel %vm813, %v1929, %v1930
  %v1932 = vrot.slane %v1930, 4
  %v1933 = vrot.slane %v1794, 5
  %v1934 = vsel %vm813, %v1932, %v1933
  %v1935 = vrot.slane %v1795, 5
  %v1936 = vrot.slane %v1935, 4
  %v1937 = vrot.slane %v1796, 5
  %v1938 = vsel %vm813, %v1936, %v1937
  %v1939 = vrot.slane %v1937, 4
  %v1940 = vrot.slane %v1797, 5
  %v1941 = vsel %vm813, %v1939, %v1940
  %v1942 = vrot.slane %v1798, 5
  %v1943 = vrot.slane %v1942, 4
  %v1944 = vrot.slane %v1799, 5
  %v1945 = vsel %vm813, %v1943, %v1944
  %v1946 = vrot.slane %v1944, 4
  %v1947 = vrot.slane %v1800, 5
  %v1948 = vsel %vm813, %v1946, %v1947
  %v1949 = vrot.slane %v1801, 5
  %v1950 = vrot.slane %v1949, 4
  %v1951 = vrot.slane %v1802, 5
  %v1952 = vsel %vm813, %v1950, %v1951
  %v1953 = vrot.slane %v1951, 4
  %v1954 = vrot.slane %v1803, 5
  %v1955 = vsel %vm813, %v1953, %v1954
  %v1956 = vrot.slane %v1804, 5
  %v1957 = vrot.slane %v1956, 4
  %v1958 = vrot.slane %v1805, 5
  %v1959 = vsel %vm813, %v1957, %v1958
  %v1960 = vrot.slane %v1958, 4
  %v1961 = vrot.slane %v1806, 5
  %v1962 = vsel %vm813, %v1960, %v1961
  %v1963 = vrot.slane %v1807, 5
  %v1964 = vrot.slane %v1963, 4
  %v1965 = vrot.slane %v1808, 5
  %v1966 = vsel %vm813, %v1964, %v1965
  %v1967 = vrot.slane %v1965, 4
  %v1968 = vrot.slane %v1809, 5
  %v1969 = vsel %vm813, %v1967, %v1968
  %v1970 = vunpack.c.l.b16 %v1861
  %v1971 = vunpack.c.l.b16 %v1864
  %v1972 = vunpack.c.l.b16 %v1868
  %v1973 = vunpack.c.l.b16 %v1871
  %v1974 = vunpack.c.l.b16 %v1875
  %v1975 = vunpack.c.l.b16 %v1878
  %v1976 = vunpack.c.l.b16 %v1882
  %v1977 = vunpack.c.l.b16 %v1885
  %v1978 = vunpack.c.l.b16 %v1889
  %v1979 = vunpack.c.l.b16 %v1892
  %v1980 = vunpack.c.l.b16 %v1896
  %v1981 = vunpack.c.l.b16 %v1899
  %v1982 = vunpack.c.l.b16 %v1903
  %v1983 = vunpack.c.l.b16 %v1906
  %v1984 = vunpack.c.l.b16 %v1910
  %v1985 = vunpack.c.l.b16 %v1913
  %v1986 = vunpack.c.l.b16 %v1917
  %v1987 = vunpack.c.l.b16 %v1920
  %v1988 = vunpack.c.l.b16 %v1924
  %v1989 = vunpack.c.l.b16 %v1927
  %v1990 = vunpack.c.l.b16 %v1931
  %v1991 = vunpack.c.l.b16 %v1934
  %v1992 = vunpack.c.l.b16 %v1938
  %v1993 = vunpack.c.l.b16 %v1941
  %v1994 = vunpack.c.l.b16 %v1945
  %v1995 = vunpack.c.l.b16 %v1948
  %v1996 = vunpack.c.l.b16 %v1952
  %v1997 = vunpack.c.l.b16 %v1955
  %v1998 = vunpack.c.l.b16 %v1959
  %v1999 = vunpack.c.l.b16 %v1962
  %v2000 = vunpack.c.l.b16 %v1966
  %v2001 = vunpack.c.l.b16 %v1969
  %v2002 = vpack.c.b16 %v1971, %v1970
  %v2003 = vpack.c.b16 %v1973, %v1972
  %v2004 = vpack.c.b16 %v1975, %v1974
  %v2005 = vpack.c.b16 %v1977, %v1976
  %v2006 = vpack.c.b16 %v1979, %v1978
  %v2007 = vpack.c.b16 %v1981, %v1980
  %v2008 = vpack.c.b16 %v1983, %v1982
  %v2009 = vpack.c.b16 %v1985, %v1984
  %v2010 = vpack.c.b16 %v1987, %v1986
  %v2011 = vpack.c.b16 %v1989, %v1988
  %v2012 = vpack.c.b16 %v1991, %v1990
  %v2013 = vpack.c.b16 %v1993, %v1992
  %v2014 = vpack.c.b16 %v1995, %v1994
  %v2015 = vpack.c.b16 %v1997, %v1996
  %v2016 = vpack.c.b16 %v1999, %v1998
  %v2017 = vpack.c.b16 %v2001, %v2000
  %2018 = vrot.lane.b32.xlu0 %v2002, 40
  %v2019 = vpop.permute.xlu0 %2018
  %2020 = vrot.lane.b32.xlu0 %v2003, 40
  %v2021 = vpop.permute.xlu0 %2020
  %2022 = vrot.lane.b32.xlu0 %v2004, 40
  %v2023 = vpop.permute.xlu0 %2022
  %2024 = vrot.lane.b32.xlu0 %v2005, 40
  %v2025 = vpop.permute.xlu0 %2024
  %2026 = vrot.lane.b32.xlu0 %v2006, 40
  %v2027 = vpop.permute.xlu0 %2026
  %2028 = vrot.lane.b32.xlu0 %v2007, 40
  %v2029 = vpop.permute.xlu0 %2028
  %2030 = vrot.lane.b32.xlu0 %v2008, 40
  %v2031 = vpop.permute.xlu0 %2030
  %2032 = vrot.lane.b32.xlu0 %v2009, 40
  %v2033 = vpop.permute.xlu0 %2032
  %2034 = vrot.lane.b32.xlu0 %v2010, 40
  %v2035 = vpop.permute.xlu0 %2034
  %2036 = vrot.lane.b32.xlu0 %v2011, 40
  %v2037 = vpop.permute.xlu0 %2036
  %2038 = vrot.lane.b32.xlu0 %v2012, 40
  %v2039 = vpop.permute.xlu0 %2038
  %2040 = vrot.lane.b32.xlu0 %v2013, 40
  %v2041 = vpop.permute.xlu0 %2040
  %2042 = vrot.lane.b32.xlu0 %v2014, 40
  %v2043 = vpop.permute.xlu0 %2042
  %2044 = vrot.lane.b32.xlu0 %v2015, 40
  %v2045 = vpop.permute.xlu0 %2044
  %2046 = vrot.lane.b32.xlu0 %v2016, 40
  %v2047 = vpop.permute.xlu0 %2046
  %2048 = vrot.lane.b32.xlu0 %v2017, 40
  %v2049 = vpop.permute.xlu0 %2048
  %vm2066 = vcmask 392512
  %2067 = vst.msk [vmem:[#allocation2] sm:$0xff] %vm2066, %v2019
  %2068 = vst.msk [vmem:[#allocation2 + $0x8] sm:$0xff] %vm2066, %v2021
  %2069 = vst.msk [vmem:[#allocation2 + $0x10] sm:$0xff] %vm2066, %v2023
  %2070 = vst.msk [vmem:[#allocation2 + $0x18] sm:$0xff] %vm2066, %v2025
  %2071 = vst.msk [vmem:[#allocation2 + $0x20] sm:$0xff] %vm2066, %v2027
  %2072 = vst.msk [vmem:[#allocation2 + $0x28] sm:$0xff] %vm2066, %v2029
  %2073 = vst.msk [vmem:[#allocation2 + $0x30] sm:$0xff] %vm2066, %v2031
  %2074 = vst.msk [vmem:[#allocation2 + $0x38] sm:$0xff] %vm2066, %v2033
  %2075 = vst.msk [vmem:[#allocation2 + $0x40] sm:$0xff] %vm2066, %v2035
  %2076 = vst.msk [vmem:[#allocation2 + $0x48] sm:$0xff] %vm2066, %v2037
  %2077 = vst.msk [vmem:[#allocation2 + $0x50] sm:$0xff] %vm2066, %v2039
  %2078 = vst.msk [vmem:[#allocation2 + $0x58] sm:$0xff] %vm2066, %v2041
  %2079 = vst.msk [vmem:[#allocation2 + $0x60] sm:$0xff] %vm2066, %v2043
  %2080 = vst.msk [vmem:[#allocation2 + $0x68] sm:$0xff] %vm2066, %v2045
  %2081 = vst.msk [vmem:[#allocation2 + $0x70] sm:$0xff] %vm2066, %v2047
  %2082 = vst.msk [vmem:[#allocation2 + $0x78] sm:$0xff] %vm2066, %v2049
  %s2083 = scalar_lea.vmem %s0, 24
  %v2084 = vld [vmem:[%s2083] sm:$0xf]
  %v2085 = vld [vmem:[%s2083 + $0x4] sm:$0xf]
  %v2086 = vld [vmem:[%s2083 + $0xc] sm:$0xf]
  %v2087 = vld [vmem:[%s2083 + $0x10] sm:$0xf]
  %v2088 = vld [vmem:[%s2083 + $0x18] sm:$0xf]
  %v2089 = vld [vmem:[%s2083 + $0x1c] sm:$0xf]
  %v2090 = vld [vmem:[%s2083 + $0x24] sm:$0xf]
  %v2091 = vld [vmem:[%s2083 + $0x28] sm:$0xf]
  %v2092 = vld [vmem:[%s2083 + $0x30] sm:$0xf]
  %v2093 = vld [vmem:[%s2083 + $0x34] sm:$0xf]
  %v2094 = vld [vmem:[%s2083 + $0x3c] sm:$0xf]
  %v2095 = vld [vmem:[%s2083 + $0x40] sm:$0xf]
  %v2096 = vld [vmem:[%s2083 + $0x48] sm:$0xf]
  %v2097 = vld [vmem:[%s2083 + $0x4c] sm:$0xf]
  %v2098 = vld [vmem:[%s2083 + $0x54] sm:$0xf]
  %v2099 = vld [vmem:[%s2083 + $0x58] sm:$0xf]
  %v2100 = vld [vmem:[%s2083 + $0x60] sm:$0xf]
  %v2101 = vld [vmem:[%s2083 + $0x64] sm:$0xf]
  %v2102 = vld [vmem:[%s2083 + $0x6c] sm:$0xf]
  %v2103 = vld [vmem:[%s2083 + $0x70] sm:$0xf]
  %v2104 = vld [vmem:[%s2083 + $0x78] sm:$0xf]
  %v2105 = vld [vmem:[%s2083 + $0x7c] sm:$0xf]
  %v2106 = vld [vmem:[%s2083 + $0x84] sm:$0xf]
  %v2107 = vld [vmem:[%s2083 + $0x88] sm:$0xf]
  %v2108 = vld [vmem:[%s2083 + $0x90] sm:$0xf]
  %v2109 = vld [vmem:[%s2083 + $0x94] sm:$0xf]
  %v2110 = vld [vmem:[%s2083 + $0x9c] sm:$0xf]
  %v2111 = vld [vmem:[%s2083 + $0xa0] sm:$0xf]
  %v2112 = vld [vmem:[%s2083 + $0xa8] sm:$0xf]
  %v2113 = vld [vmem:[%s2083 + $0xac] sm:$0xf]
  %v2114 = vld [vmem:[%s2083 + $0xb4] sm:$0xf]
  %v2115 = vld [vmem:[%s2083 + $0xb8] sm:$0xf]
  %v2148 = vunpack.c.l.b16 %v2084
  %v2149 = vunpack.c.l.b16 %v2085
  %v2150 = vunpack.c.l.b16 %v2086
  %v2151 = vunpack.c.l.b16 %v2087
  %v2152 = vunpack.c.l.b16 %v2088
  %v2153 = vunpack.c.l.b16 %v2089
  %v2154 = vunpack.c.l.b16 %v2090
  %v2155 = vunpack.c.l.b16 %v2091
  %v2156 = vunpack.c.l.b16 %v2092
  %v2157 = vunpack.c.l.b16 %v2093
  %v2158 = vunpack.c.l.b16 %v2094
  %v2159 = vunpack.c.l.b16 %v2095
  %v2160 = vunpack.c.l.b16 %v2096
  %v2161 = vunpack.c.l.b16 %v2097
  %v2162 = vunpack.c.l.b16 %v2098
  %v2163 = vunpack.c.l.b16 %v2099
  %v2164 = vunpack.c.l.b16 %v2100
  %v2165 = vunpack.c.l.b16 %v2101
  %v2166 = vunpack.c.l.b16 %v2102
  %v2167 = vunpack.c.l.b16 %v2103
  %v2168 = vunpack.c.l.b16 %v2104
  %v2169 = vunpack.c.l.b16 %v2105
  %v2170 = vunpack.c.l.b16 %v2106
  %v2171 = vunpack.c.l.b16 %v2107
  %v2172 = vunpack.c.l.b16 %v2108
  %v2173 = vunpack.c.l.b16 %v2109
  %v2174 = vunpack.c.l.b16 %v2110
  %v2175 = vunpack.c.l.b16 %v2111
  %v2176 = vunpack.c.l.b16 %v2112
  %v2177 = vunpack.c.l.b16 %v2113
  %v2178 = vunpack.c.l.b16 %v2114
  %v2179 = vunpack.c.l.b16 %v2115
  %v2180 = vpack.c.b16 %v2149, %v2148
  %v2181 = vpack.c.b16 %v2151, %v2150
  %v2182 = vpack.c.b16 %v2153, %v2152
  %v2183 = vpack.c.b16 %v2155, %v2154
  %v2184 = vpack.c.b16 %v2157, %v2156
  %v2185 = vpack.c.b16 %v2159, %v2158
  %v2186 = vpack.c.b16 %v2161, %v2160
  %v2187 = vpack.c.b16 %v2163, %v2162
  %v2188 = vpack.c.b16 %v2165, %v2164
  %v2189 = vpack.c.b16 %v2167, %v2166
  %v2190 = vpack.c.b16 %v2169, %v2168
  %v2191 = vpack.c.b16 %v2171, %v2170
  %v2192 = vpack.c.b16 %v2173, %v2172
  %v2193 = vpack.c.b16 %v2175, %v2174
  %v2194 = vpack.c.b16 %v2177, %v2176
  %v2195 = vpack.c.b16 %v2179, %v2178
  %2196 = vrot.lane.b32.xlu0 %v2180, 48
  %v2197 = vpop.permute.xlu0 %2196
  %2198 = vrot.lane.b32.xlu0 %v2181, 48
  %v2199 = vpop.permute.xlu0 %2198
  %2200 = vrot.lane.b32.xlu0 %v2182, 48
  %v2201 = vpop.permute.xlu0 %2200
  %2202 = vrot.lane.b32.xlu0 %v2183, 48
  %v2203 = vpop.permute.xlu0 %2202
  %2204 = vrot.lane.b32.xlu0 %v2184, 48
  %v2205 = vpop.permute.xlu0 %2204
  %2206 = vrot.lane.b32.xlu0 %v2185, 48
  %v2207 = vpop.permute.xlu0 %2206
  %2208 = vrot.lane.b32.xlu0 %v2186, 48
  %v2209 = vpop.permute.xlu0 %2208
  %2210 = vrot.lane.b32.xlu0 %v2187, 48
  %v2211 = vpop.permute.xlu0 %2210
  %2212 = vrot.lane.b32.xlu0 %v2188, 48
  %v2213 = vpop.permute.xlu0 %2212
  %2214 = vrot.lane.b32.xlu0 %v2189, 48
  %v2215 = vpop.permute.xlu0 %2214
  %2216 = vrot.lane.b32.xlu0 %v2190, 48
  %v2217 = vpop.permute.xlu0 %2216
  %2218 = vrot.lane.b32.xlu0 %v2191, 48
  %v2219 = vpop.permute.xlu0 %2218
  %2220 = vrot.lane.b32.xlu0 %v2192, 48
  %v2221 = vpop.permute.xlu0 %2220
  %2222 = vrot.lane.b32.xlu0 %v2193, 48
  %v2223 = vpop.permute.xlu0 %2222
  %2224 = vrot.lane.b32.xlu0 %v2194, 48
  %v2225 = vpop.permute.xlu0 %2224
  %2226 = vrot.lane.b32.xlu0 %v2195, 48
  %v2227 = vpop.permute.xlu0 %2226
  %vm2244 = vcmask 458112
  %2245 = vst.msk [vmem:[#allocation2] sm:$0xff] %vm2244, %v2197
  %2246 = vst.msk [vmem:[#allocation2 + $0x8] sm:$0xff] %vm2244, %v2199
  %2247 = vst.msk [vmem:[#allocation2 + $0x10] sm:$0xff] %vm2244, %v2201
  %2248 = vst.msk [vmem:[#allocation2 + $0x18] sm:$0xff] %vm2244, %v2203
  %2249 = vst.msk [vmem:[#allocation2 + $0x20] sm:$0xff] %vm2244, %v2205
  %2250 = vst.msk [vmem:[#allocation2 + $0x28] sm:$0xff] %vm2244, %v2207
  %2251 = vst.msk [vmem:[#allocation2 + $0x30] sm:$0xff] %vm2244, %v2209
  %2252 = vst.msk [vmem:[#allocation2 + $0x38] sm:$0xff] %vm2244, %v2211
  %2253 = vst.msk [vmem:[#allocation2 + $0x40] sm:$0xff] %vm2244, %v2213
  %2254 = vst.msk [vmem:[#allocation2 + $0x48] sm:$0xff] %vm2244, %v2215
  %2255 = vst.msk [vmem:[#allocation2 + $0x50] sm:$0xff] %vm2244, %v2217
  %2256 = vst.msk [vmem:[#allocation2 + $0x58] sm:$0xff] %vm2244, %v2219
  %2257 = vst.msk [vmem:[#allocation2 + $0x60] sm:$0xff] %vm2244, %v2221
  %2258 = vst.msk [vmem:[#allocation2 + $0x68] sm:$0xff] %vm2244, %v2223
  %2259 = vst.msk [vmem:[#allocation2 + $0x70] sm:$0xff] %vm2244, %v2225
  %2260 = vst.msk [vmem:[#allocation2 + $0x78] sm:$0xff] %vm2244, %v2227
  %v2261 = vld [vmem:[%s2083] sm:$0xf]
  %v2262 = vld [vmem:[%s2083 + $0x4] sm:$0xf]
  %v2263 = vld [vmem:[%s2083 + $0x8] sm:$0x1]
  %v2264 = vld [vmem:[%s2083 + $0xc] sm:$0xf]
  %v2265 = vld [vmem:[%s2083 + $0x10] sm:$0xf]
  %v2266 = vld [vmem:[%s2083 + $0x14] sm:$0x1]
  %v2267 = vld [vmem:[%s2083 + $0x18] sm:$0xf]
  %v2268 = vld [vmem:[%s2083 + $0x1c] sm:$0xf]
  %v2269 = vld [vmem:[%s2083 + $0x20] sm:$0x1]
  %v2270 = vld [vmem:[%s2083 + $0x24] sm:$0xf]
  %v2271 = vld [vmem:[%s2083 + $0x28] sm:$0xf]
  %v2272 = vld [vmem:[%s2083 + $0x2c] sm:$0x1]
  %v2273 = vld [vmem:[%s2083 + $0x30] sm:$0xf]
  %v2274 = vld [vmem:[%s2083 + $0x34] sm:$0xf]
  %v2275 = vld [vmem:[%s2083 + $0x38] sm:$0x1]
  %v2276 = vld [vmem:[%s2083 + $0x3c] sm:$0xf]
  %v2277 = vld [vmem:[%s2083 + $0x40] sm:$0xf]
  %v2278 = vld [vmem:[%s2083 + $0x44] sm:$0x1]
  %v2279 = vld [vmem:[%s2083 + $0x48] sm:$0xf]
  %v2280 = vld [vmem:[%s2083 + $0x4c] sm:$0xf]
  %v2281 = vld [vmem:[%s2083 + $0x50] sm:$0x1]
  %v2282 = vld [vmem:[%s2083 + $0x54] sm:$0xf]
  %v2283 = vld [vmem:[%s2083 + $0x58] sm:$0xf]
  %v2284 = vld [vmem:[%s2083 + $0x5c] sm:$0x1]
  %v2285 = vld [vmem:[%s2083 + $0x60] sm:$0xf]
  %v2286 = vld [vmem:[%s2083 + $0x64] sm:$0xf]
  %v2287 = vld [vmem:[%s2083 + $0x68] sm:$0x1]
  %v2288 = vld [vmem:[%s2083 + $0x6c] sm:$0xf]
  %v2289 = vld [vmem:[%s2083 + $0x70] sm:$0xf]
  %v2290 = vld [vmem:[%s2083 + $0x74] sm:$0x1]
  %v2291 = vld [vmem:[%s2083 + $0x78] sm:$0xf]
  %v2292 = vld [vmem:[%s2083 + $0x7c] sm:$0xf]
  %v2293 = vld [vmem:[%s2083 + $0x80] sm:$0x1]
  %v2294 = vld [vmem:[%s2083 + $0x84] sm:$0xf]
  %v2295 = vld [vmem:[%s2083 + $0x88] sm:$0xf]
  %v2296 = vld [vmem:[%s2083 + $0x8c] sm:$0x1]
  %v2297 = vld [vmem:[%s2083 + $0x90] sm:$0xf]
  %v2298 = vld [vmem:[%s2083 + $0x94] sm:$0xf]
  %v2299 = vld [vmem:[%s2083 + $0x98] sm:$0x1]
  %v2300 = vld [vmem:[%s2083 + $0x9c] sm:$0xf]
  %v2301 = vld [vmem:[%s2083 + $0xa0] sm:$0xf]
  %v2302 = vld [vmem:[%s2083 + $0xa4] sm:$0x1]
  %v2303 = vld [vmem:[%s2083 + $0xa8] sm:$0xf]
  %v2304 = vld [vmem:[%s2083 + $0xac] sm:$0xf]
  %v2305 = vld [vmem:[%s2083 + $0xb0] sm:$0x1]
  %v2306 = vld [vmem:[%s2083 + $0xb4] sm:$0xf]
  %v2307 = vld [vmem:[%s2083 + $0xb8] sm:$0xf]
  %v2308 = vld [vmem:[%s2083 + $0xbc] sm:$0x1]
  %v2310 = vshrl.u32 %v2261, 16
  %v2312 = vrot.slane %v2310, 4
  %v2313 = vshll.u32 %v2261, 16
  %v2315 = vrot.slane %v2313, 5
  %v2316 = vor.u32 %v2312, %v2315
  %v2317 = vrot.slane %v2316, 4
  %v2319 = vshll.u32 %v2262, 16
  %v2321 = vrot.slane %v2319, 5
  %v2322 = vsel %vm217, %v2317, %v2321
  %v2323 = vshrl.u32 %v2262, 16
  %v2325 = vrot.slane %v2323, 4
  %v2326 = vor.u32 %v2325, %v2321
  %v2327 = vrot.slane %v2326, 4
  %v2329 = vshll.u32 %v2263, 16
  %v2331 = vrot.slane %v2329, 5
  %v2332 = vsel %vm217, %v2327, %v2331
  %v2334 = vshrl.u32 %v2264, 16
  %v2336 = vrot.slane %v2334, 4
  %v2337 = vshll.u32 %v2264, 16
  %v2339 = vrot.slane %v2337, 5
  %v2340 = vor.u32 %v2336, %v2339
  %v2341 = vrot.slane %v2340, 4
  %v2343 = vshll.u32 %v2265, 16
  %v2345 = vrot.slane %v2343, 5
  %v2346 = vsel %vm217, %v2341, %v2345
  %v2347 = vshrl.u32 %v2265, 16
  %v2349 = vrot.slane %v2347, 4
  %v2350 = vor.u32 %v2349, %v2345
  %v2351 = vrot.slane %v2350, 4
  %v2353 = vshll.u32 %v2266, 16
  %v2355 = vrot.slane %v2353, 5
  %v2356 = vsel %vm217, %v2351, %v2355
  %v2358 = vshrl.u32 %v2267, 16
  %v2360 = vrot.slane %v2358, 4
  %v2361 = vshll.u32 %v2267, 16
  %v2363 = vrot.slane %v2361, 5
  %v2364 = vor.u32 %v2360, %v2363
  %v2365 = vrot.slane %v2364, 4
  %v2367 = vshll.u32 %v2268, 16
  %v2369 = vrot.slane %v2367, 5
  %v2370 = vsel %vm217, %v2365, %v2369
  %v2371 = vshrl.u32 %v2268, 16
  %v2373 = vrot.slane %v2371, 4
  %v2374 = vor.u32 %v2373, %v2369
  %v2375 = vrot.slane %v2374, 4
  %v2377 = vshll.u32 %v2269, 16
  %v2379 = vrot.slane %v2377, 5
  %v2380 = vsel %vm217, %v2375, %v2379
  %v2382 = vshrl.u32 %v2270, 16
  %v2384 = vrot.slane %v2382, 4
  %v2385 = vshll.u32 %v2270, 16
  %v2387 = vrot.slane %v2385, 5
  %v2388 = vor.u32 %v2384, %v2387
  %v2389 = vrot.slane %v2388, 4
  %v2391 = vshll.u32 %v2271, 16
  %v2393 = vrot.slane %v2391, 5
  %v2394 = vsel %vm217, %v2389, %v2393
  %v2395 = vshrl.u32 %v2271, 16
  %v2397 = vrot.slane %v2395, 4
  %v2398 = vor.u32 %v2397, %v2393
  %v2399 = vrot.slane %v2398, 4
  %v2401 = vshll.u32 %v2272, 16
  %v2403 = vrot.slane %v2401, 5
  %v2404 = vsel %vm217, %v2399, %v2403
  %v2406 = vshrl.u32 %v2273, 16
  %v2408 = vrot.slane %v2406, 4
  %v2409 = vshll.u32 %v2273, 16
  %v2411 = vrot.slane %v2409, 5
  %v2412 = vor.u32 %v2408, %v2411
  %v2413 = vrot.slane %v2412, 4
  %v2415 = vshll.u32 %v2274, 16
  %v2417 = vrot.slane %v2415, 5
  %v2418 = vsel %vm217, %v2413, %v2417
  %v2419 = vshrl.u32 %v2274, 16
  %v2421 = vrot.slane %v2419, 4
  %v2422 = vor.u32 %v2421, %v2417
  %v2423 = vrot.slane %v2422, 4
  %v2425 = vshll.u32 %v2275, 16
  %v2427 = vrot.slane %v2425, 5
  %v2428 = vsel %vm217, %v2423, %v2427
  %v2430 = vshrl.u32 %v2276, 16
  %v2432 = vrot.slane %v2430, 4
  %v2433 = vshll.u32 %v2276, 16
  %v2435 = vrot.slane %v2433, 5
  %v2436 = vor.u32 %v2432, %v2435
  %v2437 = vrot.slane %v2436, 4
  %v2439 = vshll.u32 %v2277, 16
  %v2441 = vrot.slane %v2439, 5
  %v2442 = vsel %vm217, %v2437, %v2441
  %v2443 = vshrl.u32 %v2277, 16
  %v2445 = vrot.slane %v2443, 4
  %v2446 = vor.u32 %v2445, %v2441
  %v2447 = vrot.slane %v2446, 4
  %v2449 = vshll.u32 %v2278, 16
  %v2451 = vrot.slane %v2449, 5
  %v2452 = vsel %vm217, %v2447, %v2451
  %v2454 = vshrl.u32 %v2279, 16
  %v2456 = vrot.slane %v2454, 4
  %v2457 = vshll.u32 %v2279, 16
  %v2459 = vrot.slane %v2457, 5
  %v2460 = vor.u32 %v2456, %v2459
  %v2461 = vrot.slane %v2460, 4
  %v2463 = vshll.u32 %v2280, 16
  %v2465 = vrot.slane %v2463, 5
  %v2466 = vsel %vm217, %v2461, %v2465
  %v2467 = vshrl.u32 %v2280, 16
  %v2469 = vrot.slane %v2467, 4
  %v2470 = vor.u32 %v2469, %v2465
  %v2471 = vrot.slane %v2470, 4
  %v2473 = vshll.u32 %v2281, 16
  %v2475 = vrot.slane %v2473, 5
  %v2476 = vsel %vm217, %v2471, %v2475
  %v2478 = vshrl.u32 %v2282, 16
  %v2480 = vrot.slane %v2478, 4
  %v2481 = vshll.u32 %v2282, 16
  %v2483 = vrot.slane %v2481, 5
  %v2484 = vor.u32 %v2480, %v2483
  %v2485 = vrot.slane %v2484, 4
  %v2487 = vshll.u32 %v2283, 16
  %v2489 = vrot.slane %v2487, 5
  %v2490 = vsel %vm217, %v2485, %v2489
  %v2491 = vshrl.u32 %v2283, 16
  %v2493 = vrot.slane %v2491, 4
  %v2494 = vor.u32 %v2493, %v2489
  %v2495 = vrot.slane %v2494, 4
  %v2497 = vshll.u32 %v2284, 16
  %v2499 = vrot.slane %v2497, 5
  %v2500 = vsel %vm217, %v2495, %v2499
  %v2502 = vshrl.u32 %v2285, 16
  %v2504 = vrot.slane %v2502, 4
  %v2505 = vshll.u32 %v2285, 16
  %v2507 = vrot.slane %v2505, 5
  %v2508 = vor.u32 %v2504, %v2507
  %v2509 = vrot.slane %v2508, 4
  %v2511 = vshll.u32 %v2286, 16
  %v2513 = vrot.slane %v2511, 5
  %v2514 = vsel %vm217, %v2509, %v2513
  %v2515 = vshrl.u32 %v2286, 16
  %v2517 = vrot.slane %v2515, 4
  %v2518 = vor.u32 %v2517, %v2513
  %v2519 = vrot.slane %v2518, 4
  %v2521 = vshll.u32 %v2287, 16
  %v2523 = vrot.slane %v2521, 5
  %v2524 = vsel %vm217, %v2519, %v2523
  %v2526 = vshrl.u32 %v2288, 16
  %v2528 = vrot.slane %v2526, 4
  %v2529 = vshll.u32 %v2288, 16
  %v2531 = vrot.slane %v2529, 5
  %v2532 = vor.u32 %v2528, %v2531
  %v2533 = vrot.slane %v2532, 4
  %v2535 = vshll.u32 %v2289, 16
  %v2537 = vrot.slane %v2535, 5
  %v2538 = vsel %vm217, %v2533, %v2537
  %v2539 = vshrl.u32 %v2289, 16
  %v2541 = vrot.slane %v2539, 4
  %v2542 = vor.u32 %v2541, %v2537
  %v2543 = vrot.slane %v2542, 4
  %v2545 = vshll.u32 %v2290, 16
  %v2547 = vrot.slane %v2545, 5
  %v2548 = vsel %vm217, %v2543, %v2547
  %v2550 = vshrl.u32 %v2291, 16
  %v2552 = vrot.slane %v2550, 4
  %v2553 = vshll.u32 %v2291, 16
  %v2555 = vrot.slane %v2553, 5
  %v2556 = vor.u32 %v2552, %v2555
  %v2557 = vrot.slane %v2556, 4
  %v2559 = vshll.u32 %v2292, 16
  %v2561 = vrot.slane %v2559, 5
  %v2562 = vsel %vm217, %v2557, %v2561
  %v2563 = vshrl.u32 %v2292, 16
  %v2565 = vrot.slane %v2563, 4
  %v2566 = vor.u32 %v2565, %v2561
  %v2567 = vrot.slane %v2566, 4
  %v2569 = vshll.u32 %v2293, 16
  %v2571 = vrot.slane %v2569, 5
  %v2572 = vsel %vm217, %v2567, %v2571
  %v2574 = vshrl.u32 %v2294, 16
  %v2576 = vrot.slane %v2574, 4
  %v2577 = vshll.u32 %v2294, 16
  %v2579 = vrot.slane %v2577, 5
  %v2580 = vor.u32 %v2576, %v2579
  %v2581 = vrot.slane %v2580, 4
  %v2583 = vshll.u32 %v2295, 16
  %v2585 = vrot.slane %v2583, 5
  %v2586 = vsel %vm217, %v2581, %v2585
  %v2587 = vshrl.u32 %v2295, 16
  %v2589 = vrot.slane %v2587, 4
  %v2590 = vor.u32 %v2589, %v2585
  %v2591 = vrot.slane %v2590, 4
  %v2593 = vshll.u32 %v2296, 16
  %v2595 = vrot.slane %v2593, 5
  %v2596 = vsel %vm217, %v2591, %v2595
  %v2598 = vshrl.u32 %v2297, 16
  %v2600 = vrot.slane %v2598, 4
  %v2601 = vshll.u32 %v2297, 16
  %v2603 = vrot.slane %v2601, 5
  %v2604 = vor.u32 %v2600, %v2603
  %v2605 = vrot.slane %v2604, 4
  %v2607 = vshll.u32 %v2298, 16
  %v2609 = vrot.slane %v2607, 5
  %v2610 = vsel %vm217, %v2605, %v2609
  %v2611 = vshrl.u32 %v2298, 16
  %v2613 = vrot.slane %v2611, 4
  %v2614 = vor.u32 %v2613, %v2609
  %v2615 = vrot.slane %v2614, 4
  %v2617 = vshll.u32 %v2299, 16
  %v2619 = vrot.slane %v2617, 5
  %v2620 = vsel %vm217, %v2615, %v2619
  %v2622 = vshrl.u32 %v2300, 16
  %v2624 = vrot.slane %v2622, 4
  %v2625 = vshll.u32 %v2300, 16
  %v2627 = vrot.slane %v2625, 5
  %v2628 = vor.u32 %v2624, %v2627
  %v2629 = vrot.slane %v2628, 4
  %v2631 = vshll.u32 %v2301, 16
  %v2633 = vrot.slane %v2631, 5
  %v2634 = vsel %vm217, %v2629, %v2633
  %v2635 = vshrl.u32 %v2301, 16
  %v2637 = vrot.slane %v2635, 4
  %v2638 = vor.u32 %v2637, %v2633
  %v2639 = vrot.slane %v2638, 4
  %v2641 = vshll.u32 %v2302, 16
  %v2643 = vrot.slane %v2641, 5
  %v2644 = vsel %vm217, %v2639, %v2643
  %v2646 = vshrl.u32 %v2303, 16
  %v2648 = vrot.slane %v2646, 4
  %v2649 = vshll.u32 %v2303, 16
  %v2651 = vrot.slane %v2649, 5
  %v2652 = vor.u32 %v2648, %v2651
  %v2653 = vrot.slane %v2652, 4
  %v2655 = vshll.u32 %v2304, 16
  %v2657 = vrot.slane %v2655, 5
  %v2658 = vsel %vm217, %v2653, %v2657
  %v2659 = vshrl.u32 %v2304, 16
  %v2661 = vrot.slane %v2659, 4
  %v2662 = vor.u32 %v2661, %v2657
  %v2663 = vrot.slane %v2662, 4
  %v2665 = vshll.u32 %v2305, 16
  %v2667 = vrot.slane %v2665, 5
  %v2668 = vsel %vm217, %v2663, %v2667
  %v2670 = vshrl.u32 %v2306, 16
  %v2672 = vrot.slane %v2670, 4
  %v2673 = vshll.u32 %v2306, 16
  %v2675 = vrot.slane %v2673, 5
  %v2676 = vor.u32 %v2672, %v2675
  %v2677 = vrot.slane %v2676, 4
  %v2679 = vshll.u32 %v2307, 16
  %v2681 = vrot.slane %v2679, 5
  %v2682 = vsel %vm217, %v2677, %v2681
  %v2683 = vshrl.u32 %v2307, 16
  %v2685 = vrot.slane %v2683, 4
  %v2686 = vor.u32 %v2685, %v2681
  %v2687 = vrot.slane %v2686, 4
  %v2689 = vshll.u32 %v2308, 16
  %v2691 = vrot.slane %v2689, 5
  %v2692 = vsel %vm217, %v2687, %v2691
  %v2693 = vunpack.c.l.b16 %v2322
  %v2694 = vunpack.c.l.b16 %v2332
  %v2695 = vunpack.c.l.b16 %v2346
  %v2696 = vunpack.c.l.b16 %v2356
  %v2697 = vunpack.c.l.b16 %v2370
  %v2698 = vunpack.c.l.b16 %v2380
  %v2699 = vunpack.c.l.b16 %v2394
  %v2700 = vunpack.c.l.b16 %v2404
  %v2701 = vunpack.c.l.b16 %v2418
  %v2702 = vunpack.c.l.b16 %v2428
  %v2703 = vunpack.c.l.b16 %v2442
  %v2704 = vunpack.c.l.b16 %v2452
  %v2705 = vunpack.c.l.b16 %v2466
  %v2706 = vunpack.c.l.b16 %v2476
  %v2707 = vunpack.c.l.b16 %v2490
  %v2708 = vunpack.c.l.b16 %v2500
  %v2709 = vunpack.c.l.b16 %v2514
  %v2710 = vunpack.c.l.b16 %v2524
  %v2711 = vunpack.c.l.b16 %v2538
  %v2712 = vunpack.c.l.b16 %v2548
  %v2713 = vunpack.c.l.b16 %v2562
  %v2714 = vunpack.c.l.b16 %v2572
  %v2715 = vunpack.c.l.b16 %v2586
  %v2716 = vunpack.c.l.b16 %v2596
  %v2717 = vunpack.c.l.b16 %v2610
  %v2718 = vunpack.c.l.b16 %v2620
  %v2719 = vunpack.c.l.b16 %v2634
  %v2720 = vunpack.c.l.b16 %v2644
  %v2721 = vunpack.c.l.b16 %v2658
  %v2722 = vunpack.c.l.b16 %v2668
  %v2723 = vunpack.c.l.b16 %v2682
  %v2724 = vunpack.c.l.b16 %v2692
  %v2725 = vpack.c.b16 %v2694, %v2693
  %v2726 = vpack.c.b16 %v2696, %v2695
  %v2727 = vpack.c.b16 %v2698, %v2697
  %v2728 = vpack.c.b16 %v2700, %v2699
  %v2729 = vpack.c.b16 %v2702, %v2701
  %v2730 = vpack.c.b16 %v2704, %v2703
  %v2731 = vpack.c.b16 %v2706, %v2705
  %v2732 = vpack.c.b16 %v2708, %v2707
  %v2733 = vpack.c.b16 %v2710, %v2709
  %v2734 = vpack.c.b16 %v2712, %v2711
  %v2735 = vpack.c.b16 %v2714, %v2713
  %v2736 = vpack.c.b16 %v2716, %v2715
  %v2737 = vpack.c.b16 %v2718, %v2717
  %v2738 = vpack.c.b16 %v2720, %v2719
  %v2739 = vpack.c.b16 %v2722, %v2721
  %v2740 = vpack.c.b16 %v2724, %v2723
  %2741 = vrot.lane.b32.xlu0 %v2725, 56
  %v2742 = vpop.permute.xlu0 %2741
  %2743 = vrot.lane.b32.xlu0 %v2726, 56
  %v2744 = vpop.permute.xlu0 %2743
  %2745 = vrot.lane.b32.xlu0 %v2727, 56
  %v2746 = vpop.permute.xlu0 %2745
  %2747 = vrot.lane.b32.xlu0 %v2728, 56
  %v2748 = vpop.permute.xlu0 %2747
  %2749 = vrot.lane.b32.xlu0 %v2729, 56
  %v2750 = vpop.permute.xlu0 %2749
  %2751 = vrot.lane.b32.xlu0 %v2730, 56
  %v2752 = vpop.permute.xlu0 %2751
  %2753 = vrot.lane.b32.xlu0 %v2731, 56
  %v2754 = vpop.permute.xlu0 %2753
  %2755 = vrot.lane.b32.xlu0 %v2732, 56
  %v2756 = vpop.permute.xlu0 %2755
  %2757 = vrot.lane.b32.xlu0 %v2733, 56
  %v2758 = vpop.permute.xlu0 %2757
  %2759 = vrot.lane.b32.xlu0 %v2734, 56
  %v2760 = vpop.permute.xlu0 %2759
  %2761 = vrot.lane.b32.xlu0 %v2735, 56
  %v2762 = vpop.permute.xlu0 %2761
  %2763 = vrot.lane.b32.xlu0 %v2736, 56
  %v2764 = vpop.permute.xlu0 %2763
  %2765 = vrot.lane.b32.xlu0 %v2737, 56
  %v2766 = vpop.permute.xlu0 %2765
  %2767 = vrot.lane.b32.xlu0 %v2738, 56
  %v2768 = vpop.permute.xlu0 %2767
  %2769 = vrot.lane.b32.xlu0 %v2739, 56
  %v2770 = vpop.permute.xlu0 %2769
  %2771 = vrot.lane.b32.xlu0 %v2740, 56
  %v2772 = vpop.permute.xlu0 %2771
  %vm2789 = vcmask 523712
  %2790 = vst.msk [vmem:[#allocation2] sm:$0xff] %vm2789, %v2742
  %2791 = vst.msk [vmem:[#allocation2 + $0x8] sm:$0xff] %vm2789, %v2744
  %2792 = vst.msk [vmem:[#allocation2 + $0x10] sm:$0xff] %vm2789, %v2746
  %2793 = vst.msk [vmem:[#allocation2 + $0x18] sm:$0xff] %vm2789, %v2748
  %2794 = vst.msk [vmem:[#allocation2 + $0x20] sm:$0xff] %vm2789, %v2750
  %2795 = vst.msk [vmem:[#allocation2 + $0x28] sm:$0xff] %vm2789, %v2752
  %2796 = vst.msk [vmem:[#allocation2 + $0x30] sm:$0xff] %vm2789, %v2754
  %2797 = vst.msk [vmem:[#allocation2 + $0x38] sm:$0xff] %vm2789, %v2756
  %2798 = vst.msk [vmem:[#allocation2 + $0x40] sm:$0xff] %vm2789, %v2758
  %2799 = vst.msk [vmem:[#allocation2 + $0x48] sm:$0xff] %vm2789, %v2760
  %2800 = vst.msk [vmem:[#allocation2 + $0x50] sm:$0xff] %vm2789, %v2762
  %2801 = vst.msk [vmem:[#allocation2 + $0x58] sm:$0xff] %vm2789, %v2764
  %2802 = vst.msk [vmem:[#allocation2 + $0x60] sm:$0xff] %vm2789, %v2766
  %2803 = vst.msk [vmem:[#allocation2 + $0x68] sm:$0xff] %vm2789, %v2768
  %2804 = vst.msk [vmem:[#allocation2 + $0x70] sm:$0xff] %vm2789, %v2770
  %2805 = vst.msk [vmem:[#allocation2 + $0x78] sm:$0xff] %vm2789, %v2772
  %v2806 = vld [vmem:[%s2083] sm:$0xe]
  %v2807 = vld [vmem:[%s2083 + $0x4] sm:$0xf]
  %v2808 = vld [vmem:[%s2083 + $0x8] sm:$0x1]
  %v2809 = vld [vmem:[%s2083 + $0xc] sm:$0xe]
  %v2810 = vld [vmem:[%s2083 + $0x10] sm:$0xf]
  %v2811 = vld [vmem:[%s2083 + $0x14] sm:$0x1]
  %v2812 = vld [vmem:[%s2083 + $0x18] sm:$0xe]
  %v2813 = vld [vmem:[%s2083 + $0x1c] sm:$0xf]
  %v2814 = vld [vmem:[%s2083 + $0x20] sm:$0x1]
  %v2815 = vld [vmem:[%s2083 + $0x24] sm:$0xe]
  %v2816 = vld [vmem:[%s2083 + $0x28] sm:$0xf]
  %v2817 = vld [vmem:[%s2083 + $0x2c] sm:$0x1]
  %v2818 = vld [vmem:[%s2083 + $0x30] sm:$0xe]
  %v2819 = vld [vmem:[%s2083 + $0x34] sm:$0xf]
  %v2820 = vld [vmem:[%s2083 + $0x38] sm:$0x1]
  %v2821 = vld [vmem:[%s2083 + $0x3c] sm:$0xe]
  %v2822 = vld [vmem:[%s2083 + $0x40] sm:$0xf]
  %v2823 = vld [vmem:[%s2083 + $0x44] sm:$0x1]
  %v2824 = vld [vmem:[%s2083 + $0x48] sm:$0xe]
  %v2825 = vld [vmem:[%s2083 + $0x4c] sm:$0xf]
  %v2826 = vld [vmem:[%s2083 + $0x50] sm:$0x1]
  %v2827 = vld [vmem:[%s2083 + $0x54] sm:$0xe]
  %v2828 = vld [vmem:[%s2083 + $0x58] sm:$0xf]
  %v2829 = vld [vmem:[%s2083 + $0x5c] sm:$0x1]
  %v2830 = vld [vmem:[%s2083 + $0x60] sm:$0xe]
  %v2831 = vld [vmem:[%s2083 + $0x64] sm:$0xf]
  %v2832 = vld [vmem:[%s2083 + $0x68] sm:$0x1]
  %v2833 = vld [vmem:[%s2083 + $0x6c] sm:$0xe]
  %v2834 = vld [vmem:[%s2083 + $0x70] sm:$0xf]
  %v2835 = vld [vmem:[%s2083 + $0x74] sm:$0x1]
  %v2836 = vld [vmem:[%s2083 + $0x78] sm:$0xe]
  %v2837 = vld [vmem:[%s2083 + $0x7c] sm:$0xf]
  %v2838 = vld [vmem:[%s2083 + $0x80] sm:$0x1]
  %v2839 = vld [vmem:[%s2083 + $0x84] sm:$0xe]
  %v2840 = vld [vmem:[%s2083 + $0x88] sm:$0xf]
  %v2841 = vld [vmem:[%s2083 + $0x8c] sm:$0x1]
  %v2842 = vld [vmem:[%s2083 + $0x90] sm:$0xe]
  %v2843 = vld [vmem:[%s2083 + $0x94] sm:$0xf]
  %v2844 = vld [vmem:[%s2083 + $0x98] sm:$0x1]
  %v2845 = vld [vmem:[%s2083 + $0x9c] sm:$0xe]
  %v2846 = vld [vmem:[%s2083 + $0xa0] sm:$0xf]
  %v2847 = vld [vmem:[%s2083 + $0xa4] sm:$0x1]
  %v2848 = vld [vmem:[%s2083 + $0xa8] sm:$0xe]
  %v2849 = vld [vmem:[%s2083 + $0xac] sm:$0xf]
  %v2850 = vld [vmem:[%s2083 + $0xb0] sm:$0x1]
  %v2851 = vld [vmem:[%s2083 + $0xb4] sm:$0xe]
  %v2852 = vld [vmem:[%s2083 + $0xb8] sm:$0xf]
  %v2853 = vld [vmem:[%s2083 + $0xbc] sm:$0x1]
  %v2902 = vrot.slane %v2806, 5
  %v2903 = vrot.slane %v2902, 4
  %v2904 = vrot.slane %v2807, 5
  %v2905 = vsel %vm813, %v2903, %v2904
  %v2906 = vrot.slane %v2904, 4
  %v2907 = vrot.slane %v2808, 5
  %v2908 = vsel %vm813, %v2906, %v2907
  %v2909 = vrot.slane %v2809, 5
  %v2910 = vrot.slane %v2909, 4
  %v2911 = vrot.slane %v2810, 5
  %v2912 = vsel %vm813, %v2910, %v2911
  %v2913 = vrot.slane %v2911, 4
  %v2914 = vrot.slane %v2811, 5
  %v2915 = vsel %vm813, %v2913, %v2914
  %v2916 = vrot.slane %v2812, 5
  %v2917 = vrot.slane %v2916, 4
  %v2918 = vrot.slane %v2813, 5
  %v2919 = vsel %vm813, %v2917, %v2918
  %v2920 = vrot.slane %v2918, 4
  %v2921 = vrot.slane %v2814, 5
  %v2922 = vsel %vm813, %v2920, %v2921
  %v2923 = vrot.slane %v2815, 5
  %v2924 = vrot.slane %v2923, 4
  %v2925 = vrot.slane %v2816, 5
  %v2926 = vsel %vm813, %v2924, %v2925
  %v2927 = vrot.slane %v2925, 4
  %v2928 = vrot.slane %v2817, 5
  %v2929 = vsel %vm813, %v2927, %v2928
  %v2930 = vrot.slane %v2818, 5
  %v2931 = vrot.slane %v2930, 4
  %v2932 = vrot.slane %v2819, 5
  %v2933 = vsel %vm813, %v2931, %v2932
  %v2934 = vrot.slane %v2932, 4
  %v2935 = vrot.slane %v2820, 5
  %v2936 = vsel %vm813, %v2934, %v2935
  %v2937 = vrot.slane %v2821, 5
  %v2938 = vrot.slane %v2937, 4
  %v2939 = vrot.slane %v2822, 5
  %v2940 = vsel %vm813, %v2938, %v2939
  %v2941 = vrot.slane %v2939, 4
  %v2942 = vrot.slane %v2823, 5
  %v2943 = vsel %vm813, %v2941, %v2942
  %v2944 = vrot.slane %v2824, 5
  %v2945 = vrot.slane %v2944, 4
  %v2946 = vrot.slane %v2825, 5
  %v2947 = vsel %vm813, %v2945, %v2946
  %v2948 = vrot.slane %v2946, 4
  %v2949 = vrot.slane %v2826, 5
  %v2950 = vsel %vm813, %v2948, %v2949
  %v2951 = vrot.slane %v2827, 5
  %v2952 = vrot.slane %v2951, 4
  %v2953 = vrot.slane %v2828, 5
  %v2954 = vsel %vm813, %v2952, %v2953
  %v2955 = vrot.slane %v2953, 4
  %v2956 = vrot.slane %v2829, 5
  %v2957 = vsel %vm813, %v2955, %v2956
  %v2958 = vrot.slane %v2830, 5
  %v2959 = vrot.slane %v2958, 4
  %v2960 = vrot.slane %v2831, 5
  %v2961 = vsel %vm813, %v2959, %v2960
  %v2962 = vrot.slane %v2960, 4
  %v2963 = vrot.slane %v2832, 5
  %v2964 = vsel %vm813, %v2962, %v2963
  %v2965 = vrot.slane %v2833, 5
  %v2966 = vrot.slane %v2965, 4
  %v2967 = vrot.slane %v2834, 5
  %v2968 = vsel %vm813, %v2966, %v2967
  %v2969 = vrot.slane %v2967, 4
  %v2970 = vrot.slane %v2835, 5
  %v2971 = vsel %vm813, %v2969, %v2970
  %v2972 = vrot.slane %v2836, 5
  %v2973 = vrot.slane %v2972, 4
  %v2974 = vrot.slane %v2837, 5
  %v2975 = vsel %vm813, %v2973, %v2974
  %v2976 = vrot.slane %v2974, 4
  %v2977 = vrot.slane %v2838, 5
  %v2978 = vsel %vm813, %v2976, %v2977
  %v2979 = vrot.slane %v2839, 5
  %v2980 = vrot.slane %v2979, 4
  %v2981 = vrot.slane %v2840, 5
  %v2982 = vsel %vm813, %v2980, %v2981
  %v2983 = vrot.slane %v2981, 4
  %v2984 = vrot.slane %v2841, 5
  %v2985 = vsel %vm813, %v2983, %v2984
  %v2986 = vrot.slane %v2842, 5
  %v2987 = vrot.slane %v2986, 4
  %v2988 = vrot.slane %v2843, 5
  %v2989 = vsel %vm813, %v2987, %v2988
  %v2990 = vrot.slane %v2988, 4
  %v2991 = vrot.slane %v2844, 5
  %v2992 = vsel %vm813, %v2990, %v2991
  %v2993 = vrot.slane %v2845, 5
  %v2994 = vrot.slane %v2993, 4
  %v2995 = vrot.slane %v2846, 5
  %v2996 = vsel %vm813, %v2994, %v2995
  %v2997 = vrot.slane %v2995, 4
  %v2998 = vrot.slane %v2847, 5
  %v2999 = vsel %vm813, %v2997, %v2998
  %v3000 = vrot.slane %v2848, 5
  %v3001 = vrot.slane %v3000, 4
  %v3002 = vrot.slane %v2849, 5
  %v3003 = vsel %vm813, %v3001, %v3002
  %v3004 = vrot.slane %v3002, 4
  %v3005 = vrot.slane %v2850, 5
  %v3006 = vsel %vm813, %v3004, %v3005
  %v3007 = vrot.slane %v2851, 5
  %v3008 = vrot.slane %v3007, 4
  %v3009 = vrot.slane %v2852, 5
  %v3010 = vsel %vm813, %v3008, %v3009
  %v3011 = vrot.slane %v3009, 4
  %v3012 = vrot.slane %v2853, 5
  %v3013 = vsel %vm813, %v3011, %v3012
  %v3014 = vunpack.c.l.b16 %v2905
  %v3015 = vunpack.c.l.b16 %v2908
  %v3016 = vunpack.c.l.b16 %v2912
  %v3017 = vunpack.c.l.b16 %v2915
  %v3018 = vunpack.c.l.b16 %v2919
  %v3019 = vunpack.c.l.b16 %v2922
  %v3020 = vunpack.c.l.b16 %v2926
  %v3021 = vunpack.c.l.b16 %v2929
  %v3022 = vunpack.c.l.b16 %v2933
  %v3023 = vunpack.c.l.b16 %v2936
  %v3024 = vunpack.c.l.b16 %v2940
  %v3025 = vunpack.c.l.b16 %v2943
  %v3026 = vunpack.c.l.b16 %v2947
  %v3027 = vunpack.c.l.b16 %v2950
  %v3028 = vunpack.c.l.b16 %v2954
  %v3029 = vunpack.c.l.b16 %v2957
  %v3030 = vunpack.c.l.b16 %v2961
  %v3031 = vunpack.c.l.b16 %v2964
  %v3032 = vunpack.c.l.b16 %v2968
  %v3033 = vunpack.c.l.b16 %v2971
  %v3034 = vunpack.c.l.b16 %v2975
  %v3035 = vunpack.c.l.b16 %v2978
  %v3036 = vunpack.c.l.b16 %v2982
  %v3037 = vunpack.c.l.b16 %v2985
  %v3038 = vunpack.c.l.b16 %v2989
  %v3039 = vunpack.c.l.b16 %v2992
  %v3040 = vunpack.c.l.b16 %v2996
  %v3041 = vunpack.c.l.b16 %v2999
  %v3042 = vunpack.c.l.b16 %v3003
  %v3043 = vunpack.c.l.b16 %v3006
  %v3044 = vunpack.c.l.b16 %v3010
  %v3045 = vunpack.c.l.b16 %v3013
  %v3046 = vpack.c.b16 %v3015, %v3014
  %v3047 = vpack.c.b16 %v3017, %v3016
  %v3048 = vpack.c.b16 %v3019, %v3018
  %v3049 = vpack.c.b16 %v3021, %v3020
  %v3050 = vpack.c.b16 %v3023, %v3022
  %v3051 = vpack.c.b16 %v3025, %v3024
  %v3052 = vpack.c.b16 %v3027, %v3026
  %v3053 = vpack.c.b16 %v3029, %v3028
  %v3054 = vpack.c.b16 %v3031, %v3030
  %v3055 = vpack.c.b16 %v3033, %v3032
  %v3056 = vpack.c.b16 %v3035, %v3034
  %v3057 = vpack.c.b16 %v3037, %v3036
  %v3058 = vpack.c.b16 %v3039, %v3038
  %v3059 = vpack.c.b16 %v3041, %v3040
  %v3060 = vpack.c.b16 %v3043, %v3042
  %v3061 = vpack.c.b16 %v3045, %v3044
  %3062 = vrot.lane.b32.xlu0 %v3046, 64
  %v3063 = vpop.permute.xlu0 %3062
  %3064 = vrot.lane.b32.xlu0 %v3047, 64
  %v3065 = vpop.permute.xlu0 %3064
  %3066 = vrot.lane.b32.xlu0 %v3048, 64
  %v3067 = vpop.permute.xlu0 %3066
  %3068 = vrot.lane.b32.xlu0 %v3049, 64
  %v3069 = vpop.permute.xlu0 %3068
  %3070 = vrot.lane.b32.xlu0 %v3050, 64
  %v3071 = vpop.permute.xlu0 %3070
  %3072 = vrot.lane.b32.xlu0 %v3051, 64
  %v3073 = vpop.permute.xlu0 %3072
  %3074 = vrot.lane.b32.xlu0 %v3052, 64
  %v3075 = vpop.permute.xlu0 %3074
  %3076 = vrot.lane.b32.xlu0 %v3053, 64
  %v3077 = vpop.permute.xlu0 %3076
  %3078 = vrot.lane.b32.xlu0 %v3054, 64
  %v3079 = vpop.permute.xlu0 %3078
  %3080 = vrot.lane.b32.xlu0 %v3055, 64
  %v3081 = vpop.permute.xlu0 %3080
  %3082 = vrot.lane.b32.xlu0 %v3056, 64
  %v3083 = vpop.permute.xlu0 %3082
  %3084 = vrot.lane.b32.xlu0 %v3057, 64
  %v3085 = vpop.permute.xlu0 %3084
  %3086 = vrot.lane.b32.xlu0 %v3058, 64
  %v3087 = vpop.permute.xlu0 %3086
  %3088 = vrot.lane.b32.xlu0 %v3059, 64
  %v3089 = vpop.permute.xlu0 %3088
  %3090 = vrot.lane.b32.xlu0 %v3060, 64
  %v3091 = vpop.permute.xlu0 %3090
  %3092 = vrot.lane.b32.xlu0 %v3061, 64
  %v3093 = vpop.permute.xlu0 %3092
  %vm3110 = vcmask 589312
  %3111 = vst.msk [vmem:[#allocation2] sm:$0xff] %vm3110, %v3063
  %3112 = vst.msk [vmem:[#allocation2 + $0x8] sm:$0xff] %vm3110, %v3065
  %3113 = vst.msk [vmem:[#allocation2 + $0x10] sm:$0xff] %vm3110, %v3067
  %3114 = vst.msk [vmem:[#allocation2 + $0x18] sm:$0xff] %vm3110, %v3069
  %3115 = vst.msk [vmem:[#allocation2 + $0x20] sm:$0xff] %vm3110, %v3071
  %3116 = vst.msk [vmem:[#allocation2 + $0x28] sm:$0xff] %vm3110, %v3073
  %3117 = vst.msk [vmem:[#allocation2 + $0x30] sm:$0xff] %vm3110, %v3075
  %3118 = vst.msk [vmem:[#allocation2 + $0x38] sm:$0xff] %vm3110, %v3077
  %3119 = vst.msk [vmem:[#allocation2 + $0x40] sm:$0xff] %vm3110, %v3079
  %3120 = vst.msk [vmem:[#allocation2 + $0x48] sm:$0xff] %vm3110, %v3081
  %3121 = vst.msk [vmem:[#allocation2 + $0x50] sm:$0xff] %vm3110, %v3083
  %3122 = vst.msk [vmem:[#allocation2 + $0x58] sm:$0xff] %vm3110, %v3085
  %3123 = vst.msk [vmem:[#allocation2 + $0x60] sm:$0xff] %vm3110, %v3087
  %3124 = vst.msk [vmem:[#allocation2 + $0x68] sm:$0xff] %vm3110, %v3089
  %3125 = vst.msk [vmem:[#allocation2 + $0x70] sm:$0xff] %vm3110, %v3091
  %3126 = vst.msk [vmem:[#allocation2 + $0x78] sm:$0xff] %vm3110, %v3093
  %v3127 = vld [vmem:[#allocation2] sm:$0xff]
  %v3128 = vld [vmem:[#allocation2 + $0x8] sm:$0xff]
  %v3129 = vld [vmem:[#allocation2 + $0x10] sm:$0xff]
  %v3130 = vld [vmem:[#allocation2 + $0x18] sm:$0xff]
  %v3131 = vld [vmem:[#allocation2 + $0x20] sm:$0xff]
  %v3132 = vld [vmem:[#allocation2 + $0x28] sm:$0xff]
  %v3133 = vld [vmem:[#allocation2 + $0x30] sm:$0xff]
  %v3134 = vld [vmem:[#allocation2 + $0x38] sm:$0xff]
  %v3135 = vld [vmem:[#allocation2 + $0x40] sm:$0xff]
  %v3136 = vld [vmem:[#allocation2 + $0x48] sm:$0xff]
  %v3137 = vld [vmem:[#allocation2 + $0x50] sm:$0xff]
  %v3138 = vld [vmem:[#allocation2 + $0x58] sm:$0xff]
  %v3139 = vld [vmem:[#allocation2 + $0x60] sm:$0xff]
  %v3140 = vld [vmem:[#allocation2 + $0x68] sm:$0xff]
  %v3141 = vld [vmem:[#allocation2 + $0x70] sm:$0xff]
  %v3142 = vld [vmem:[#allocation2 + $0x78] sm:$0xff]
  %vm3143 = vcmask 588800
  %v3145 = vsel %vm3143, %v15, 0
  %v3148 = vsel %vm3143, %v3127, 0
  %v3151 = vsel %vm3143, %v3128, 0
  %v3154 = vsel %vm3143, %v3129, 0
  %v3157 = vsel %vm3143, %v3130, 0
  %v3160 = vsel %vm3143, %v3131, 0
  %v3163 = vsel %vm3143, %v3132, 0
  %v3166 = vsel %vm3143, %v3133, 0
  %v3169 = vsel %vm3143, %v3134, 0
  %v3172 = vsel %vm3143, %v3135, 0
  %v3175 = vsel %vm3143, %v3136, 0
  %v3178 = vsel %vm3143, %v3137, 0
  %v3181 = vsel %vm3143, %v3138, 0
  %v3184 = vsel %vm3143, %v3139, 0
  %v3187 = vsel %vm3143, %v3140, 0
  %v3190 = vsel %vm3143, %v3141, 0
  %v3193 = vsel %vm3143, %v3142, 0
  %3195 = vmatprep.subr.bf16.mxu0 0
  %3196 = vmatpush1.bf16.xpose.msra.mxu0 %v3148
  %3197 = vmatprep.subr.bf16.mxu0 0
  %3198 = vmatpush1.bf16.xpose.msra.mxu0 %v3151
  %3199 = vmatprep.subr.bf16.mxu0 0
  %3200 = vmatpush1.bf16.xpose.msra.mxu0 %v3154
  %3201 = vmatprep.subr.bf16.mxu0 0
  %3202 = vmatpush1.bf16.xpose.msra.mxu0 %v3157
  %3203 = vmatprep.subr.bf16.mxu0 0
  %3204 = vmatpush1.bf16.xpose.msra.mxu0 %v3160
  %3205 = vmatprep.subr.bf16.mxu0 0
  %3206 = vmatpush1.bf16.xpose.msra.mxu0 %v3163
  %3207 = vmatprep.subr.bf16.mxu0 0
  %3208 = vmatpush1.bf16.xpose.msra.mxu0 %v3166
  %3209 = vmatprep.subr.bf16.mxu0 0
  %3210 = vmatpush1.bf16.xpose.msra.mxu0 %v3169
  %3211 = vmatprep.subr.bf16.mxu0 0
  %3212 = vmatpush1.bf16.xpose.msra.mxu0 %v3172
  %3213 = vmatprep.subr.bf16.mxu0 0
  %3214 = vmatpush1.bf16.xpose.msra.mxu0 %v3175
  %3215 = vmatprep.subr.bf16.mxu0 0
  %3216 = vmatpush1.bf16.xpose.msra.mxu0 %v3178
  %3217 = vmatprep.subr.bf16.mxu0 0
  %3218 = vmatpush1.bf16.xpose.msra.mxu0 %v3181
  %3219 = vmatprep.subr.bf16.mxu0 0
  %3220 = vmatpush1.bf16.xpose.msra.mxu0 %v3184
  %3221 = vmatprep.subr.bf16.mxu0 0
  %3222 = vmatpush1.bf16.xpose.msra.mxu0 %v3187
  %3223 = vmatprep.subr.bf16.mxu0 0
  %3224 = vmatpush1.bf16.xpose.msra.mxu0 %v3190
  %3225 = vmatprep.subr.bf16.mxu0 0
  %3226 = vmatpush1.bf16.xpose.msra.mxu0 %v3193
  %3227 = vmatprep.mubr.bf16.mxu0 0
  %3228 = vmatmul.mubr.bf16.gmra.mrb[0].mxu0 %v3145
  %v3229 = vpop.f32.mrb[0].mxu0
  %v3230 = vadd.f32 %v20, %v3229
  %v3231 = vpop.f32.mrb[0].mxu0
  %v3232 = vadd.f32 %v20, %v3231
  %v3233 = vpop.f32.mrb[0].mxu0
  %v3234 = vpop.f32.mrb[0].mxu0
  %3235 = vdwg.mxu0
  %3236 = vst [vmem:[%s3] sm:$0xff] %v3230
  %3237 = vst [vmem:[%s3 + $0x8] sm:$0xff] %v3232
  %s3238 = scalar_lea.vmem %s0, 216
  %v3239 = vld [vmem:[%s3238] sm:$0xf]
  %v3240 = vld [vmem:[%s3238 + $0x4] sm:$0xf]
  %v3241 = vld [vmem:[%s3238 + $0xc] sm:$0xf]
  %v3242 = vld [vmem:[%s3238 + $0x10] sm:$0xf]
  %v3243 = vld [vmem:[%s3238 + $0x18] sm:$0xf]
  %v3244 = vld [vmem:[%s3238 + $0x1c] sm:$0xf]
  %v3245 = vld [vmem:[%s3238 + $0x24] sm:$0xf]
  %v3246 = vld [vmem:[%s3238 + $0x28] sm:$0xf]
  %v3247 = vld [vmem:[%s3238 + $0x30] sm:$0xf]
  %v3248 = vld [vmem:[%s3238 + $0x34] sm:$0xf]
  %v3249 = vld [vmem:[%s3238 + $0x3c] sm:$0xf]
  %v3250 = vld [vmem:[%s3238 + $0x40] sm:$0xf]
  %v3251 = vld [vmem:[%s3238 + $0x48] sm:$0xf]
  %v3252 = vld [vmem:[%s3238 + $0x4c] sm:$0xf]
  %v3253 = vld [vmem:[%s3238 + $0x54] sm:$0xf]
  %v3254 = vld [vmem:[%s3238 + $0x58] sm:$0xf]
  %v3255 = vld [vmem:[%s3238 + $0x60] sm:$0xf]
  %v3256 = vld [vmem:[%s3238 + $0x64] sm:$0xf]
  %v3257 = vld [vmem:[%s3238 + $0x6c] sm:$0xf]
  %v3258 = vld [vmem:[%s3238 + $0x70] sm:$0xf]
  %v3259 = vld [vmem:[%s3238 + $0x78] sm:$0xf]
  %v3260 = vld [vmem:[%s3238 + $0x7c] sm:$0xf]
  %v3261 = vld [vmem:[%s3238 + $0x84] sm:$0xf]
  %v3262 = vld [vmem:[%s3238 + $0x88] sm:$0xf]
  %v3263 = vld [vmem:[%s3238 + $0x90] sm:$0xf]
  %v3264 = vld [vmem:[%s3238 + $0x94] sm:$0xf]
  %v3265 = vld [vmem:[%s3238 + $0x9c] sm:$0xf]
  %v3266 = vld [vmem:[%s3238 + $0xa0] sm:$0xf]
  %v3267 = vld [vmem:[%s3238 + $0xa8] sm:$0xf]
  %v3268 = vld [vmem:[%s3238 + $0xac] sm:$0xf]
  %v3269 = vld [vmem:[%s3238 + $0xb4] sm:$0xf]
  %v3270 = vld [vmem:[%s3238 + $0xb8] sm:$0xf]
  %v3303 = vunpack.c.l.b16 %v3239
  %v3304 = vunpack.c.l.b16 %v3240
  %v3305 = vunpack.c.l.b16 %v3241
  %v3306 = vunpack.c.l.b16 %v3242
  %v3307 = vunpack.c.l.b16 %v3243
  %v3308 = vunpack.c.l.b16 %v3244
  %v3309 = vunpack.c.l.b16 %v3245
  %v3310 = vunpack.c.l.b16 %v3246
  %v3311 = vunpack.c.l.b16 %v3247
  %v3312 = vunpack.c.l.b16 %v3248
  %v3313 = vunpack.c.l.b16 %v3249
  %v3314 = vunpack.c.l.b16 %v3250
  %v3315 = vunpack.c.l.b16 %v3251
  %v3316 = vunpack.c.l.b16 %v3252
  %v3317 = vunpack.c.l.b16 %v3253
  %v3318 = vunpack.c.l.b16 %v3254
  %v3319 = vunpack.c.l.b16 %v3255
  %v3320 = vunpack.c.l.b16 %v3256
  %v3321 = vunpack.c.l.b16 %v3257
  %v3322 = vunpack.c.l.b16 %v3258
  %v3323 = vunpack.c.l.b16 %v3259
  %v3324 = vunpack.c.l.b16 %v3260
  %v3325 = vunpack.c.l.b16 %v3261
  %v3326 = vunpack.c.l.b16 %v3262
  %v3327 = vunpack.c.l.b16 %v3263
  %v3328 = vunpack.c.l.b16 %v3264
  %v3329 = vunpack.c.l.b16 %v3265
  %v3330 = vunpack.c.l.b16 %v3266
  %v3331 = vunpack.c.l.b16 %v3267
  %v3332 = vunpack.c.l.b16 %v3268
  %v3333 = vunpack.c.l.b16 %v3269
  %v3334 = vunpack.c.l.b16 %v3270
  %v3335 = vpack.c.b16 %v3304, %v3303
  %v3336 = vpack.c.b16 %v3306, %v3305
  %v3337 = vpack.c.b16 %v3308, %v3307
  %v3338 = vpack.c.b16 %v3310, %v3309
  %v3339 = vpack.c.b16 %v3312, %v3311
  %v3340 = vpack.c.b16 %v3314, %v3313
  %v3341 = vpack.c.b16 %v3316, %v3315
  %v3342 = vpack.c.b16 %v3318, %v3317
  %v3343 = vpack.c.b16 %v3320, %v3319
  %v3344 = vpack.c.b16 %v3322, %v3321
  %v3345 = vpack.c.b16 %v3324, %v3323
  %v3346 = vpack.c.b16 %v3326, %v3325
  %v3347 = vpack.c.b16 %v3328, %v3327
  %v3348 = vpack.c.b16 %v3330, %v3329
  %v3349 = vpack.c.b16 %v3332, %v3331
  %v3350 = vpack.c.b16 %v3334, %v3333
  %3367 = vst.msk [vmem:[#allocation2] sm:$0xff] %vm150, %v3335
  %3368 = vst.msk [vmem:[#allocation2 + $0x8] sm:$0xff] %vm150, %v3336
  %3369 = vst.msk [vmem:[#allocation2 + $0x10] sm:$0xff] %vm150, %v3337
  %3370 = vst.msk [vmem:[#allocation2 + $0x18] sm:$0xff] %vm150, %v3338
  %3371 = vst.msk [vmem:[#allocation2 + $0x20] sm:$0xff] %vm150, %v3339
  %3372 = vst.msk [vmem:[#allocation2 + $0x28] sm:$0xff] %vm150, %v3340
  %3373 = vst.msk [vmem:[#allocation2 + $0x30] sm:$0xff] %vm150, %v3341
  %3374 = vst.msk [vmem:[#allocation2 + $0x38] sm:$0xff] %vm150, %v3342
  %3375 = vst.msk [vmem:[#allocation2 + $0x40] sm:$0xff] %vm150, %v3343
  %3376 = vst.msk [vmem:[#allocation2 + $0x48] sm:$0xff] %vm150, %v3344
  %3377 = vst.msk [vmem:[#allocation2 + $0x50] sm:$0xff] %vm150, %v3345
  %3378 = vst.msk [vmem:[#allocation2 + $0x58] sm:$0xff] %vm150, %v3346
  %3379 = vst.msk [vmem:[#allocation2 + $0x60] sm:$0xff] %vm150, %v3347
  %3380 = vst.msk [vmem:[#allocation2 + $0x68] sm:$0xff] %vm150, %v3348
  %3381 = vst.msk [vmem:[#allocation2 + $0x70] sm:$0xff] %vm150, %v3349
  %3382 = vst.msk [vmem:[#allocation2 + $0x78] sm:$0xff] %vm150, %v3350
  %v3383 = vld [vmem:[%s3238] sm:$0xf]
  %v3384 = vld [vmem:[%s3238 + $0x4] sm:$0xf]
  %v3385 = vld [vmem:[%s3238 + $0x8] sm:$0x1]
  %v3386 = vld [vmem:[%s3238 + $0xc] sm:$0xf]
  %v3387 = vld [vmem:[%s3238 + $0x10] sm:$0xf]
  %v3388 = vld [vmem:[%s3238 + $0x14] sm:$0x1]
  %v3389 = vld [vmem:[%s3238 + $0x18] sm:$0xf]
  %v3390 = vld [vmem:[%s3238 + $0x1c] sm:$0xf]
  %v3391 = vld [vmem:[%s3238 + $0x20] sm:$0x1]
  %v3392 = vld [vmem:[%s3238 + $0x24] sm:$0xf]
  %v3393 = vld [vmem:[%s3238 + $0x28] sm:$0xf]
  %v3394 = vld [vmem:[%s3238 + $0x2c] sm:$0x1]
  %v3395 = vld [vmem:[%s3238 + $0x30] sm:$0xf]
  %v3396 = vld [vmem:[%s3238 + $0x34] sm:$0xf]
  %v3397 = vld [vmem:[%s3238 + $0x38] sm:$0x1]
  %v3398 = vld [vmem:[%s3238 + $0x3c] sm:$0xf]
  %v3399 = vld [vmem:[%s3238 + $0x40] sm:$0xf]
  %v3400 = vld [vmem:[%s3238 + $0x44] sm:$0x1]
  %v3401 = vld [vmem:[%s3238 + $0x48] sm:$0xf]
  %v3402 = vld [vmem:[%s3238 + $0x4c] sm:$0xf]
  %v3403 = vld [vmem:[%s3238 + $0x50] sm:$0x1]
  %v3404 = vld [vmem:[%s3238 + $0x54] sm:$0xf]
  %v3405 = vld [vmem:[%s3238 + $0x58] sm:$0xf]
  %v3406 = vld [vmem:[%s3238 + $0x5c] sm:$0x1]
  %v3407 = vld [vmem:[%s3238 + $0x60] sm:$0xf]
  %v3408 = vld [vmem:[%s3238 + $0x64] sm:$0xf]
  %v3409 = vld [vmem:[%s3238 + $0x68] sm:$0x1]
  %v3410 = vld [vmem:[%s3238 + $0x6c] sm:$0xf]
  %v3411 = vld [vmem:[%s3238 + $0x70] sm:$0xf]
  %v3412 = vld [vmem:[%s3238 + $0x74] sm:$0x1]
  %v3413 = vld [vmem:[%s3238 + $0x78] sm:$0xf]
  %v3414 = vld [vmem:[%s3238 + $0x7c] sm:$0xf]
  %v3415 = vld [vmem:[%s3238 + $0x80] sm:$0x1]
  %v3416 = vld [vmem:[%s3238 + $0x84] sm:$0xf]
  %v3417 = vld [vmem:[%s3238 + $0x88] sm:$0xf]
  %v3418 = vld [vmem:[%s3238 + $0x8c] sm:$0x1]
  %v3419 = vld [vmem:[%s3238 + $0x90] sm:$0xf]
  %v3420 = vld [vmem:[%s3238 + $0x94] sm:$0xf]
  %v3421 = vld [vmem:[%s3238 + $0x98] sm:$0x1]
  %v3422 = vld [vmem:[%s3238 + $0x9c] sm:$0xf]
  %v3423 = vld [vmem:[%s3238 + $0xa0] sm:$0xf]
  %v3424 = vld [vmem:[%s3238 + $0xa4] sm:$0x1]
  %v3425 = vld [vmem:[%s3238 + $0xa8] sm:$0xf]
  %v3426 = vld [vmem:[%s3238 + $0xac] sm:$0xf]
  %v3427 = vld [vmem:[%s3238 + $0xb0] sm:$0x1]
  %v3428 = vld [vmem:[%s3238 + $0xb4] sm:$0xf]
  %v3429 = vld [vmem:[%s3238 + $0xb8] sm:$0xf]
  %v3430 = vld [vmem:[%s3238 + $0xbc] sm:$0x1]
  %v3432 = vshrl.u32 %v3383, 16
  %v3434 = vrot.slane %v3432, 4
  %v3435 = vshll.u32 %v3383, 16
  %v3437 = vrot.slane %v3435, 5
  %v3438 = vor.u32 %v3434, %v3437
  %v3439 = vrot.slane %v3438, 4
  %v3441 = vshll.u32 %v3384, 16
  %v3443 = vrot.slane %v3441, 5
  %v3444 = vsel %vm217, %v3439, %v3443
  %v3445 = vshrl.u32 %v3384, 16
  %v3447 = vrot.slane %v3445, 4
  %v3448 = vor.u32 %v3447, %v3443
  %v3449 = vrot.slane %v3448, 4
  %v3451 = vshll.u32 %v3385, 16
  %v3453 = vrot.slane %v3451, 5
  %v3454 = vsel %vm217, %v3449, %v3453
  %v3456 = vshrl.u32 %v3386, 16
  %v3458 = vrot.slane %v3456, 4
  %v3459 = vshll.u32 %v3386, 16
  %v3461 = vrot.slane %v3459, 5
  %v3462 = vor.u32 %v3458, %v3461
  %v3463 = vrot.slane %v3462, 4
  %v3465 = vshll.u32 %v3387, 16
  %v3467 = vrot.slane %v3465, 5
  %v3468 = vsel %vm217, %v3463, %v3467
  %v3469 = vshrl.u32 %v3387, 16
  %v3471 = vrot.slane %v3469, 4
  %v3472 = vor.u32 %v3471, %v3467
  %v3473 = vrot.slane %v3472, 4
  %v3475 = vshll.u32 %v3388, 16
  %v3477 = vrot.slane %v3475, 5
  %v3478 = vsel %vm217, %v3473, %v3477
  %v3480 = vshrl.u32 %v3389, 16
  %v3482 = vrot.slane %v3480, 4
  %v3483 = vshll.u32 %v3389, 16
  %v3485 = vrot.slane %v3483, 5
  %v3486 = vor.u32 %v3482, %v3485
  %v3487 = vrot.slane %v3486, 4
  %v3489 = vshll.u32 %v3390, 16
  %v3491 = vrot.slane %v3489, 5
  %v3492 = vsel %vm217, %v3487, %v3491
  %v3493 = vshrl.u32 %v3390, 16
  %v3495 = vrot.slane %v3493, 4
  %v3496 = vor.u32 %v3495, %v3491
  %v3497 = vrot.slane %v3496, 4
  %v3499 = vshll.u32 %v3391, 16
  %v3501 = vrot.slane %v3499, 5
  %v3502 = vsel %vm217, %v3497, %v3501
  %v3504 = vshrl.u32 %v3392, 16
  %v3506 = vrot.slane %v3504, 4
  %v3507 = vshll.u32 %v3392, 16
  %v3509 = vrot.slane %v3507, 5
  %v3510 = vor.u32 %v3506, %v3509
  %v3511 = vrot.slane %v3510, 4
  %v3513 = vshll.u32 %v3393, 16
  %v3515 = vrot.slane %v3513, 5
  %v3516 = vsel %vm217, %v3511, %v3515
  %v3517 = vshrl.u32 %v3393, 16
  %v3519 = vrot.slane %v3517, 4
  %v3520 = vor.u32 %v3519, %v3515
  %v3521 = vrot.slane %v3520, 4
  %v3523 = vshll.u32 %v3394, 16
  %v3525 = vrot.slane %v3523, 5
  %v3526 = vsel %vm217, %v3521, %v3525
  %v3528 = vshrl.u32 %v3395, 16
  %v3530 = vrot.slane %v3528, 4
  %v3531 = vshll.u32 %v3395, 16
  %v3533 = vrot.slane %v3531, 5
  %v3534 = vor.u32 %v3530, %v3533
  %v3535 = vrot.slane %v3534, 4
  %v3537 = vshll.u32 %v3396, 16
  %v3539 = vrot.slane %v3537, 5
  %v3540 = vsel %vm217, %v3535, %v3539
  %v3541 = vshrl.u32 %v3396, 16
  %v3543 = vrot.slane %v3541, 4
  %v3544 = vor.u32 %v3543, %v3539
  %v3545 = vrot.slane %v3544, 4
  %v3547 = vshll.u32 %v3397, 16
  %v3549 = vrot.slane %v3547, 5
  %v3550 = vsel %vm217, %v3545, %v3549
  %v3552 = vshrl.u32 %v3398, 16
  %v3554 = vrot.slane %v3552, 4
  %v3555 = vshll.u32 %v3398, 16
  %v3557 = vrot.slane %v3555, 5
  %v3558 = vor.u32 %v3554, %v3557
  %v3559 = vrot.slane %v3558, 4
  %v3561 = vshll.u32 %v3399, 16
  %v3563 = vrot.slane %v3561, 5
  %v3564 = vsel %vm217, %v3559, %v3563
  %v3565 = vshrl.u32 %v3399, 16
  %v3567 = vrot.slane %v3565, 4
  %v3568 = vor.u32 %v3567, %v3563
  %v3569 = vrot.slane %v3568, 4
  %v3571 = vshll.u32 %v3400, 16
  %v3573 = vrot.slane %v3571, 5
  %v3574 = vsel %vm217, %v3569, %v3573
  %v3576 = vshrl.u32 %v3401, 16
  %v3578 = vrot.slane %v3576, 4
  %v3579 = vshll.u32 %v3401, 16
  %v3581 = vrot.slane %v3579, 5
  %v3582 = vor.u32 %v3578, %v3581
  %v3583 = vrot.slane %v3582, 4
  %v3585 = vshll.u32 %v3402, 16
  %v3587 = vrot.slane %v3585, 5
  %v3588 = vsel %vm217, %v3583, %v3587
  %v3589 = vshrl.u32 %v3402, 16
  %v3591 = vrot.slane %v3589, 4
  %v3592 = vor.u32 %v3591, %v3587
  %v3593 = vrot.slane %v3592, 4
  %v3595 = vshll.u32 %v3403, 16
  %v3597 = vrot.slane %v3595, 5
  %v3598 = vsel %vm217, %v3593, %v3597
  %v3600 = vshrl.u32 %v3404, 16
  %v3602 = vrot.slane %v3600, 4
  %v3603 = vshll.u32 %v3404, 16
  %v3605 = vrot.slane %v3603, 5
  %v3606 = vor.u32 %v3602, %v3605
  %v3607 = vrot.slane %v3606, 4
  %v3609 = vshll.u32 %v3405, 16
  %v3611 = vrot.slane %v3609, 5
  %v3612 = vsel %vm217, %v3607, %v3611
  %v3613 = vshrl.u32 %v3405, 16
  %v3615 = vrot.slane %v3613, 4
  %v3616 = vor.u32 %v3615, %v3611
  %v3617 = vrot.slane %v3616, 4
  %v3619 = vshll.u32 %v3406, 16
  %v3621 = vrot.slane %v3619, 5
  %v3622 = vsel %vm217, %v3617, %v3621
  %v3624 = vshrl.u32 %v3407, 16
  %v3626 = vrot.slane %v3624, 4
  %v3627 = vshll.u32 %v3407, 16
  %v3629 = vrot.slane %v3627, 5
  %v3630 = vor.u32 %v3626, %v3629
  %v3631 = vrot.slane %v3630, 4
  %v3633 = vshll.u32 %v3408, 16
  %v3635 = vrot.slane %v3633, 5
  %v3636 = vsel %vm217, %v3631, %v3635
  %v3637 = vshrl.u32 %v3408, 16
  %v3639 = vrot.slane %v3637, 4
  %v3640 = vor.u32 %v3639, %v3635
  %v3641 = vrot.slane %v3640, 4
  %v3643 = vshll.u32 %v3409, 16
  %v3645 = vrot.slane %v3643, 5
  %v3646 = vsel %vm217, %v3641, %v3645
  %v3648 = vshrl.u32 %v3410, 16
  %v3650 = vrot.slane %v3648, 4
  %v3651 = vshll.u32 %v3410, 16
  %v3653 = vrot.slane %v3651, 5
  %v3654 = vor.u32 %v3650, %v3653
  %v3655 = vrot.slane %v3654, 4
  %v3657 = vshll.u32 %v3411, 16
  %v3659 = vrot.slane %v3657, 5
  %v3660 = vsel %vm217, %v3655, %v3659
  %v3661 = vshrl.u32 %v3411, 16
  %v3663 = vrot.slane %v3661, 4
  %v3664 = vor.u32 %v3663, %v3659
  %v3665 = vrot.slane %v3664, 4
  %v3667 = vshll.u32 %v3412, 16
  %v3669 = vrot.slane %v3667, 5
  %v3670 = vsel %vm217, %v3665, %v3669
  %v3672 = vshrl.u32 %v3413, 16
  %v3674 = vrot.slane %v3672, 4
  %v3675 = vshll.u32 %v3413, 16
  %v3677 = vrot.slane %v3675, 5
  %v3678 = vor.u32 %v3674, %v3677
  %v3679 = vrot.slane %v3678, 4
  %v3681 = vshll.u32 %v3414, 16
  %v3683 = vrot.slane %v3681, 5
  %v3684 = vsel %vm217, %v3679, %v3683
  %v3685 = vshrl.u32 %v3414, 16
  %v3687 = vrot.slane %v3685, 4
  %v3688 = vor.u32 %v3687, %v3683
  %v3689 = vrot.slane %v3688, 4
  %v3691 = vshll.u32 %v3415, 16
  %v3693 = vrot.slane %v3691, 5
  %v3694 = vsel %vm217, %v3689, %v3693
  %v3696 = vshrl.u32 %v3416, 16
  %v3698 = vrot.slane %v3696, 4
  %v3699 = vshll.u32 %v3416, 16
  %v3701 = vrot.slane %v3699, 5
  %v3702 = vor.u32 %v3698, %v3701
  %v3703 = vrot.slane %v3702, 4
  %v3705 = vshll.u32 %v3417, 16
  %v3707 = vrot.slane %v3705, 5
  %v3708 = vsel %vm217, %v3703, %v3707
  %v3709 = vshrl.u32 %v3417, 16
  %v3711 = vrot.slane %v3709, 4
  %v3712 = vor.u32 %v3711, %v3707
  %v3713 = vrot.slane %v3712, 4
  %v3715 = vshll.u32 %v3418, 16
  %v3717 = vrot.slane %v3715, 5
  %v3718 = vsel %vm217, %v3713, %v3717
  %v3720 = vshrl.u32 %v3419, 16
  %v3722 = vrot.slane %v3720, 4
  %v3723 = vshll.u32 %v3419, 16
  %v3725 = vrot.slane %v3723, 5
  %v3726 = vor.u32 %v3722, %v3725
  %v3727 = vrot.slane %v3726, 4
  %v3729 = vshll.u32 %v3420, 16
  %v3731 = vrot.slane %v3729, 5
  %v3732 = vsel %vm217, %v3727, %v3731
  %v3733 = vshrl.u32 %v3420, 16
  %v3735 = vrot.slane %v3733, 4
  %v3736 = vor.u32 %v3735, %v3731
  %v3737 = vrot.slane %v3736, 4
  %v3739 = vshll.u32 %v3421, 16
  %v3741 = vrot.slane %v3739, 5
  %v3742 = vsel %vm217, %v3737, %v3741
  %v3744 = vshrl.u32 %v3422, 16
  %v3746 = vrot.slane %v3744, 4
  %v3747 = vshll.u32 %v3422, 16
  %v3749 = vrot.slane %v3747, 5
  %v3750 = vor.u32 %v3746, %v3749
  %v3751 = vrot.slane %v3750, 4
  %v3753 = vshll.u32 %v3423, 16
  %v3755 = vrot.slane %v3753, 5
  %v3756 = vsel %vm217, %v3751, %v3755
  %v3757 = vshrl.u32 %v3423, 16
  %v3759 = vrot.slane %v3757, 4
  %v3760 = vor.u32 %v3759, %v3755
  %v3761 = vrot.slane %v3760, 4
  %v3763 = vshll.u32 %v3424, 16
  %v3765 = vrot.slane %v3763, 5
  %v3766 = vsel %vm217, %v3761, %v3765
  %v3768 = vshrl.u32 %v3425, 16
  %v3770 = vrot.slane %v3768, 4
  %v3771 = vshll.u32 %v3425, 16
  %v3773 = vrot.slane %v3771, 5
  %v3774 = vor.u32 %v3770, %v3773
  %v3775 = vrot.slane %v3774, 4
  %v3777 = vshll.u32 %v3426, 16
  %v3779 = vrot.slane %v3777, 5
  %v3780 = vsel %vm217, %v3775, %v3779
  %v3781 = vshrl.u32 %v3426, 16
  %v3783 = vrot.slane %v3781, 4
  %v3784 = vor.u32 %v3783, %v3779
  %v3785 = vrot.slane %v3784, 4
  %v3787 = vshll.u32 %v3427, 16
  %v3789 = vrot.slane %v3787, 5
  %v3790 = vsel %vm217, %v3785, %v3789
  %v3792 = vshrl.u32 %v3428, 16
  %v3794 = vrot.slane %v3792, 4
  %v3795 = vshll.u32 %v3428, 16
  %v3797 = vrot.slane %v3795, 5
  %v3798 = vor.u32 %v3794, %v3797
  %v3799 = vrot.slane %v3798, 4
  %v3801 = vshll.u32 %v3429, 16
  %v3803 = vrot.slane %v3801, 5
  %v3804 = vsel %vm217, %v3799, %v3803
  %v3805 = vshrl.u32 %v3429, 16
  %v3807 = vrot.slane %v3805, 4
  %v3808 = vor.u32 %v3807, %v3803
  %v3809 = vrot.slane %v3808, 4
  %v3811 = vshll.u32 %v3430, 16
  %v3813 = vrot.slane %v3811, 5
  %v3814 = vsel %vm217, %v3809, %v3813
  %v3815 = vunpack.c.l.b16 %v3444
  %v3816 = vunpack.c.l.b16 %v3454
  %v3817 = vunpack.c.l.b16 %v3468
  %v3818 = vunpack.c.l.b16 %v3478
  %v3819 = vunpack.c.l.b16 %v3492
  %v3820 = vunpack.c.l.b16 %v3502
  %v3821 = vunpack.c.l.b16 %v3516
  %v3822 = vunpack.c.l.b16 %v3526
  %v3823 = vunpack.c.l.b16 %v3540
  %v3824 = vunpack.c.l.b16 %v3550
  %v3825 = vunpack.c.l.b16 %v3564
  %v3826 = vunpack.c.l.b16 %v3574
  %v3827 = vunpack.c.l.b16 %v3588
  %v3828 = vunpack.c.l.b16 %v3598
  %v3829 = vunpack.c.l.b16 %v3612
  %v3830 = vunpack.c.l.b16 %v3622
  %v3831 = vunpack.c.l.b16 %v3636
  %v3832 = vunpack.c.l.b16 %v3646
  %v3833 = vunpack.c.l.b16 %v3660
  %v3834 = vunpack.c.l.b16 %v3670
  %v3835 = vunpack.c.l.b16 %v3684
  %v3836 = vunpack.c.l.b16 %v3694
  %v3837 = vunpack.c.l.b16 %v3708
  %v3838 = vunpack.c.l.b16 %v3718
  %v3839 = vunpack.c.l.b16 %v3732
  %v3840 = vunpack.c.l.b16 %v3742
  %v3841 = vunpack.c.l.b16 %v3756
  %v3842 = vunpack.c.l.b16 %v3766
  %v3843 = vunpack.c.l.b16 %v3780
  %v3844 = vunpack.c.l.b16 %v3790
  %v3845 = vunpack.c.l.b16 %v3804
  %v3846 = vunpack.c.l.b16 %v3814
  %v3847 = vpack.c.b16 %v3816, %v3815
  %v3848 = vpack.c.b16 %v3818, %v3817
  %v3849 = vpack.c.b16 %v3820, %v3819
  %v3850 = vpack.c.b16 %v3822, %v3821
  %v3851 = vpack.c.b16 %v3824, %v3823
  %v3852 = vpack.c.b16 %v3826, %v3825
  %v3853 = vpack.c.b16 %v3828, %v3827
  %v3854 = vpack.c.b16 %v3830, %v3829
  %v3855 = vpack.c.b16 %v3832, %v3831
  %v3856 = vpack.c.b16 %v3834, %v3833
  %v3857 = vpack.c.b16 %v3836, %v3835
  %v3858 = vpack.c.b16 %v3838, %v3837
  %v3859 = vpack.c.b16 %v3840, %v3839
  %v3860 = vpack.c.b16 %v3842, %v3841
  %v3861 = vpack.c.b16 %v3844, %v3843
  %v3862 = vpack.c.b16 %v3846, %v3845
  %3863 = vrot.lane.b32.xlu0 %v3847, 8
  %v3864 = vpop.permute.xlu0 %3863
  %3865 = vrot.lane.b32.xlu0 %v3848, 8
  %v3866 = vpop.permute.xlu0 %3865
  %3867 = vrot.lane.b32.xlu0 %v3849, 8
  %v3868 = vpop.permute.xlu0 %3867
  %3869 = vrot.lane.b32.xlu0 %v3850, 8
  %v3870 = vpop.permute.xlu0 %3869
  %3871 = vrot.lane.b32.xlu0 %v3851, 8
  %v3872 = vpop.permute.xlu0 %3871
  %3873 = vrot.lane.b32.xlu0 %v3852, 8
  %v3874 = vpop.permute.xlu0 %3873
  %3875 = vrot.lane.b32.xlu0 %v3853, 8
  %v3876 = vpop.permute.xlu0 %3875
  %3877 = vrot.lane.b32.xlu0 %v3854, 8
  %v3878 = vpop.permute.xlu0 %3877
  %3879 = vrot.lane.b32.xlu0 %v3855, 8
  %v3880 = vpop.permute.xlu0 %3879
  %3881 = vrot.lane.b32.xlu0 %v3856, 8
  %v3882 = vpop.permute.xlu0 %3881
  %3883 = vrot.lane.b32.xlu0 %v3857, 8
  %v3884 = vpop.permute.xlu0 %3883
  %3885 = vrot.lane.b32.xlu0 %v3858, 8
  %v3886 = vpop.permute.xlu0 %3885
  %3887 = vrot.lane.b32.xlu0 %v3859, 8
  %v3888 = vpop.permute.xlu0 %3887
  %3889 = vrot.lane.b32.xlu0 %v3860, 8
  %v3890 = vpop.permute.xlu0 %3889
  %3891 = vrot.lane.b32.xlu0 %v3861, 8
  %v3892 = vpop.permute.xlu0 %3891
  %3893 = vrot.lane.b32.xlu0 %v3862, 8
  %v3894 = vpop.permute.xlu0 %3893
  %3911 = vst.msk [vmem:[#allocation2] sm:$0xff] %vm698, %v3864
  %3912 = vst.msk [vmem:[#allocation2 + $0x8] sm:$0xff] %vm698, %v3866
  %3913 = vst.msk [vmem:[#allocation2 + $0x10] sm:$0xff] %vm698, %v3868
  %3914 = vst.msk [vmem:[#allocation2 + $0x18] sm:$0xff] %vm698, %v3870
  %3915 = vst.msk [vmem:[#allocation2 + $0x20] sm:$0xff] %vm698, %v3872
  %3916 = vst.msk [vmem:[#allocation2 + $0x28] sm:$0xff] %vm698, %v3874
  %3917 = vst.msk [vmem:[#allocation2 + $0x30] sm:$0xff] %vm698, %v3876
  %3918 = vst.msk [vmem:[#allocation2 + $0x38] sm:$0xff] %vm698, %v3878
  %3919 = vst.msk [vmem:[#allocation2 + $0x40] sm:$0xff] %vm698, %v3880
  %3920 = vst.msk [vmem:[#allocation2 + $0x48] sm:$0xff] %vm698, %v3882
  %3921 = vst.msk [vmem:[#allocation2 + $0x50] sm:$0xff] %vm698, %v3884
  %3922 = vst.msk [vmem:[#allocation2 + $0x58] sm:$0xff] %vm698, %v3886
  %3923 = vst.msk [vmem:[#allocation2 + $0x60] sm:$0xff] %vm698, %v3888
  %3924 = vst.msk [vmem:[#allocation2 + $0x68] sm:$0xff] %vm698, %v3890
  %3925 = vst.msk [vmem:[#allocation2 + $0x70] sm:$0xff] %vm698, %v3892
  %3926 = vst.msk [vmem:[#allocation2 + $0x78] sm:$0xff] %vm698, %v3894
  %v3927 = vld [vmem:[%s3238] sm:$0xe]
  %v3928 = vld [vmem:[%s3238 + $0x4] sm:$0xf]
  %v3929 = vld [vmem:[%s3238 + $0x8] sm:$0x1]
  %v3930 = vld [vmem:[%s3238 + $0xc] sm:$0xe]
  %v3931 = vld [vmem:[%s3238 + $0x10] sm:$0xf]
  %v3932 = vld [vmem:[%s3238 + $0x14] sm:$0x1]
  %v3933 = vld [vmem:[%s3238 + $0x18] sm:$0xe]
  %v3934 = vld [vmem:[%s3238 + $0x1c] sm:$0xf]
  %v3935 = vld [vmem:[%s3238 + $0x20] sm:$0x1]
  %v3936 = vld [vmem:[%s3238 + $0x24] sm:$0xe]
  %v3937 = vld [vmem:[%s3238 + $0x28] sm:$0xf]
  %v3938 = vld [vmem:[%s3238 + $0x2c] sm:$0x1]
  %v3939 = vld [vmem:[%s3238 + $0x30] sm:$0xe]
  %v3940 = vld [vmem:[%s3238 + $0x34] sm:$0xf]
  %v3941 = vld [vmem:[%s3238 + $0x38] sm:$0x1]
  %v3942 = vld [vmem:[%s3238 + $0x3c] sm:$0xe]
  %v3943 = vld [vmem:[%s3238 + $0x40] sm:$0xf]
  %v3944 = vld [vmem:[%s3238 + $0x44] sm:$0x1]
  %v3945 = vld [vmem:[%s3238 + $0x48] sm:$0xe]
  %v3946 = vld [vmem:[%s3238 + $0x4c] sm:$0xf]
  %v3947 = vld [vmem:[%s3238 + $0x50] sm:$0x1]
  %v3948 = vld [vmem:[%s3238 + $0x54] sm:$0xe]
  %v3949 = vld [vmem:[%s3238 + $0x58] sm:$0xf]
  %v3950 = vld [vmem:[%s3238 + $0x5c] sm:$0x1]
  %v3951 = vld [vmem:[%s3238 + $0x60] sm:$0xe]
  %v3952 = vld [vmem:[%s3238 + $0x64] sm:$0xf]
  %v3953 = vld [vmem:[%s3238 + $0x68] sm:$0x1]
  %v3954 = vld [vmem:[%s3238 + $0x6c] sm:$0xe]
  %v3955 = vld [vmem:[%s3238 + $0x70] sm:$0xf]
  %v3956 = vld [vmem:[%s3238 + $0x74] sm:$0x1]
  %v3957 = vld [vmem:[%s3238 + $0x78] sm:$0xe]
  %v3958 = vld [vmem:[%s3238 + $0x7c] sm:$0xf]
  %v3959 = vld [vmem:[%s3238 + $0x80] sm:$0x1]
  %v3960 = vld [vmem:[%s3238 + $0x84] sm:$0xe]
  %v3961 = vld [vmem:[%s3238 + $0x88] sm:$0xf]
  %v3962 = vld [vmem:[%s3238 + $0x8c] sm:$0x1]
  %v3963 = vld [vmem:[%s3238 + $0x90] sm:$0xe]
  %v3964 = vld [vmem:[%s3238 + $0x94] sm:$0xf]
  %v3965 = vld [vmem:[%s3238 + $0x98] sm:$0x1]
  %v3966 = vld [vmem:[%s3238 + $0x9c] sm:$0xe]
  %v3967 = vld [vmem:[%s3238 + $0xa0] sm:$0xf]
  %v3968 = vld [vmem:[%s3238 + $0xa4] sm:$0x1]
  %v3969 = vld [vmem:[%s3238 + $0xa8] sm:$0xe]
  %v3970 = vld [vmem:[%s3238 + $0xac] sm:$0xf]
  %v3971 = vld [vmem:[%s3238 + $0xb0] sm:$0x1]
  %v3972 = vld [vmem:[%s3238 + $0xb4] sm:$0xe]
  %v3973 = vld [vmem:[%s3238 + $0xb8] sm:$0xf]
  %v3974 = vld [vmem:[%s3238 + $0xbc] sm:$0x1]
  %v4023 = vrot.slane %v3927, 5
  %v4024 = vrot.slane %v4023, 4
  %v4025 = vrot.slane %v3928, 5
  %v4026 = vsel %vm813, %v4024, %v4025
  %v4027 = vrot.slane %v4025, 4
  %v4028 = vrot.slane %v3929, 5
  %v4029 = vsel %vm813, %v4027, %v4028
  %v4030 = vrot.slane %v3930, 5
  %v4031 = vrot.slane %v4030, 4
  %v4032 = vrot.slane %v3931, 5
  %v4033 = vsel %vm813, %v4031, %v4032
  %v4034 = vrot.slane %v4032, 4
  %v4035 = vrot.slane %v3932, 5
  %v4036 = vsel %vm813, %v4034, %v4035
  %v4037 = vrot.slane %v3933, 5
  %v4038 = vrot.slane %v4037, 4
  %v4039 = vrot.slane %v3934, 5
  %v4040 = vsel %vm813, %v4038, %v4039
  %v4041 = vrot.slane %v4039, 4
  %v4042 = vrot.slane %v3935, 5
  %v4043 = vsel %vm813, %v4041, %v4042
  %v4044 = vrot.slane %v3936, 5
  %v4045 = vrot.slane %v4044, 4
  %v4046 = vrot.slane %v3937, 5
  %v4047 = vsel %vm813, %v4045, %v4046
  %v4048 = vrot.slane %v4046, 4
  %v4049 = vrot.slane %v3938, 5
  %v4050 = vsel %vm813, %v4048, %v4049
  %v4051 = vrot.slane %v3939, 5
  %v4052 = vrot.slane %v4051, 4
  %v4053 = vrot.slane %v3940, 5
  %v4054 = vsel %vm813, %v4052, %v4053
  %v4055 = vrot.slane %v4053, 4
  %v4056 = vrot.slane %v3941, 5
  %v4057 = vsel %vm813, %v4055, %v4056
  %v4058 = vrot.slane %v3942, 5
  %v4059 = vrot.slane %v4058, 4
  %v4060 = vrot.slane %v3943, 5
  %v4061 = vsel %vm813, %v4059, %v4060
  %v4062 = vrot.slane %v4060, 4
  %v4063 = vrot.slane %v3944, 5
  %v4064 = vsel %vm813, %v4062, %v4063
  %v4065 = vrot.slane %v3945, 5
  %v4066 = vrot.slane %v4065, 4
  %v4067 = vrot.slane %v3946, 5
  %v4068 = vsel %vm813, %v4066, %v4067
  %v4069 = vrot.slane %v4067, 4
  %v4070 = vrot.slane %v3947, 5
  %v4071 = vsel %vm813, %v4069, %v4070
  %v4072 = vrot.slane %v3948, 5
  %v4073 = vrot.slane %v4072, 4
  %v4074 = vrot.slane %v3949, 5
  %v4075 = vsel %vm813, %v4073, %v4074
  %v4076 = vrot.slane %v4074, 4
  %v4077 = vrot.slane %v3950, 5
  %v4078 = vsel %vm813, %v4076, %v4077
  %v4079 = vrot.slane %v3951, 5
  %v4080 = vrot.slane %v4079, 4
  %v4081 = vrot.slane %v3952, 5
  %v4082 = vsel %vm813, %v4080, %v4081
  %v4083 = vrot.slane %v4081, 4
  %v4084 = vrot.slane %v3953, 5
  %v4085 = vsel %vm813, %v4083, %v4084
  %v4086 = vrot.slane %v3954, 5
  %v4087 = vrot.slane %v4086, 4
  %v4088 = vrot.slane %v3955, 5
  %v4089 = vsel %vm813, %v4087, %v4088
  %v4090 = vrot.slane %v4088, 4
  %v4091 = vrot.slane %v3956, 5
  %v4092 = vsel %vm813, %v4090, %v4091
  %v4093 = vrot.slane %v3957, 5
  %v4094 = vrot.slane %v4093, 4
  %v4095 = vrot.slane %v3958, 5
  %v4096 = vsel %vm813, %v4094, %v4095
  %v4097 = vrot.slane %v4095, 4
  %v4098 = vrot.slane %v3959, 5
  %v4099 = vsel %vm813, %v4097, %v4098
  %v4100 = vrot.slane %v3960, 5
  %v4101 = vrot.slane %v4100, 4
  %v4102 = vrot.slane %v3961, 5
  %v4103 = vsel %vm813, %v4101, %v4102
  %v4104 = vrot.slane %v4102, 4
  %v4105 = vrot.slane %v3962, 5
  %v4106 = vsel %vm813, %v4104, %v4105
  %v4107 = vrot.slane %v3963, 5
  %v4108 = vrot.slane %v4107, 4
  %v4109 = vrot.slane %v3964, 5
  %v4110 = vsel %vm813, %v4108, %v4109
  %v4111 = vrot.slane %v4109, 4
  %v4112 = vrot.slane %v3965, 5
  %v4113 = vsel %vm813, %v4111, %v4112
  %v4114 = vrot.slane %v3966, 5
  %v4115 = vrot.slane %v4114, 4
  %v4116 = vrot.slane %v3967, 5
  %v4117 = vsel %vm813, %v4115, %v4116
  %v4118 = vrot.slane %v4116, 4
  %v4119 = vrot.slane %v3968, 5
  %v4120 = vsel %vm813, %v4118, %v4119
  %v4121 = vrot.slane %v3969, 5
  %v4122 = vrot.slane %v4121, 4
  %v4123 = vrot.slane %v3970, 5
  %v4124 = vsel %vm813, %v4122, %v4123
  %v4125 = vrot.slane %v4123, 4
  %v4126 = vrot.slane %v3971, 5
  %v4127 = vsel %vm813, %v4125, %v4126
  %v4128 = vrot.slane %v3972, 5
  %v4129 = vrot.slane %v4128, 4
  %v4130 = vrot.slane %v3973, 5
  %v4131 = vsel %vm813, %v4129, %v4130
  %v4132 = vrot.slane %v4130, 4
  %v4133 = vrot.slane %v3974, 5
  %v4134 = vsel %vm813, %v4132, %v4133
  %v4135 = vunpack.c.l.b16 %v4026
  %v4136 = vunpack.c.l.b16 %v4029
  %v4137 = vunpack.c.l.b16 %v4033
  %v4138 = vunpack.c.l.b16 %v4036
  %v4139 = vunpack.c.l.b16 %v4040
  %v4140 = vunpack.c.l.b16 %v4043
  %v4141 = vunpack.c.l.b16 %v4047
  %v4142 = vunpack.c.l.b16 %v4050
  %v4143 = vunpack.c.l.b16 %v4054
  %v4144 = vunpack.c.l.b16 %v4057
  %v4145 = vunpack.c.l.b16 %v4061
  %v4146 = vunpack.c.l.b16 %v4064
  %v4147 = vunpack.c.l.b16 %v4068
  %v4148 = vunpack.c.l.b16 %v4071
  %v4149 = vunpack.c.l.b16 %v4075
  %v4150 = vunpack.c.l.b16 %v4078
  %v4151 = vunpack.c.l.b16 %v4082
  %v4152 = vunpack.c.l.b16 %v4085
  %v4153 = vunpack.c.l.b16 %v4089
  %v4154 = vunpack.c.l.b16 %v4092
  %v4155 = vunpack.c.l.b16 %v4096
  %v4156 = vunpack.c.l.b16 %v4099
  %v4157 = vunpack.c.l.b16 %v4103
  %v4158 = vunpack.c.l.b16 %v4106
  %v4159 = vunpack.c.l.b16 %v4110
  %v4160 = vunpack.c.l.b16 %v4113
  %v4161 = vunpack.c.l.b16 %v4117
  %v4162 = vunpack.c.l.b16 %v4120
  %v4163 = vunpack.c.l.b16 %v4124
  %v4164 = vunpack.c.l.b16 %v4127
  %v4165 = vunpack.c.l.b16 %v4131
  %v4166 = vunpack.c.l.b16 %v4134
  %v4167 = vpack.c.b16 %v4136, %v4135
  %v4168 = vpack.c.b16 %v4138, %v4137
  %v4169 = vpack.c.b16 %v4140, %v4139
  %v4170 = vpack.c.b16 %v4142, %v4141
  %v4171 = vpack.c.b16 %v4144, %v4143
  %v4172 = vpack.c.b16 %v4146, %v4145
  %v4173 = vpack.c.b16 %v4148, %v4147
  %v4174 = vpack.c.b16 %v4150, %v4149
  %v4175 = vpack.c.b16 %v4152, %v4151
  %v4176 = vpack.c.b16 %v4154, %v4153
  %v4177 = vpack.c.b16 %v4156, %v4155
  %v4178 = vpack.c.b16 %v4158, %v4157
  %v4179 = vpack.c.b16 %v4160, %v4159
  %v4180 = vpack.c.b16 %v4162, %v4161
  %v4181 = vpack.c.b16 %v4164, %v4163
  %v4182 = vpack.c.b16 %v4166, %v4165
  %4183 = vrot.lane.b32.xlu0 %v4167, 16
  %v4184 = vpop.permute.xlu0 %4183
  %4185 = vrot.lane.b32.xlu0 %v4168, 16
  %v4186 = vpop.permute.xlu0 %4185
  %4187 = vrot.lane.b32.xlu0 %v4169, 16
  %v4188 = vpop.permute.xlu0 %4187
  %4189 = vrot.lane.b32.xlu0 %v4170, 16
  %v4190 = vpop.permute.xlu0 %4189
  %4191 = vrot.lane.b32.xlu0 %v4171, 16
  %v4192 = vpop.permute.xlu0 %4191
  %4193 = vrot.lane.b32.xlu0 %v4172, 16
  %v4194 = vpop.permute.xlu0 %4193
  %4195 = vrot.lane.b32.xlu0 %v4173, 16
  %v4196 = vpop.permute.xlu0 %4195
  %4197 = vrot.lane.b32.xlu0 %v4174, 16
  %v4198 = vpop.permute.xlu0 %4197
  %4199 = vrot.lane.b32.xlu0 %v4175, 16
  %v4200 = vpop.permute.xlu0 %4199
  %4201 = vrot.lane.b32.xlu0 %v4176, 16
  %v4202 = vpop.permute.xlu0 %4201
  %4203 = vrot.lane.b32.xlu0 %v4177, 16
  %v4204 = vpop.permute.xlu0 %4203
  %4205 = vrot.lane.b32.xlu0 %v4178, 16
  %v4206 = vpop.permute.xlu0 %4205
  %4207 = vrot.lane.b32.xlu0 %v4179, 16
  %v4208 = vpop.permute.xlu0 %4207
  %4209 = vrot.lane.b32.xlu0 %v4180, 16
  %v4210 = vpop.permute.xlu0 %4209
  %4211 = vrot.lane.b32.xlu0 %v4181, 16
  %v4212 = vpop.permute.xlu0 %4211
  %4213 = vrot.lane.b32.xlu0 %v4182, 16
  %v4214 = vpop.permute.xlu0 %4213
  %4231 = vst.msk [vmem:[#allocation2] sm:$0xff] %vm1022, %v4184
  %4232 = vst.msk [vmem:[#allocation2 + $0x8] sm:$0xff] %vm1022, %v4186
  %4233 = vst.msk [vmem:[#allocation2 + $0x10] sm:$0xff] %vm1022, %v4188
  %4234 = vst.msk [vmem:[#allocation2 + $0x18] sm:$0xff] %vm1022, %v4190
  %4235 = vst.msk [vmem:[#allocation2 + $0x20] sm:$0xff] %vm1022, %v4192
  %4236 = vst.msk [vmem:[#allocation2 + $0x28] sm:$0xff] %vm1022, %v4194
  %4237 = vst.msk [vmem:[#allocation2 + $0x30] sm:$0xff] %vm1022, %v4196
  %4238 = vst.msk [vmem:[#allocation2 + $0x38] sm:$0xff] %vm1022, %v4198
  %4239 = vst.msk [vmem:[#allocation2 + $0x40] sm:$0xff] %vm1022, %v4200
  %4240 = vst.msk [vmem:[#allocation2 + $0x48] sm:$0xff] %vm1022, %v4202
  %4241 = vst.msk [vmem:[#allocation2 + $0x50] sm:$0xff] %vm1022, %v4204
  %4242 = vst.msk [vmem:[#allocation2 + $0x58] sm:$0xff] %vm1022, %v4206
  %4243 = vst.msk [vmem:[#allocation2 + $0x60] sm:$0xff] %vm1022, %v4208
  %4244 = vst.msk [vmem:[#allocation2 + $0x68] sm:$0xff] %vm1022, %v4210
  %4245 = vst.msk [vmem:[#allocation2 + $0x70] sm:$0xff] %vm1022, %v4212
  %4246 = vst.msk [vmem:[#allocation2 + $0x78] sm:$0xff] %vm1022, %v4214
  %s4247 = scalar_lea.vmem %s0, 228
  %v4248 = vld [vmem:[%s4247] sm:$0xf]
  %v4249 = vld [vmem:[%s4247 + $0x4] sm:$0xf]
  %v4250 = vld [vmem:[%s4247 + $0xc] sm:$0xf]
  %v4251 = vld [vmem:[%s4247 + $0x10] sm:$0xf]
  %v4252 = vld [vmem:[%s4247 + $0x18] sm:$0xf]
  %v4253 = vld [vmem:[%s4247 + $0x1c] sm:$0xf]
  %v4254 = vld [vmem:[%s4247 + $0x24] sm:$0xf]
  %v4255 = vld [vmem:[%s4247 + $0x28] sm:$0xf]
  %v4256 = vld [vmem:[%s4247 + $0x30] sm:$0xf]
  %v4257 = vld [vmem:[%s4247 + $0x34] sm:$0xf]
  %v4258 = vld [vmem:[%s4247 + $0x3c] sm:$0xf]
  %v4259 = vld [vmem:[%s4247 + $0x40] sm:$0xf]
  %v4260 = vld [vmem:[%s4247 + $0x48] sm:$0xf]
  %v4261 = vld [vmem:[%s4247 + $0x4c] sm:$0xf]
  %v4262 = vld [vmem:[%s4247 + $0x54] sm:$0xf]
  %v4263 = vld [vmem:[%s4247 + $0x58] sm:$0xf]
  %v4264 = vld [vmem:[%s4247 + $0x60] sm:$0xf]
  %v4265 = vld [vmem:[%s4247 + $0x64] sm:$0xf]
  %v4266 = vld [vmem:[%s4247 + $0x6c] sm:$0xf]
  %v4267 = vld [vmem:[%s4247 + $0x70] sm:$0xf]
  %v4268 = vld [vmem:[%s4247 + $0x78] sm:$0xf]
  %v4269 = vld [vmem:[%s4247 + $0x7c] sm:$0xf]
  %v4270 = vld [vmem:[%s4247 + $0x84] sm:$0xf]
  %v4271 = vld [vmem:[%s4247 + $0x88] sm:$0xf]
  %v4272 = vld [vmem:[%s4247 + $0x90] sm:$0xf]
  %v4273 = vld [vmem:[%s4247 + $0x94] sm:$0xf]
  %v4274 = vld [vmem:[%s4247 + $0x9c] sm:$0xf]
  %v4275 = vld [vmem:[%s4247 + $0xa0] sm:$0xf]
  %v4276 = vld [vmem:[%s4247 + $0xa8] sm:$0xf]
  %v4277 = vld [vmem:[%s4247 + $0xac] sm:$0xf]
  %v4278 = vld [vmem:[%s4247 + $0xb4] sm:$0xf]
  %v4279 = vld [vmem:[%s4247 + $0xb8] sm:$0xf]
  %v4312 = vunpack.c.l.b16 %v4248
  %v4313 = vunpack.c.l.b16 %v4249
  %v4314 = vunpack.c.l.b16 %v4250
  %v4315 = vunpack.c.l.b16 %v4251
  %v4316 = vunpack.c.l.b16 %v4252
  %v4317 = vunpack.c.l.b16 %v4253
  %v4318 = vunpack.c.l.b16 %v4254
  %v4319 = vunpack.c.l.b16 %v4255
  %v4320 = vunpack.c.l.b16 %v4256
  %v4321 = vunpack.c.l.b16 %v4257
  %v4322 = vunpack.c.l.b16 %v4258
  %v4323 = vunpack.c.l.b16 %v4259
  %v4324 = vunpack.c.l.b16 %v4260
  %v4325 = vunpack.c.l.b16 %v4261
  %v4326 = vunpack.c.l.b16 %v4262
  %v4327 = vunpack.c.l.b16 %v4263
  %v4328 = vunpack.c.l.b16 %v4264
  %v4329 = vunpack.c.l.b16 %v4265
  %v4330 = vunpack.c.l.b16 %v4266
  %v4331 = vunpack.c.l.b16 %v4267
  %v4332 = vunpack.c.l.b16 %v4268
  %v4333 = vunpack.c.l.b16 %v4269
  %v4334 = vunpack.c.l.b16 %v4270
  %v4335 = vunpack.c.l.b16 %v4271
  %v4336 = vunpack.c.l.b16 %v4272
  %v4337 = vunpack.c.l.b16 %v4273
  %v4338 = vunpack.c.l.b16 %v4274
  %v4339 = vunpack.c.l.b16 %v4275
  %v4340 = vunpack.c.l.b16 %v4276
  %v4341 = vunpack.c.l.b16 %v4277
  %v4342 = vunpack.c.l.b16 %v4278
  %v4343 = vunpack.c.l.b16 %v4279
  %v4344 = vpack.c.b16 %v4313, %v4312
  %v4345 = vpack.c.b16 %v4315, %v4314
  %v4346 = vpack.c.b16 %v4317, %v4316
  %v4347 = vpack.c.b16 %v4319, %v4318
  %v4348 = vpack.c.b16 %v4321, %v4320
  %v4349 = vpack.c.b16 %v4323, %v4322
  %v4350 = vpack.c.b16 %v4325, %v4324
  %v4351 = vpack.c.b16 %v4327, %v4326
  %v4352 = vpack.c.b16 %v4329, %v4328
  %v4353 = vpack.c.b16 %v4331, %v4330
  %v4354 = vpack.c.b16 %v4333, %v4332
  %v4355 = vpack.c.b16 %v4335, %v4334
  %v4356 = vpack.c.b16 %v4337, %v4336
  %v4357 = vpack.c.b16 %v4339, %v4338
  %v4358 = vpack.c.b16 %v4341, %v4340
  %v4359 = vpack.c.b16 %v4343, %v4342
  %4360 = vrot.lane.b32.xlu0 %v4344, 24
  %v4361 = vpop.permute.xlu0 %4360
  %4362 = vrot.lane.b32.xlu0 %v4345, 24
  %v4363 = vpop.permute.xlu0 %4362
  %4364 = vrot.lane.b32.xlu0 %v4346, 24
  %v4365 = vpop.permute.xlu0 %4364
  %4366 = vrot.lane.b32.xlu0 %v4347, 24
  %v4367 = vpop.permute.xlu0 %4366
  %4368 = vrot.lane.b32.xlu0 %v4348, 24
  %v4369 = vpop.permute.xlu0 %4368
  %4370 = vrot.lane.b32.xlu0 %v4349, 24
  %v4371 = vpop.permute.xlu0 %4370
  %4372 = vrot.lane.b32.xlu0 %v4350, 24
  %v4373 = vpop.permute.xlu0 %4372
  %4374 = vrot.lane.b32.xlu0 %v4351, 24
  %v4375 = vpop.permute.xlu0 %4374
  %4376 = vrot.lane.b32.xlu0 %v4352, 24
  %v4377 = vpop.permute.xlu0 %4376
  %4378 = vrot.lane.b32.xlu0 %v4353, 24
  %v4379 = vpop.permute.xlu0 %4378
  %4380 = vrot.lane.b32.xlu0 %v4354, 24
  %v4381 = vpop.permute.xlu0 %4380
  %4382 = vrot.lane.b32.xlu0 %v4355, 24
  %v4383 = vpop.permute.xlu0 %4382
  %4384 = vrot.lane.b32.xlu0 %v4356, 24
  %v4385 = vpop.permute.xlu0 %4384
  %4386 = vrot.lane.b32.xlu0 %v4357, 24
  %v4387 = vpop.permute.xlu0 %4386
  %4388 = vrot.lane.b32.xlu0 %v4358, 24
  %v4389 = vpop.permute.xlu0 %4388
  %4390 = vrot.lane.b32.xlu0 %v4359, 24
  %v4391 = vpop.permute.xlu0 %4390
  %4408 = vst.msk [vmem:[#allocation2] sm:$0xff] %vm1200, %v4361
  %4409 = vst.msk [vmem:[#allocation2 + $0x8] sm:$0xff] %vm1200, %v4363
  %4410 = vst.msk [vmem:[#allocation2 + $0x10] sm:$0xff] %vm1200, %v4365
  %4411 = vst.msk [vmem:[#allocation2 + $0x18] sm:$0xff] %vm1200, %v4367
  %4412 = vst.msk [vmem:[#allocation2 + $0x20] sm:$0xff] %vm1200, %v4369
  %4413 = vst.msk [vmem:[#allocation2 + $0x28] sm:$0xff] %vm1200, %v4371
  %4414 = vst.msk [vmem:[#allocation2 + $0x30] sm:$0xff] %vm1200, %v4373
  %4415 = vst.msk [vmem:[#allocation2 + $0x38] sm:$0xff] %vm1200, %v4375
  %4416 = vst.msk [vmem:[#allocation2 + $0x40] sm:$0xff] %vm1200, %v4377
  %4417 = vst.msk [vmem:[#allocation2 + $0x48] sm:$0xff] %vm1200, %v4379
  %4418 = vst.msk [vmem:[#allocation2 + $0x50] sm:$0xff] %vm1200, %v4381
  %4419 = vst.msk [vmem:[#allocation2 + $0x58] sm:$0xff] %vm1200, %v4383
  %4420 = vst.msk [vmem:[#allocation2 + $0x60] sm:$0xff] %vm1200, %v4385
  %4421 = vst.msk [vmem:[#allocation2 + $0x68] sm:$0xff] %vm1200, %v4387
  %4422 = vst.msk [vmem:[#allocation2 + $0x70] sm:$0xff] %vm1200, %v4389
  %4423 = vst.msk [vmem:[#allocation2 + $0x78] sm:$0xff] %vm1200, %v4391
  %v4424 = vld [vmem:[%s4247] sm:$0xf]
  %v4425 = vld [vmem:[%s4247 + $0x4] sm:$0xf]
  %v4426 = vld [vmem:[%s4247 + $0x8] sm:$0x1]
  %v4427 = vld [vmem:[%s4247 + $0xc] sm:$0xf]
  %v4428 = vld [vmem:[%s4247 + $0x10] sm:$0xf]
  %v4429 = vld [vmem:[%s4247 + $0x14] sm:$0x1]
  %v4430 = vld [vmem:[%s4247 + $0x18] sm:$0xf]
  %v4431 = vld [vmem:[%s4247 + $0x1c] sm:$0xf]
  %v4432 = vld [vmem:[%s4247 + $0x20] sm:$0x1]
  %v4433 = vld [vmem:[%s4247 + $0x24] sm:$0xf]
  %v4434 = vld [vmem:[%s4247 + $0x28] sm:$0xf]
  %v4435 = vld [vmem:[%s4247 + $0x2c] sm:$0x1]
  %v4436 = vld [vmem:[%s4247 + $0x30] sm:$0xf]
  %v4437 = vld [vmem:[%s4247 + $0x34] sm:$0xf]
  %v4438 = vld [vmem:[%s4247 + $0x38] sm:$0x1]
  %v4439 = vld [vmem:[%s4247 + $0x3c] sm:$0xf]
  %v4440 = vld [vmem:[%s4247 + $0x40] sm:$0xf]
  %v4441 = vld [vmem:[%s4247 + $0x44] sm:$0x1]
  %v4442 = vld [vmem:[%s4247 + $0x48] sm:$0xf]
  %v4443 = vld [vmem:[%s4247 + $0x4c] sm:$0xf]
  %v4444 = vld [vmem:[%s4247 + $0x50] sm:$0x1]
  %v4445 = vld [vmem:[%s4247 + $0x54] sm:$0xf]
  %v4446 = vld [vmem:[%s4247 + $0x58] sm:$0xf]
  %v4447 = vld [vmem:[%s4247 + $0x5c] sm:$0x1]
  %v4448 = vld [vmem:[%s4247 + $0x60] sm:$0xf]
  %v4449 = vld [vmem:[%s4247 + $0x64] sm:$0xf]
  %v4450 = vld [vmem:[%s4247 + $0x68] sm:$0x1]
  %v4451 = vld [vmem:[%s4247 + $0x6c] sm:$0xf]
  %v4452 = vld [vmem:[%s4247 + $0x70] sm:$0xf]
  %v4453 = vld [vmem:[%s4247 + $0x74] sm:$0x1]
  %v4454 = vld [vmem:[%s4247 + $0x78] sm:$0xf]
  %v4455 = vld [vmem:[%s4247 + $0x7c] sm:$0xf]
  %v4456 = vld [vmem:[%s4247 + $0x80] sm:$0x1]
  %v4457 = vld [vmem:[%s4247 + $0x84] sm:$0xf]
  %v4458 = vld [vmem:[%s4247 + $0x88] sm:$0xf]
  %v4459 = vld [vmem:[%s4247 + $0x8c] sm:$0x1]
  %v4460 = vld [vmem:[%s4247 + $0x90] sm:$0xf]
  %v4461 = vld [vmem:[%s4247 + $0x94] sm:$0xf]
  %v4462 = vld [vmem:[%s4247 + $0x98] sm:$0x1]
  %v4463 = vld [vmem:[%s4247 + $0x9c] sm:$0xf]
  %v4464 = vld [vmem:[%s4247 + $0xa0] sm:$0xf]
  %v4465 = vld [vmem:[%s4247 + $0xa4] sm:$0x1]
  %v4466 = vld [vmem:[%s4247 + $0xa8] sm:$0xf]
  %v4467 = vld [vmem:[%s4247 + $0xac] sm:$0xf]
  %v4468 = vld [vmem:[%s4247 + $0xb0] sm:$0x1]
  %v4469 = vld [vmem:[%s4247 + $0xb4] sm:$0xf]
  %v4470 = vld [vmem:[%s4247 + $0xb8] sm:$0xf]
  %v4471 = vld [vmem:[%s4247 + $0xbc] sm:$0x1]
  %v4473 = vshrl.u32 %v4424, 16
  %v4475 = vrot.slane %v4473, 4
  %v4476 = vshll.u32 %v4424, 16
  %v4478 = vrot.slane %v4476, 5
  %v4479 = vor.u32 %v4475, %v4478
  %v4480 = vrot.slane %v4479, 4
  %v4482 = vshll.u32 %v4425, 16
  %v4484 = vrot.slane %v4482, 5
  %v4485 = vsel %vm217, %v4480, %v4484
  %v4486 = vshrl.u32 %v4425, 16
  %v4488 = vrot.slane %v4486, 4
  %v4489 = vor.u32 %v4488, %v4484
  %v4490 = vrot.slane %v4489, 4
  %v4492 = vshll.u32 %v4426, 16
  %v4494 = vrot.slane %v4492, 5
  %v4495 = vsel %vm217, %v4490, %v4494
  %v4497 = vshrl.u32 %v4427, 16
  %v4499 = vrot.slane %v4497, 4
  %v4500 = vshll.u32 %v4427, 16
  %v4502 = vrot.slane %v4500, 5
  %v4503 = vor.u32 %v4499, %v4502
  %v4504 = vrot.slane %v4503, 4
  %v4506 = vshll.u32 %v4428, 16
  %v4508 = vrot.slane %v4506, 5
  %v4509 = vsel %vm217, %v4504, %v4508
  %v4510 = vshrl.u32 %v4428, 16
  %v4512 = vrot.slane %v4510, 4
  %v4513 = vor.u32 %v4512, %v4508
  %v4514 = vrot.slane %v4513, 4
  %v4516 = vshll.u32 %v4429, 16
  %v4518 = vrot.slane %v4516, 5
  %v4519 = vsel %vm217, %v4514, %v4518
  %v4521 = vshrl.u32 %v4430, 16
  %v4523 = vrot.slane %v4521, 4
  %v4524 = vshll.u32 %v4430, 16
  %v4526 = vrot.slane %v4524, 5
  %v4527 = vor.u32 %v4523, %v4526
  %v4528 = vrot.slane %v4527, 4
  %v4530 = vshll.u32 %v4431, 16
  %v4532 = vrot.slane %v4530, 5
  %v4533 = vsel %vm217, %v4528, %v4532
  %v4534 = vshrl.u32 %v4431, 16
  %v4536 = vrot.slane %v4534, 4
  %v4537 = vor.u32 %v4536, %v4532
  %v4538 = vrot.slane %v4537, 4
  %v4540 = vshll.u32 %v4432, 16
  %v4542 = vrot.slane %v4540, 5
  %v4543 = vsel %vm217, %v4538, %v4542
  %v4545 = vshrl.u32 %v4433, 16
  %v4547 = vrot.slane %v4545, 4
  %v4548 = vshll.u32 %v4433, 16
  %v4550 = vrot.slane %v4548, 5
  %v4551 = vor.u32 %v4547, %v4550
  %v4552 = vrot.slane %v4551, 4
  %v4554 = vshll.u32 %v4434, 16
  %v4556 = vrot.slane %v4554, 5
  %v4557 = vsel %vm217, %v4552, %v4556
  %v4558 = vshrl.u32 %v4434, 16
  %v4560 = vrot.slane %v4558, 4
  %v4561 = vor.u32 %v4560, %v4556
  %v4562 = vrot.slane %v4561, 4
  %v4564 = vshll.u32 %v4435, 16
  %v4566 = vrot.slane %v4564, 5
  %v4567 = vsel %vm217, %v4562, %v4566
  %v4569 = vshrl.u32 %v4436, 16
  %v4571 = vrot.slane %v4569, 4
  %v4572 = vshll.u32 %v4436, 16
  %v4574 = vrot.slane %v4572, 5
  %v4575 = vor.u32 %v4571, %v4574
  %v4576 = vrot.slane %v4575, 4
  %v4578 = vshll.u32 %v4437, 16
  %v4580 = vrot.slane %v4578, 5
  %v4581 = vsel %vm217, %v4576, %v4580
  %v4582 = vshrl.u32 %v4437, 16
  %v4584 = vrot.slane %v4582, 4
  %v4585 = vor.u32 %v4584, %v4580
  %v4586 = vrot.slane %v4585, 4
  %v4588 = vshll.u32 %v4438, 16
  %v4590 = vrot.slane %v4588, 5
  %v4591 = vsel %vm217, %v4586, %v4590
  %v4593 = vshrl.u32 %v4439, 16
  %v4595 = vrot.slane %v4593, 4
  %v4596 = vshll.u32 %v4439, 16
  %v4598 = vrot.slane %v4596, 5
  %v4599 = vor.u32 %v4595, %v4598
  %v4600 = vrot.slane %v4599, 4
  %v4602 = vshll.u32 %v4440, 16
  %v4604 = vrot.slane %v4602, 5
  %v4605 = vsel %vm217, %v4600, %v4604
  %v4606 = vshrl.u32 %v4440, 16
  %v4608 = vrot.slane %v4606, 4
  %v4609 = vor.u32 %v4608, %v4604
  %v4610 = vrot.slane %v4609, 4
  %v4612 = vshll.u32 %v4441, 16
  %v4614 = vrot.slane %v4612, 5
  %v4615 = vsel %vm217, %v4610, %v4614
  %v4617 = vshrl.u32 %v4442, 16
  %v4619 = vrot.slane %v4617, 4
  %v4620 = vshll.u32 %v4442, 16
  %v4622 = vrot.slane %v4620, 5
  %v4623 = vor.u32 %v4619, %v4622
  %v4624 = vrot.slane %v4623, 4
  %v4626 = vshll.u32 %v4443, 16
  %v4628 = vrot.slane %v4626, 5
  %v4629 = vsel %vm217, %v4624, %v4628
  %v4630 = vshrl.u32 %v4443, 16
  %v4632 = vrot.slane %v4630, 4
  %v4633 = vor.u32 %v4632, %v4628
  %v4634 = vrot.slane %v4633, 4
  %v4636 = vshll.u32 %v4444, 16
  %v4638 = vrot.slane %v4636, 5
  %v4639 = vsel %vm217, %v4634, %v4638
  %v4641 = vshrl.u32 %v4445, 16
  %v4643 = vrot.slane %v4641, 4
  %v4644 = vshll.u32 %v4445, 16
  %v4646 = vrot.slane %v4644, 5
  %v4647 = vor.u32 %v4643, %v4646
  %v4648 = vrot.slane %v4647, 4
  %v4650 = vshll.u32 %v4446, 16
  %v4652 = vrot.slane %v4650, 5
  %v4653 = vsel %vm217, %v4648, %v4652
  %v4654 = vshrl.u32 %v4446, 16
  %v4656 = vrot.slane %v4654, 4
  %v4657 = vor.u32 %v4656, %v4652
  %v4658 = vrot.slane %v4657, 4
  %v4660 = vshll.u32 %v4447, 16
  %v4662 = vrot.slane %v4660, 5
  %v4663 = vsel %vm217, %v4658, %v4662
  %v4665 = vshrl.u32 %v4448, 16
  %v4667 = vrot.slane %v4665, 4
  %v4668 = vshll.u32 %v4448, 16
  %v4670 = vrot.slane %v4668, 5
  %v4671 = vor.u32 %v4667, %v4670
  %v4672 = vrot.slane %v4671, 4
  %v4674 = vshll.u32 %v4449, 16
  %v4676 = vrot.slane %v4674, 5
  %v4677 = vsel %vm217, %v4672, %v4676
  %v4678 = vshrl.u32 %v4449, 16
  %v4680 = vrot.slane %v4678, 4
  %v4681 = vor.u32 %v4680, %v4676
  %v4682 = vrot.slane %v4681, 4
  %v4684 = vshll.u32 %v4450, 16
  %v4686 = vrot.slane %v4684, 5
  %v4687 = vsel %vm217, %v4682, %v4686
  %v4689 = vshrl.u32 %v4451, 16
  %v4691 = vrot.slane %v4689, 4
  %v4692 = vshll.u32 %v4451, 16
  %v4694 = vrot.slane %v4692, 5
  %v4695 = vor.u32 %v4691, %v4694
  %v4696 = vrot.slane %v4695, 4
  %v4698 = vshll.u32 %v4452, 16
  %v4700 = vrot.slane %v4698, 5
  %v4701 = vsel %vm217, %v4696, %v4700
  %v4702 = vshrl.u32 %v4452, 16
  %v4704 = vrot.slane %v4702, 4
  %v4705 = vor.u32 %v4704, %v4700
  %v4706 = vrot.slane %v4705, 4
  %v4708 = vshll.u32 %v4453, 16
  %v4710 = vrot.slane %v4708, 5
  %v4711 = vsel %vm217, %v4706, %v4710
  %v4713 = vshrl.u32 %v4454, 16
  %v4715 = vrot.slane %v4713, 4
  %v4716 = vshll.u32 %v4454, 16
  %v4718 = vrot.slane %v4716, 5
  %v4719 = vor.u32 %v4715, %v4718
  %v4720 = vrot.slane %v4719, 4
  %v4722 = vshll.u32 %v4455, 16
  %v4724 = vrot.slane %v4722, 5
  %v4725 = vsel %vm217, %v4720, %v4724
  %v4726 = vshrl.u32 %v4455, 16
  %v4728 = vrot.slane %v4726, 4
  %v4729 = vor.u32 %v4728, %v4724
  %v4730 = vrot.slane %v4729, 4
  %v4732 = vshll.u32 %v4456, 16
  %v4734 = vrot.slane %v4732, 5
  %v4735 = vsel %vm217, %v4730, %v4734
  %v4737 = vshrl.u32 %v4457, 16
  %v4739 = vrot.slane %v4737, 4
  %v4740 = vshll.u32 %v4457, 16
  %v4742 = vrot.slane %v4740, 5
  %v4743 = vor.u32 %v4739, %v4742
  %v4744 = vrot.slane %v4743, 4
  %v4746 = vshll.u32 %v4458, 16
  %v4748 = vrot.slane %v4746, 5
  %v4749 = vsel %vm217, %v4744, %v4748
  %v4750 = vshrl.u32 %v4458, 16
  %v4752 = vrot.slane %v4750, 4
  %v4753 = vor.u32 %v4752, %v4748
  %v4754 = vrot.slane %v4753, 4
  %v4756 = vshll.u32 %v4459, 16
  %v4758 = vrot.slane %v4756, 5
  %v4759 = vsel %vm217, %v4754, %v4758
  %v4761 = vshrl.u32 %v4460, 16
  %v4763 = vrot.slane %v4761, 4
  %v4764 = vshll.u32 %v4460, 16
  %v4766 = vrot.slane %v4764, 5
  %v4767 = vor.u32 %v4763, %v4766
  %v4768 = vrot.slane %v4767, 4
  %v4770 = vshll.u32 %v4461, 16
  %v4772 = vrot.slane %v4770, 5
  %v4773 = vsel %vm217, %v4768, %v4772
  %v4774 = vshrl.u32 %v4461, 16
  %v4776 = vrot.slane %v4774, 4
  %v4777 = vor.u32 %v4776, %v4772
  %v4778 = vrot.slane %v4777, 4
  %v4780 = vshll.u32 %v4462, 16
  %v4782 = vrot.slane %v4780, 5
  %v4783 = vsel %vm217, %v4778, %v4782
  %v4785 = vshrl.u32 %v4463, 16
  %v4787 = vrot.slane %v4785, 4
  %v4788 = vshll.u32 %v4463, 16
  %v4790 = vrot.slane %v4788, 5
  %v4791 = vor.u32 %v4787, %v4790
  %v4792 = vrot.slane %v4791, 4
  %v4794 = vshll.u32 %v4464, 16
  %v4796 = vrot.slane %v4794, 5
  %v4797 = vsel %vm217, %v4792, %v4796
  %v4798 = vshrl.u32 %v4464, 16
  %v4800 = vrot.slane %v4798, 4
  %v4801 = vor.u32 %v4800, %v4796
  %v4802 = vrot.slane %v4801, 4
  %v4804 = vshll.u32 %v4465, 16
  %v4806 = vrot.slane %v4804, 5
  %v4807 = vsel %vm217, %v4802, %v4806
  %v4809 = vshrl.u32 %v4466, 16
  %v4811 = vrot.slane %v4809, 4
  %v4812 = vshll.u32 %v4466, 16
  %v4814 = vrot.slane %v4812, 5
  %v4815 = vor.u32 %v4811, %v4814
  %v4816 = vrot.slane %v4815, 4
  %v4818 = vshll.u32 %v4467, 16
  %v4820 = vrot.slane %v4818, 5
  %v4821 = vsel %vm217, %v4816, %v4820
  %v4822 = vshrl.u32 %v4467, 16
  %v4824 = vrot.slane %v4822, 4
  %v4825 = vor.u32 %v4824, %v4820
  %v4826 = vrot.slane %v4825, 4
  %v4828 = vshll.u32 %v4468, 16
  %v4830 = vrot.slane %v4828, 5
  %v4831 = vsel %vm217, %v4826, %v4830
  %v4833 = vshrl.u32 %v4469, 16
  %v4835 = vrot.slane %v4833, 4
  %v4836 = vshll.u32 %v4469, 16
  %v4838 = vrot.slane %v4836, 5
  %v4839 = vor.u32 %v4835, %v4838
  %v4840 = vrot.slane %v4839, 4
  %v4842 = vshll.u32 %v4470, 16
  %v4844 = vrot.slane %v4842, 5
  %v4845 = vsel %vm217, %v4840, %v4844
  %v4846 = vshrl.u32 %v4470, 16
  %v4848 = vrot.slane %v4846, 4
  %v4849 = vor.u32 %v4848, %v4844
  %v4850 = vrot.slane %v4849, 4
  %v4852 = vshll.u32 %v4471, 16
  %v4854 = vrot.slane %v4852, 5
  %v4855 = vsel %vm217, %v4850, %v4854
  %v4856 = vunpack.c.l.b16 %v4485
  %v4857 = vunpack.c.l.b16 %v4495
  %v4858 = vunpack.c.l.b16 %v4509
  %v4859 = vunpack.c.l.b16 %v4519
  %v4860 = vunpack.c.l.b16 %v4533
  %v4861 = vunpack.c.l.b16 %v4543
  %v4862 = vunpack.c.l.b16 %v4557
  %v4863 = vunpack.c.l.b16 %v4567
  %v4864 = vunpack.c.l.b16 %v4581
  %v4865 = vunpack.c.l.b16 %v4591
  %v4866 = vunpack.c.l.b16 %v4605
  %v4867 = vunpack.c.l.b16 %v4615
  %v4868 = vunpack.c.l.b16 %v4629
  %v4869 = vunpack.c.l.b16 %v4639
  %v4870 = vunpack.c.l.b16 %v4653
  %v4871 = vunpack.c.l.b16 %v4663
  %v4872 = vunpack.c.l.b16 %v4677
  %v4873 = vunpack.c.l.b16 %v4687
  %v4874 = vunpack.c.l.b16 %v4701
  %v4875 = vunpack.c.l.b16 %v4711
  %v4876 = vunpack.c.l.b16 %v4725
  %v4877 = vunpack.c.l.b16 %v4735
  %v4878 = vunpack.c.l.b16 %v4749
  %v4879 = vunpack.c.l.b16 %v4759
  %v4880 = vunpack.c.l.b16 %v4773
  %v4881 = vunpack.c.l.b16 %v4783
  %v4882 = vunpack.c.l.b16 %v4797
  %v4883 = vunpack.c.l.b16 %v4807
  %v4884 = vunpack.c.l.b16 %v4821
  %v4885 = vunpack.c.l.b16 %v4831
  %v4886 = vunpack.c.l.b16 %v4845
  %v4887 = vunpack.c.l.b16 %v4855
  %v4888 = vpack.c.b16 %v4857, %v4856
  %v4889 = vpack.c.b16 %v4859, %v4858
  %v4890 = vpack.c.b16 %v4861, %v4860
  %v4891 = vpack.c.b16 %v4863, %v4862
  %v4892 = vpack.c.b16 %v4865, %v4864
  %v4893 = vpack.c.b16 %v4867, %v4866
  %v4894 = vpack.c.b16 %v4869, %v4868
  %v4895 = vpack.c.b16 %v4871, %v4870
  %v4896 = vpack.c.b16 %v4873, %v4872
  %v4897 = vpack.c.b16 %v4875, %v4874
  %v4898 = vpack.c.b16 %v4877, %v4876
  %v4899 = vpack.c.b16 %v4879, %v4878
  %v4900 = vpack.c.b16 %v4881, %v4880
  %v4901 = vpack.c.b16 %v4883, %v4882
  %v4902 = vpack.c.b16 %v4885, %v4884
  %v4903 = vpack.c.b16 %v4887, %v4886
  %4904 = vrot.lane.b32.xlu0 %v4888, 32
  %v4905 = vpop.permute.xlu0 %4904
  %4906 = vrot.lane.b32.xlu0 %v4889, 32
  %v4907 = vpop.permute.xlu0 %4906
  %4908 = vrot.lane.b32.xlu0 %v4890, 32
  %v4909 = vpop.permute.xlu0 %4908
  %4910 = vrot.lane.b32.xlu0 %v4891, 32
  %v4911 = vpop.permute.xlu0 %4910
  %4912 = vrot.lane.b32.xlu0 %v4892, 32
  %v4913 = vpop.permute.xlu0 %4912
  %4914 = vrot.lane.b32.xlu0 %v4893, 32
  %v4915 = vpop.permute.xlu0 %4914
  %4916 = vrot.lane.b32.xlu0 %v4894, 32
  %v4917 = vpop.permute.xlu0 %4916
  %4918 = vrot.lane.b32.xlu0 %v4895, 32
  %v4919 = vpop.permute.xlu0 %4918
  %4920 = vrot.lane.b32.xlu0 %v4896, 32
  %v4921 = vpop.permute.xlu0 %4920
  %4922 = vrot.lane.b32.xlu0 %v4897, 32
  %v4923 = vpop.permute.xlu0 %4922
  %4924 = vrot.lane.b32.xlu0 %v4898, 32
  %v4925 = vpop.permute.xlu0 %4924
  %4926 = vrot.lane.b32.xlu0 %v4899, 32
  %v4927 = vpop.permute.xlu0 %4926
  %4928 = vrot.lane.b32.xlu0 %v4900, 32
  %v4929 = vpop.permute.xlu0 %4928
  %4930 = vrot.lane.b32.xlu0 %v4901, 32
  %v4931 = vpop.permute.xlu0 %4930
  %4932 = vrot.lane.b32.xlu0 %v4902, 32
  %v4933 = vpop.permute.xlu0 %4932
  %4934 = vrot.lane.b32.xlu0 %v4903, 32
  %v4935 = vpop.permute.xlu0 %4934
  %4952 = vst.msk [vmem:[#allocation2] sm:$0xff] %vm1745, %v4905
  %4953 = vst.msk [vmem:[#allocation2 + $0x8] sm:$0xff] %vm1745, %v4907
  %4954 = vst.msk [vmem:[#allocation2 + $0x10] sm:$0xff] %vm1745, %v4909
  %4955 = vst.msk [vmem:[#allocation2 + $0x18] sm:$0xff] %vm1745, %v4911
  %4956 = vst.msk [vmem:[#allocation2 + $0x20] sm:$0xff] %vm1745, %v4913
  %4957 = vst.msk [vmem:[#allocation2 + $0x28] sm:$0xff] %vm1745, %v4915
  %4958 = vst.msk [vmem:[#allocation2 + $0x30] sm:$0xff] %vm1745, %v4917
  %4959 = vst.msk [vmem:[#allocation2 + $0x38] sm:$0xff] %vm1745, %v4919
  %4960 = vst.msk [vmem:[#allocation2 + $0x40] sm:$0xff] %vm1745, %v4921
  %4961 = vst.msk [vmem:[#allocation2 + $0x48] sm:$0xff] %vm1745, %v4923
  %4962 = vst.msk [vmem:[#allocation2 + $0x50] sm:$0xff] %vm1745, %v4925
  %4963 = vst.msk [vmem:[#allocation2 + $0x58] sm:$0xff] %vm1745, %v4927
  %4964 = vst.msk [vmem:[#allocation2 + $0x60] sm:$0xff] %vm1745, %v4929
  %4965 = vst.msk [vmem:[#allocation2 + $0x68] sm:$0xff] %vm1745, %v4931
  %4966 = vst.msk [vmem:[#allocation2 + $0x70] sm:$0xff] %vm1745, %v4933
  %4967 = vst.msk [vmem:[#allocation2 + $0x78] sm:$0xff] %vm1745, %v4935
  %v4968 = vld [vmem:[%s4247] sm:$0xe]
  %v4969 = vld [vmem:[%s4247 + $0x4] sm:$0xf]
  %v4970 = vld [vmem:[%s4247 + $0x8] sm:$0x1]
  %v4971 = vld [vmem:[%s4247 + $0xc] sm:$0xe]
  %v4972 = vld [vmem:[%s4247 + $0x10] sm:$0xf]
  %v4973 = vld [vmem:[%s4247 + $0x14] sm:$0x1]
  %v4974 = vld [vmem:[%s4247 + $0x18] sm:$0xe]
  %v4975 = vld [vmem:[%s4247 + $0x1c] sm:$0xf]
  %v4976 = vld [vmem:[%s4247 + $0x20] sm:$0x1]
  %v4977 = vld [vmem:[%s4247 + $0x24] sm:$0xe]
  %v4978 = vld [vmem:[%s4247 + $0x28] sm:$0xf]
  %v4979 = vld [vmem:[%s4247 + $0x2c] sm:$0x1]
  %v4980 = vld [vmem:[%s4247 + $0x30] sm:$0xe]
  %v4981 = vld [vmem:[%s4247 + $0x34] sm:$0xf]
  %v4982 = vld [vmem:[%s4247 + $0x38] sm:$0x1]
  %v4983 = vld [vmem:[%s4247 + $0x3c] sm:$0xe]
  %v4984 = vld [vmem:[%s4247 + $0x40] sm:$0xf]
  %v4985 = vld [vmem:[%s4247 + $0x44] sm:$0x1]
  %v4986 = vld [vmem:[%s4247 + $0x48] sm:$0xe]
  %v4987 = vld [vmem:[%s4247 + $0x4c] sm:$0xf]
  %v4988 = vld [vmem:[%s4247 + $0x50] sm:$0x1]
  %v4989 = vld [vmem:[%s4247 + $0x54] sm:$0xe]
  %v4990 = vld [vmem:[%s4247 + $0x58] sm:$0xf]
  %v4991 = vld [vmem:[%s4247 + $0x5c] sm:$0x1]
  %v4992 = vld [vmem:[%s4247 + $0x60] sm:$0xe]
  %v4993 = vld [vmem:[%s4247 + $0x64] sm:$0xf]
  %v4994 = vld [vmem:[%s4247 + $0x68] sm:$0x1]
  %v4995 = vld [vmem:[%s4247 + $0x6c] sm:$0xe]
  %v4996 = vld [vmem:[%s4247 + $0x70] sm:$0xf]
  %v4997 = vld [vmem:[%s4247 + $0x74] sm:$0x1]
  %v4998 = vld [vmem:[%s4247 + $0x78] sm:$0xe]
  %v4999 = vld [vmem:[%s4247 + $0x7c] sm:$0xf]
  %v5000 = vld [vmem:[%s4247 + $0x80] sm:$0x1]
  %v5001 = vld [vmem:[%s4247 + $0x84] sm:$0xe]
  %v5002 = vld [vmem:[%s4247 + $0x88] sm:$0xf]
  %v5003 = vld [vmem:[%s4247 + $0x8c] sm:$0x1]
  %v5004 = vld [vmem:[%s4247 + $0x90] sm:$0xe]
  %v5005 = vld [vmem:[%s4247 + $0x94] sm:$0xf]
  %v5006 = vld [vmem:[%s4247 + $0x98] sm:$0x1]
  %v5007 = vld [vmem:[%s4247 + $0x9c] sm:$0xe]
  %v5008 = vld [vmem:[%s4247 + $0xa0] sm:$0xf]
  %v5009 = vld [vmem:[%s4247 + $0xa4] sm:$0x1]
  %v5010 = vld [vmem:[%s4247 + $0xa8] sm:$0xe]
  %v5011 = vld [vmem:[%s4247 + $0xac] sm:$0xf]
  %v5012 = vld [vmem:[%s4247 + $0xb0] sm:$0x1]
  %v5013 = vld [vmem:[%s4247 + $0xb4] sm:$0xe]
  %v5014 = vld [vmem:[%s4247 + $0xb8] sm:$0xf]
  %v5015 = vld [vmem:[%s4247 + $0xbc] sm:$0x1]
  %v5064 = vrot.slane %v4968, 5
  %v5065 = vrot.slane %v5064, 4
  %v5066 = vrot.slane %v4969, 5
  %v5067 = vsel %vm813, %v5065, %v5066
  %v5068 = vrot.slane %v5066, 4
  %v5069 = vrot.slane %v4970, 5
  %v5070 = vsel %vm813, %v5068, %v5069
  %v5071 = vrot.slane %v4971, 5
  %v5072 = vrot.slane %v5071, 4
  %v5073 = vrot.slane %v4972, 5
  %v5074 = vsel %vm813, %v5072, %v5073
  %v5075 = vrot.slane %v5073, 4
  %v5076 = vrot.slane %v4973, 5
  %v5077 = vsel %vm813, %v5075, %v5076
  %v5078 = vrot.slane %v4974, 5
  %v5079 = vrot.slane %v5078, 4
  %v5080 = vrot.slane %v4975, 5
  %v5081 = vsel %vm813, %v5079, %v5080
  %v5082 = vrot.slane %v5080, 4
  %v5083 = vrot.slane %v4976, 5
  %v5084 = vsel %vm813, %v5082, %v5083
  %v5085 = vrot.slane %v4977, 5
  %v5086 = vrot.slane %v5085, 4
  %v5087 = vrot.slane %v4978, 5
  %v5088 = vsel %vm813, %v5086, %v5087
  %v5089 = vrot.slane %v5087, 4
  %v5090 = vrot.slane %v4979, 5
  %v5091 = vsel %vm813, %v5089, %v5090
  %v5092 = vrot.slane %v4980, 5
  %v5093 = vrot.slane %v5092, 4
  %v5094 = vrot.slane %v4981, 5
  %v5095 = vsel %vm813, %v5093, %v5094
  %v5096 = vrot.slane %v5094, 4
  %v5097 = vrot.slane %v4982, 5
  %v5098 = vsel %vm813, %v5096, %v5097
  %v5099 = vrot.slane %v4983, 5
  %v5100 = vrot.slane %v5099, 4
  %v5101 = vrot.slane %v4984, 5
  %v5102 = vsel %vm813, %v5100, %v5101
  %v5103 = vrot.slane %v5101, 4
  %v5104 = vrot.slane %v4985, 5
  %v5105 = vsel %vm813, %v5103, %v5104
  %v5106 = vrot.slane %v4986, 5
  %v5107 = vrot.slane %v5106, 4
  %v5108 = vrot.slane %v4987, 5
  %v5109 = vsel %vm813, %v5107, %v5108
  %v5110 = vrot.slane %v5108, 4
  %v5111 = vrot.slane %v4988, 5
  %v5112 = vsel %vm813, %v5110, %v5111
  %v5113 = vrot.slane %v4989, 5
  %v5114 = vrot.slane %v5113, 4
  %v5115 = vrot.slane %v4990, 5
  %v5116 = vsel %vm813, %v5114, %v5115
  %v5117 = vrot.slane %v5115, 4
  %v5118 = vrot.slane %v4991, 5
  %v5119 = vsel %vm813, %v5117, %v5118
  %v5120 = vrot.slane %v4992, 5
  %v5121 = vrot.slane %v5120, 4
  %v5122 = vrot.slane %v4993, 5
  %v5123 = vsel %vm813, %v5121, %v5122
  %v5124 = vrot.slane %v5122, 4
  %v5125 = vrot.slane %v4994, 5
  %v5126 = vsel %vm813, %v5124, %v5125
  %v5127 = vrot.slane %v4995, 5
  %v5128 = vrot.slane %v5127, 4
  %v5129 = vrot.slane %v4996, 5
  %v5130 = vsel %vm813, %v5128, %v5129
  %v5131 = vrot.slane %v5129, 4
  %v5132 = vrot.slane %v4997, 5
  %v5133 = vsel %vm813, %v5131, %v5132
  %v5134 = vrot.slane %v4998, 5
  %v5135 = vrot.slane %v5134, 4
  %v5136 = vrot.slane %v4999, 5
  %v5137 = vsel %vm813, %v5135, %v5136
  %v5138 = vrot.slane %v5136, 4
  %v5139 = vrot.slane %v5000, 5
  %v5140 = vsel %vm813, %v5138, %v5139
  %v5141 = vrot.slane %v5001, 5
  %v5142 = vrot.slane %v5141, 4
  %v5143 = vrot.slane %v5002, 5
  %v5144 = vsel %vm813, %v5142, %v5143
  %v5145 = vrot.slane %v5143, 4
  %v5146 = vrot.slane %v5003, 5
  %v5147 = vsel %vm813, %v5145, %v5146
  %v5148 = vrot.slane %v5004, 5
  %v5149 = vrot.slane %v5148, 4
  %v5150 = vrot.slane %v5005, 5
  %v5151 = vsel %vm813, %v5149, %v5150
  %v5152 = vrot.slane %v5150, 4
  %v5153 = vrot.slane %v5006, 5
  %v5154 = vsel %vm813, %v5152, %v5153
  %v5155 = vrot.slane %v5007, 5
  %v5156 = vrot.slane %v5155, 4
  %v5157 = vrot.slane %v5008, 5
  %v5158 = vsel %vm813, %v5156, %v5157
  %v5159 = vrot.slane %v5157, 4
  %v5160 = vrot.slane %v5009, 5
  %v5161 = vsel %vm813, %v5159, %v5160
  %v5162 = vrot.slane %v5010, 5
  %v5163 = vrot.slane %v5162, 4
  %v5164 = vrot.slane %v5011, 5
  %v5165 = vsel %vm813, %v5163, %v5164
  %v5166 = vrot.slane %v5164, 4
  %v5167 = vrot.slane %v5012, 5
  %v5168 = vsel %vm813, %v5166, %v5167
  %v5169 = vrot.slane %v5013, 5
  %v5170 = vrot.slane %v5169, 4
  %v5171 = vrot.slane %v5014, 5
  %v5172 = vsel %vm813, %v5170, %v5171
  %v5173 = vrot.slane %v5171, 4
  %v5174 = vrot.slane %v5015, 5
  %v5175 = vsel %vm813, %v5173, %v5174
  %v5176 = vunpack.c.l.b16 %v5067
  %v5177 = vunpack.c.l.b16 %v5070
  %v5178 = vunpack.c.l.b16 %v5074
  %v5179 = vunpack.c.l.b16 %v5077
  %v5180 = vunpack.c.l.b16 %v5081
  %v5181 = vunpack.c.l.b16 %v5084
  %v5182 = vunpack.c.l.b16 %v5088
  %v5183 = vunpack.c.l.b16 %v5091
  %v5184 = vunpack.c.l.b16 %v5095
  %v5185 = vunpack.c.l.b16 %v5098
  %v5186 = vunpack.c.l.b16 %v5102
  %v5187 = vunpack.c.l.b16 %v5105
  %v5188 = vunpack.c.l.b16 %v5109
  %v5189 = vunpack.c.l.b16 %v5112
  %v5190 = vunpack.c.l.b16 %v5116
  %v5191 = vunpack.c.l.b16 %v5119
  %v5192 = vunpack.c.l.b16 %v5123
  %v5193 = vunpack.c.l.b16 %v5126
  %v5194 = vunpack.c.l.b16 %v5130
  %v5195 = vunpack.c.l.b16 %v5133
  %v5196 = vunpack.c.l.b16 %v5137
  %v5197 = vunpack.c.l.b16 %v5140
  %v5198 = vunpack.c.l.b16 %v5144
  %v5199 = vunpack.c.l.b16 %v5147
  %v5200 = vunpack.c.l.b16 %v5151
  %v5201 = vunpack.c.l.b16 %v5154
  %v5202 = vunpack.c.l.b16 %v5158
  %v5203 = vunpack.c.l.b16 %v5161
  %v5204 = vunpack.c.l.b16 %v5165
  %v5205 = vunpack.c.l.b16 %v5168
  %v5206 = vunpack.c.l.b16 %v5172
  %v5207 = vunpack.c.l.b16 %v5175
  %v5208 = vpack.c.b16 %v5177, %v5176
  %v5209 = vpack.c.b16 %v5179, %v5178
  %v5210 = vpack.c.b16 %v5181, %v5180
  %v5211 = vpack.c.b16 %v5183, %v5182
  %v5212 = vpack.c.b16 %v5185, %v5184
  %v5213 = vpack.c.b16 %v5187, %v5186
  %v5214 = vpack.c.b16 %v5189, %v5188
  %v5215 = vpack.c.b16 %v5191, %v5190
  %v5216 = vpack.c.b16 %v5193, %v5192
  %v5217 = vpack.c.b16 %v5195, %v5194
  %v5218 = vpack.c.b16 %v5197, %v5196
  %v5219 = vpack.c.b16 %v5199, %v5198
  %v5220 = vpack.c.b16 %v5201, %v5200
  %v5221 = vpack.c.b16 %v5203, %v5202
  %v5222 = vpack.c.b16 %v5205, %v5204
  %v5223 = vpack.c.b16 %v5207, %v5206
  %5224 = vrot.lane.b32.xlu0 %v5208, 40
  %v5225 = vpop.permute.xlu0 %5224
  %5226 = vrot.lane.b32.xlu0 %v5209, 40
  %v5227 = vpop.permute.xlu0 %5226
  %5228 = vrot.lane.b32.xlu0 %v5210, 40
  %v5229 = vpop.permute.xlu0 %5228
  %5230 = vrot.lane.b32.xlu0 %v5211, 40
  %v5231 = vpop.permute.xlu0 %5230
  %5232 = vrot.lane.b32.xlu0 %v5212, 40
  %v5233 = vpop.permute.xlu0 %5232
  %5234 = vrot.lane.b32.xlu0 %v5213, 40
  %v5235 = vpop.permute.xlu0 %5234
  %5236 = vrot.lane.b32.xlu0 %v5214, 40
  %v5237 = vpop.permute.xlu0 %5236
  %5238 = vrot.lane.b32.xlu0 %v5215, 40
  %v5239 = vpop.permute.xlu0 %5238
  %5240 = vrot.lane.b32.xlu0 %v5216, 40
  %v5241 = vpop.permute.xlu0 %5240
  %5242 = vrot.lane.b32.xlu0 %v5217, 40
  %v5243 = vpop.permute.xlu0 %5242
  %5244 = vrot.lane.b32.xlu0 %v5218, 40
  %v5245 = vpop.permute.xlu0 %5244
  %5246 = vrot.lane.b32.xlu0 %v5219, 40
  %v5247 = vpop.permute.xlu0 %5246
  %5248 = vrot.lane.b32.xlu0 %v5220, 40
  %v5249 = vpop.permute.xlu0 %5248
  %5250 = vrot.lane.b32.xlu0 %v5221, 40
  %v5251 = vpop.permute.xlu0 %5250
  %5252 = vrot.lane.b32.xlu0 %v5222, 40
  %v5253 = vpop.permute.xlu0 %5252
  %5254 = vrot.lane.b32.xlu0 %v5223, 40
  %v5255 = vpop.permute.xlu0 %5254
  %5272 = vst.msk [vmem:[#allocation2] sm:$0xff] %vm2066, %v5225
  %5273 = vst.msk [vmem:[#allocation2 + $0x8] sm:$0xff] %vm2066, %v5227
  %5274 = vst.msk [vmem:[#allocation2 + $0x10] sm:$0xff] %vm2066, %v5229
  %5275 = vst.msk [vmem:[#allocation2 + $0x18] sm:$0xff] %vm2066, %v5231
  %5276 = vst.msk [vmem:[#allocation2 + $0x20] sm:$0xff] %vm2066, %v5233
  %5277 = vst.msk [vmem:[#allocation2 + $0x28] sm:$0xff] %vm2066, %v5235
  %5278 = vst.msk [vmem:[#allocation2 + $0x30] sm:$0xff] %vm2066, %v5237
  %5279 = vst.msk [vmem:[#allocation2 + $0x38] sm:$0xff] %vm2066, %v5239
  %5280 = vst.msk [vmem:[#allocation2 + $0x40] sm:$0xff] %vm2066, %v5241
  %5281 = vst.msk [vmem:[#allocation2 + $0x48] sm:$0xff] %vm2066, %v5243
  %5282 = vst.msk [vmem:[#allocation2 + $0x50] sm:$0xff] %vm2066, %v5245
  %5283 = vst.msk [vmem:[#allocation2 + $0x58] sm:$0xff] %vm2066, %v5247
  %5284 = vst.msk [vmem:[#allocation2 + $0x60] sm:$0xff] %vm2066, %v5249
  %5285 = vst.msk [vmem:[#allocation2 + $0x68] sm:$0xff] %vm2066, %v5251
  %5286 = vst.msk [vmem:[#allocation2 + $0x70] sm:$0xff] %vm2066, %v5253
  %5287 = vst.msk [vmem:[#allocation2 + $0x78] sm:$0xff] %vm2066, %v5255
  %s5288 = scalar_lea.vmem %s0, 240
  %v5289 = vld [vmem:[%s5288] sm:$0xf]
  %v5290 = vld [vmem:[%s5288 + $0x4] sm:$0xf]
  %v5291 = vld [vmem:[%s5288 + $0xc] sm:$0xf]
  %v5292 = vld [vmem:[%s5288 + $0x10] sm:$0xf]
  %v5293 = vld [vmem:[%s5288 + $0x18] sm:$0xf]
  %v5294 = vld [vmem:[%s5288 + $0x1c] sm:$0xf]
  %v5295 = vld [vmem:[%s5288 + $0x24] sm:$0xf]
  %v5296 = vld [vmem:[%s5288 + $0x28] sm:$0xf]
  %v5297 = vld [vmem:[%s5288 + $0x30] sm:$0xf]
  %v5298 = vld [vmem:[%s5288 + $0x34] sm:$0xf]
  %v5299 = vld [vmem:[%s5288 + $0x3c] sm:$0xf]
  %v5300 = vld [vmem:[%s5288 + $0x40] sm:$0xf]
  %v5301 = vld [vmem:[%s5288 + $0x48] sm:$0xf]
  %v5302 = vld [vmem:[%s5288 + $0x4c] sm:$0xf]
  %v5303 = vld [vmem:[%s5288 + $0x54] sm:$0xf]
  %v5304 = vld [vmem:[%s5288 + $0x58] sm:$0xf]
  %v5305 = vld [vmem:[%s5288 + $0x60] sm:$0xf]
  %v5306 = vld [vmem:[%s5288 + $0x64] sm:$0xf]
  %v5307 = vld [vmem:[%s5288 + $0x6c] sm:$0xf]
  %v5308 = vld [vmem:[%s5288 + $0x70] sm:$0xf]
  %v5309 = vld [vmem:[%s5288 + $0x78] sm:$0xf]
  %v5310 = vld [vmem:[%s5288 + $0x7c] sm:$0xf]
  %v5311 = vld [vmem:[%s5288 + $0x84] sm:$0xf]
  %v5312 = vld [vmem:[%s5288 + $0x88] sm:$0xf]
  %v5313 = vld [vmem:[%s5288 + $0x90] sm:$0xf]
  %v5314 = vld [vmem:[%s5288 + $0x94] sm:$0xf]
  %v5315 = vld [vmem:[%s5288 + $0x9c] sm:$0xf]
  %v5316 = vld [vmem:[%s5288 + $0xa0] sm:$0xf]
  %v5317 = vld [vmem:[%s5288 + $0xa8] sm:$0xf]
  %v5318 = vld [vmem:[%s5288 + $0xac] sm:$0xf]
  %v5319 = vld [vmem:[%s5288 + $0xb4] sm:$0xf]
  %v5320 = vld [vmem:[%s5288 + $0xb8] sm:$0xf]
  %v5353 = vunpack.c.l.b16 %v5289
  %v5354 = vunpack.c.l.b16 %v5290
  %v5355 = vunpack.c.l.b16 %v5291
  %v5356 = vunpack.c.l.b16 %v5292
  %v5357 = vunpack.c.l.b16 %v5293
  %v5358 = vunpack.c.l.b16 %v5294
  %v5359 = vunpack.c.l.b16 %v5295
  %v5360 = vunpack.c.l.b16 %v5296
  %v5361 = vunpack.c.l.b16 %v5297
  %v5362 = vunpack.c.l.b16 %v5298
  %v5363 = vunpack.c.l.b16 %v5299
  %v5364 = vunpack.c.l.b16 %v5300
  %v5365 = vunpack.c.l.b16 %v5301
  %v5366 = vunpack.c.l.b16 %v5302
  %v5367 = vunpack.c.l.b16 %v5303
  %v5368 = vunpack.c.l.b16 %v5304
  %v5369 = vunpack.c.l.b16 %v5305
  %v5370 = vunpack.c.l.b16 %v5306
  %v5371 = vunpack.c.l.b16 %v5307
  %v5372 = vunpack.c.l.b16 %v5308
  %v5373 = vunpack.c.l.b16 %v5309
  %v5374 = vunpack.c.l.b16 %v5310
  %v5375 = vunpack.c.l.b16 %v5311
  %v5376 = vunpack.c.l.b16 %v5312
  %v5377 = vunpack.c.l.b16 %v5313
  %v5378 = vunpack.c.l.b16 %v5314
  %v5379 = vunpack.c.l.b16 %v5315
  %v5380 = vunpack.c.l.b16 %v5316
  %v5381 = vunpack.c.l.b16 %v5317
  %v5382 = vunpack.c.l.b16 %v5318
  %v5383 = vunpack.c.l.b16 %v5319
  %v5384 = vunpack.c.l.b16 %v5320
  %v5385 = vpack.c.b16 %v5354, %v5353
  %v5386 = vpack.c.b16 %v5356, %v5355
  %v5387 = vpack.c.b16 %v5358, %v5357
  %v5388 = vpack.c.b16 %v5360, %v5359
  %v5389 = vpack.c.b16 %v5362, %v5361
  %v5390 = vpack.c.b16 %v5364, %v5363
  %v5391 = vpack.c.b16 %v5366, %v5365
  %v5392 = vpack.c.b16 %v5368, %v5367
  %v5393 = vpack.c.b16 %v5370, %v5369
  %v5394 = vpack.c.b16 %v5372, %v5371
  %v5395 = vpack.c.b16 %v5374, %v5373
  %v5396 = vpack.c.b16 %v5376, %v5375
  %v5397 = vpack.c.b16 %v5378, %v5377
  %v5398 = vpack.c.b16 %v5380, %v5379
  %v5399 = vpack.c.b16 %v5382, %v5381
  %v5400 = vpack.c.b16 %v5384, %v5383
  %5401 = vrot.lane.b32.xlu0 %v5385, 48
  %v5402 = vpop.permute.xlu0 %5401
  %5403 = vrot.lane.b32.xlu0 %v5386, 48
  %v5404 = vpop.permute.xlu0 %5403
  %5405 = vrot.lane.b32.xlu0 %v5387, 48
  %v5406 = vpop.permute.xlu0 %5405
  %5407 = vrot.lane.b32.xlu0 %v5388, 48
  %v5408 = vpop.permute.xlu0 %5407
  %5409 = vrot.lane.b32.xlu0 %v5389, 48
  %v5410 = vpop.permute.xlu0 %5409
  %5411 = vrot.lane.b32.xlu0 %v5390, 48
  %v5412 = vpop.permute.xlu0 %5411
  %5413 = vrot.lane.b32.xlu0 %v5391, 48
  %v5414 = vpop.permute.xlu0 %5413
  %5415 = vrot.lane.b32.xlu0 %v5392, 48
  %v5416 = vpop.permute.xlu0 %5415
  %5417 = vrot.lane.b32.xlu0 %v5393, 48
  %v5418 = vpop.permute.xlu0 %5417
  %5419 = vrot.lane.b32.xlu0 %v5394, 48
  %v5420 = vpop.permute.xlu0 %5419
  %5421 = vrot.lane.b32.xlu0 %v5395, 48
  %v5422 = vpop.permute.xlu0 %5421
  %5423 = vrot.lane.b32.xlu0 %v5396, 48
  %v5424 = vpop.permute.xlu0 %5423
  %5425 = vrot.lane.b32.xlu0 %v5397, 48
  %v5426 = vpop.permute.xlu0 %5425
  %5427 = vrot.lane.b32.xlu0 %v5398, 48
  %v5428 = vpop.permute.xlu0 %5427
  %5429 = vrot.lane.b32.xlu0 %v5399, 48
  %v5430 = vpop.permute.xlu0 %5429
  %5431 = vrot.lane.b32.xlu0 %v5400, 48
  %v5432 = vpop.permute.xlu0 %5431
  %5449 = vst.msk [vmem:[#allocation2] sm:$0xff] %vm2244, %v5402
  %5450 = vst.msk [vmem:[#allocation2 + $0x8] sm:$0xff] %vm2244, %v5404
  %5451 = vst.msk [vmem:[#allocation2 + $0x10] sm:$0xff] %vm2244, %v5406
  %5452 = vst.msk [vmem:[#allocation2 + $0x18] sm:$0xff] %vm2244, %v5408
  %5453 = vst.msk [vmem:[#allocation2 + $0x20] sm:$0xff] %vm2244, %v5410
  %5454 = vst.msk [vmem:[#allocation2 + $0x28] sm:$0xff] %vm2244, %v5412
  %5455 = vst.msk [vmem:[#allocation2 + $0x30] sm:$0xff] %vm2244, %v5414
  %5456 = vst.msk [vmem:[#allocation2 + $0x38] sm:$0xff] %vm2244, %v5416
  %5457 = vst.msk [vmem:[#allocation2 + $0x40] sm:$0xff] %vm2244, %v5418
  %5458 = vst.msk [vmem:[#allocation2 + $0x48] sm:$0xff] %vm2244, %v5420
  %5459 = vst.msk [vmem:[#allocation2 + $0x50] sm:$0xff] %vm2244, %v5422
  %5460 = vst.msk [vmem:[#allocation2 + $0x58] sm:$0xff] %vm2244, %v5424
  %5461 = vst.msk [vmem:[#allocation2 + $0x60] sm:$0xff] %vm2244, %v5426
  %5462 = vst.msk [vmem:[#allocation2 + $0x68] sm:$0xff] %vm2244, %v5428
  %5463 = vst.msk [vmem:[#allocation2 + $0x70] sm:$0xff] %vm2244, %v5430
  %5464 = vst.msk [vmem:[#allocation2 + $0x78] sm:$0xff] %vm2244, %v5432
  %v5465 = vld [vmem:[%s5288] sm:$0xf]
  %v5466 = vld [vmem:[%s5288 + $0x4] sm:$0xf]
  %v5467 = vld [vmem:[%s5288 + $0x8] sm:$0x1]
  %v5468 = vld [vmem:[%s5288 + $0xc] sm:$0xf]
  %v5469 = vld [vmem:[%s5288 + $0x10] sm:$0xf]
  %v5470 = vld [vmem:[%s5288 + $0x14] sm:$0x1]
  %v5471 = vld [vmem:[%s5288 + $0x18] sm:$0xf]
  %v5472 = vld [vmem:[%s5288 + $0x1c] sm:$0xf]
  %v5473 = vld [vmem:[%s5288 + $0x20] sm:$0x1]
  %v5474 = vld [vmem:[%s5288 + $0x24] sm:$0xf]
  %v5475 = vld [vmem:[%s5288 + $0x28] sm:$0xf]
  %v5476 = vld [vmem:[%s5288 + $0x2c] sm:$0x1]
  %v5477 = vld [vmem:[%s5288 + $0x30] sm:$0xf]
  %v5478 = vld [vmem:[%s5288 + $0x34] sm:$0xf]
  %v5479 = vld [vmem:[%s5288 + $0x38] sm:$0x1]
  %v5480 = vld [vmem:[%s5288 + $0x3c] sm:$0xf]
  %v5481 = vld [vmem:[%s5288 + $0x40] sm:$0xf]
  %v5482 = vld [vmem:[%s5288 + $0x44] sm:$0x1]
  %v5483 = vld [vmem:[%s5288 + $0x48] sm:$0xf]
  %v5484 = vld [vmem:[%s5288 + $0x4c] sm:$0xf]
  %v5485 = vld [vmem:[%s5288 + $0x50] sm:$0x1]
  %v5486 = vld [vmem:[%s5288 + $0x54] sm:$0xf]
  %v5487 = vld [vmem:[%s5288 + $0x58] sm:$0xf]
  %v5488 = vld [vmem:[%s5288 + $0x5c] sm:$0x1]
  %v5489 = vld [vmem:[%s5288 + $0x60] sm:$0xf]
  %v5490 = vld [vmem:[%s5288 + $0x64] sm:$0xf]
  %v5491 = vld [vmem:[%s5288 + $0x68] sm:$0x1]
  %v5492 = vld [vmem:[%s5288 + $0x6c] sm:$0xf]
  %v5493 = vld [vmem:[%s5288 + $0x70] sm:$0xf]
  %v5494 = vld [vmem:[%s5288 + $0x74] sm:$0x1]
  %v5495 = vld [vmem:[%s5288 + $0x78] sm:$0xf]
  %v5496 = vld [vmem:[%s5288 + $0x7c] sm:$0xf]
  %v5497 = vld [vmem:[%s5288 + $0x80] sm:$0x1]
  %v5498 = vld [vmem:[%s5288 + $0x84] sm:$0xf]
  %v5499 = vld [vmem:[%s5288 + $0x88] sm:$0xf]
  %v5500 = vld [vmem:[%s5288 + $0x8c] sm:$0x1]
  %v5501 = vld [vmem:[%s5288 + $0x90] sm:$0xf]
  %v5502 = vld [vmem:[%s5288 + $0x94] sm:$0xf]
  %v5503 = vld [vmem:[%s5288 + $0x98] sm:$0x1]
  %v5504 = vld [vmem:[%s5288 + $0x9c] sm:$0xf]
  %v5505 = vld [vmem:[%s5288 + $0xa0] sm:$0xf]
  %v5506 = vld [vmem:[%s5288 + $0xa4] sm:$0x1]
  %v5507 = vld [vmem:[%s5288 + $0xa8] sm:$0xf]
  %v5508 = vld [vmem:[%s5288 + $0xac] sm:$0xf]
  %v5509 = vld [vmem:[%s5288 + $0xb0] sm:$0x1]
  %v5510 = vld [vmem:[%s5288 + $0xb4] sm:$0xf]
  %v5511 = vld [vmem:[%s5288 + $0xb8] sm:$0xf]
  %v5512 = vld [vmem:[%s5288 + $0xbc] sm:$0x1]
  %v5514 = vshrl.u32 %v5465, 16
  %v5516 = vrot.slane %v5514, 4
  %v5517 = vshll.u32 %v5465, 16
  %v5519 = vrot.slane %v5517, 5
  %v5520 = vor.u32 %v5516, %v5519
  %v5521 = vrot.slane %v5520, 4
  %v5523 = vshll.u32 %v5466, 16
  %v5525 = vrot.slane %v5523, 5
  %v5526 = vsel %vm217, %v5521, %v5525
  %v5527 = vshrl.u32 %v5466, 16
  %v5529 = vrot.slane %v5527, 4
  %v5530 = vor.u32 %v5529, %v5525
  %v5531 = vrot.slane %v5530, 4
  %v5533 = vshll.u32 %v5467, 16
  %v5535 = vrot.slane %v5533, 5
  %v5536 = vsel %vm217, %v5531, %v5535
  %v5538 = vshrl.u32 %v5468, 16
  %v5540 = vrot.slane %v5538, 4
  %v5541 = vshll.u32 %v5468, 16
  %v5543 = vrot.slane %v5541, 5
  %v5544 = vor.u32 %v5540, %v5543
  %v5545 = vrot.slane %v5544, 4
  %v5547 = vshll.u32 %v5469, 16
  %v5549 = vrot.slane %v5547, 5
  %v5550 = vsel %vm217, %v5545, %v5549
  %v5551 = vshrl.u32 %v5469, 16
  %v5553 = vrot.slane %v5551, 4
  %v5554 = vor.u32 %v5553, %v5549
  %v5555 = vrot.slane %v5554, 4
  %v5557 = vshll.u32 %v5470, 16
  %v5559 = vrot.slane %v5557, 5
  %v5560 = vsel %vm217, %v5555, %v5559
  %v5562 = vshrl.u32 %v5471, 16
  %v5564 = vrot.slane %v5562, 4
  %v5565 = vshll.u32 %v5471, 16
  %v5567 = vrot.slane %v5565, 5
  %v5568 = vor.u32 %v5564, %v5567
  %v5569 = vrot.slane %v5568, 4
  %v5571 = vshll.u32 %v5472, 16
  %v5573 = vrot.slane %v5571, 5
  %v5574 = vsel %vm217, %v5569, %v5573
  %v5575 = vshrl.u32 %v5472, 16
  %v5577 = vrot.slane %v5575, 4
  %v5578 = vor.u32 %v5577, %v5573
  %v5579 = vrot.slane %v5578, 4
  %v5581 = vshll.u32 %v5473, 16
  %v5583 = vrot.slane %v5581, 5
  %v5584 = vsel %vm217, %v5579, %v5583
  %v5586 = vshrl.u32 %v5474, 16
  %v5588 = vrot.slane %v5586, 4
  %v5589 = vshll.u32 %v5474, 16
  %v5591 = vrot.slane %v5589, 5
  %v5592 = vor.u32 %v5588, %v5591
  %v5593 = vrot.slane %v5592, 4
  %v5595 = vshll.u32 %v5475, 16
  %v5597 = vrot.slane %v5595, 5
  %v5598 = vsel %vm217, %v5593, %v5597
  %v5599 = vshrl.u32 %v5475, 16
  %v5601 = vrot.slane %v5599, 4
  %v5602 = vor.u32 %v5601, %v5597
  %v5603 = vrot.slane %v5602, 4
  %v5605 = vshll.u32 %v5476, 16
  %v5607 = vrot.slane %v5605, 5
  %v5608 = vsel %vm217, %v5603, %v5607
  %v5610 = vshrl.u32 %v5477, 16
  %v5612 = vrot.slane %v5610, 4
  %v5613 = vshll.u32 %v5477, 16
  %v5615 = vrot.slane %v5613, 5
  %v5616 = vor.u32 %v5612, %v5615
  %v5617 = vrot.slane %v5616, 4
  %v5619 = vshll.u32 %v5478, 16
  %v5621 = vrot.slane %v5619, 5
  %v5622 = vsel %vm217, %v5617, %v5621
  %v5623 = vshrl.u32 %v5478, 16
  %v5625 = vrot.slane %v5623, 4
  %v5626 = vor.u32 %v5625, %v5621
  %v5627 = vrot.slane %v5626, 4
  %v5629 = vshll.u32 %v5479, 16
  %v5631 = vrot.slane %v5629, 5
  %v5632 = vsel %vm217, %v5627, %v5631
  %v5634 = vshrl.u32 %v5480, 16
  %v5636 = vrot.slane %v5634, 4
  %v5637 = vshll.u32 %v5480, 16
  %v5639 = vrot.slane %v5637, 5
  %v5640 = vor.u32 %v5636, %v5639
  %v5641 = vrot.slane %v5640, 4
  %v5643 = vshll.u32 %v5481, 16
  %v5645 = vrot.slane %v5643, 5
  %v5646 = vsel %vm217, %v5641, %v5645
  %v5647 = vshrl.u32 %v5481, 16
  %v5649 = vrot.slane %v5647, 4
  %v5650 = vor.u32 %v5649, %v5645
  %v5651 = vrot.slane %v5650, 4
  %v5653 = vshll.u32 %v5482, 16
  %v5655 = vrot.slane %v5653, 5
  %v5656 = vsel %vm217, %v5651, %v5655
  %v5658 = vshrl.u32 %v5483, 16
  %v5660 = vrot.slane %v5658, 4
  %v5661 = vshll.u32 %v5483, 16
  %v5663 = vrot.slane %v5661, 5
  %v5664 = vor.u32 %v5660, %v5663
  %v5665 = vrot.slane %v5664, 4
  %v5667 = vshll.u32 %v5484, 16
  %v5669 = vrot.slane %v5667, 5
  %v5670 = vsel %vm217, %v5665, %v5669
  %v5671 = vshrl.u32 %v5484, 16
  %v5673 = vrot.slane %v5671, 4
  %v5674 = vor.u32 %v5673, %v5669
  %v5675 = vrot.slane %v5674, 4
  %v5677 = vshll.u32 %v5485, 16
  %v5679 = vrot.slane %v5677, 5
  %v5680 = vsel %vm217, %v5675, %v5679
  %v5682 = vshrl.u32 %v5486, 16
  %v5684 = vrot.slane %v5682, 4
  %v5685 = vshll.u32 %v5486, 16
  %v5687 = vrot.slane %v5685, 5
  %v5688 = vor.u32 %v5684, %v5687
  %v5689 = vrot.slane %v5688, 4
  %v5691 = vshll.u32 %v5487, 16
  %v5693 = vrot.slane %v5691, 5
  %v5694 = vsel %vm217, %v5689, %v5693
  %v5695 = vshrl.u32 %v5487, 16
  %v5697 = vrot.slane %v5695, 4
  %v5698 = vor.u32 %v5697, %v5693
  %v5699 = vrot.slane %v5698, 4
  %v5701 = vshll.u32 %v5488, 16
  %v5703 = vrot.slane %v5701, 5
  %v5704 = vsel %vm217, %v5699, %v5703
  %v5706 = vshrl.u32 %v5489, 16
  %v5708 = vrot.slane %v5706, 4
  %v5709 = vshll.u32 %v5489, 16
  %v5711 = vrot.slane %v5709, 5
  %v5712 = vor.u32 %v5708, %v5711
  %v5713 = vrot.slane %v5712, 4
  %v5715 = vshll.u32 %v5490, 16
  %v5717 = vrot.slane %v5715, 5
  %v5718 = vsel %vm217, %v5713, %v5717
  %v5719 = vshrl.u32 %v5490, 16
  %v5721 = vrot.slane %v5719, 4
  %v5722 = vor.u32 %v5721, %v5717
  %v5723 = vrot.slane %v5722, 4
  %v5725 = vshll.u32 %v5491, 16
  %v5727 = vrot.slane %v5725, 5
  %v5728 = vsel %vm217, %v5723, %v5727
  %v5730 = vshrl.u32 %v5492, 16
  %v5732 = vrot.slane %v5730, 4
  %v5733 = vshll.u32 %v5492, 16
  %v5735 = vrot.slane %v5733, 5
  %v5736 = vor.u32 %v5732, %v5735
  %v5737 = vrot.slane %v5736, 4
  %v5739 = vshll.u32 %v5493, 16
  %v5741 = vrot.slane %v5739, 5
  %v5742 = vsel %vm217, %v5737, %v5741
  %v5743 = vshrl.u32 %v5493, 16
  %v5745 = vrot.slane %v5743, 4
  %v5746 = vor.u32 %v5745, %v5741
  %v5747 = vrot.slane %v5746, 4
  %v5749 = vshll.u32 %v5494, 16
  %v5751 = vrot.slane %v5749, 5
  %v5752 = vsel %vm217, %v5747, %v5751
  %v5754 = vshrl.u32 %v5495, 16
  %v5756 = vrot.slane %v5754, 4
  %v5757 = vshll.u32 %v5495, 16
  %v5759 = vrot.slane %v5757, 5
  %v5760 = vor.u32 %v5756, %v5759
  %v5761 = vrot.slane %v5760, 4
  %v5763 = vshll.u32 %v5496, 16
  %v5765 = vrot.slane %v5763, 5
  %v5766 = vsel %vm217, %v5761, %v5765
  %v5767 = vshrl.u32 %v5496, 16
  %v5769 = vrot.slane %v5767, 4
  %v5770 = vor.u32 %v5769, %v5765
  %v5771 = vrot.slane %v5770, 4
  %v5773 = vshll.u32 %v5497, 16
  %v5775 = vrot.slane %v5773, 5
  %v5776 = vsel %vm217, %v5771, %v5775
  %v5778 = vshrl.u32 %v5498, 16
  %v5780 = vrot.slane %v5778, 4
  %v5781 = vshll.u32 %v5498, 16
  %v5783 = vrot.slane %v5781, 5
  %v5784 = vor.u32 %v5780, %v5783
  %v5785 = vrot.slane %v5784, 4
  %v5787 = vshll.u32 %v5499, 16
  %v5789 = vrot.slane %v5787, 5
  %v5790 = vsel %vm217, %v5785, %v5789
  %v5791 = vshrl.u32 %v5499, 16
  %v5793 = vrot.slane %v5791, 4
  %v5794 = vor.u32 %v5793, %v5789
  %v5795 = vrot.slane %v5794, 4
  %v5797 = vshll.u32 %v5500, 16
  %v5799 = vrot.slane %v5797, 5
  %v5800 = vsel %vm217, %v5795, %v5799
  %v5802 = vshrl.u32 %v5501, 16
  %v5804 = vrot.slane %v5802, 4
  %v5805 = vshll.u32 %v5501, 16
  %v5807 = vrot.slane %v5805, 5
  %v5808 = vor.u32 %v5804, %v5807
  %v5809 = vrot.slane %v5808, 4
  %v5811 = vshll.u32 %v5502, 16
  %v5813 = vrot.slane %v5811, 5
  %v5814 = vsel %vm217, %v5809, %v5813
  %v5815 = vshrl.u32 %v5502, 16
  %v5817 = vrot.slane %v5815, 4
  %v5818 = vor.u32 %v5817, %v5813
  %v5819 = vrot.slane %v5818, 4
  %v5821 = vshll.u32 %v5503, 16
  %v5823 = vrot.slane %v5821, 5
  %v5824 = vsel %vm217, %v5819, %v5823
  %v5826 = vshrl.u32 %v5504, 16
  %v5828 = vrot.slane %v5826, 4
  %v5829 = vshll.u32 %v5504, 16
  %v5831 = vrot.slane %v5829, 5
  %v5832 = vor.u32 %v5828, %v5831
  %v5833 = vrot.slane %v5832, 4
  %v5835 = vshll.u32 %v5505, 16
  %v5837 = vrot.slane %v5835, 5
  %v5838 = vsel %vm217, %v5833, %v5837
  %v5839 = vshrl.u32 %v5505, 16
  %v5841 = vrot.slane %v5839, 4
  %v5842 = vor.u32 %v5841, %v5837
  %v5843 = vrot.slane %v5842, 4
  %v5845 = vshll.u32 %v5506, 16
  %v5847 = vrot.slane %v5845, 5
  %v5848 = vsel %vm217, %v5843, %v5847
  %v5850 = vshrl.u32 %v5507, 16
  %v5852 = vrot.slane %v5850, 4
  %v5853 = vshll.u32 %v5507, 16
  %v5855 = vrot.slane %v5853, 5
  %v5856 = vor.u32 %v5852, %v5855
  %v5857 = vrot.slane %v5856, 4
  %v5859 = vshll.u32 %v5508, 16
  %v5861 = vrot.slane %v5859, 5
  %v5862 = vsel %vm217, %v5857, %v5861
  %v5863 = vshrl.u32 %v5508, 16
  %v5865 = vrot.slane %v5863, 4
  %v5866 = vor.u32 %v5865, %v5861
  %v5867 = vrot.slane %v5866, 4
  %v5869 = vshll.u32 %v5509, 16
  %v5871 = vrot.slane %v5869, 5
  %v5872 = vsel %vm217, %v5867, %v5871
  %v5874 = vshrl.u32 %v5510, 16
  %v5876 = vrot.slane %v5874, 4
  %v5877 = vshll.u32 %v5510, 16
  %v5879 = vrot.slane %v5877, 5
  %v5880 = vor.u32 %v5876, %v5879
  %v5881 = vrot.slane %v5880, 4
  %v5883 = vshll.u32 %v5511, 16
  %v5885 = vrot.slane %v5883, 5
  %v5886 = vsel %vm217, %v5881, %v5885
  %v5887 = vshrl.u32 %v5511, 16
  %v5889 = vrot.slane %v5887, 4
  %v5890 = vor.u32 %v5889, %v5885
  %v5891 = vrot.slane %v5890, 4
  %v5893 = vshll.u32 %v5512, 16
  %v5895 = vrot.slane %v5893, 5
  %v5896 = vsel %vm217, %v5891, %v5895
  %v5897 = vunpack.c.l.b16 %v5526
  %v5898 = vunpack.c.l.b16 %v5536
  %v5899 = vunpack.c.l.b16 %v5550
  %v5900 = vunpack.c.l.b16 %v5560
  %v5901 = vunpack.c.l.b16 %v5574
  %v5902 = vunpack.c.l.b16 %v5584
  %v5903 = vunpack.c.l.b16 %v5598
  %v5904 = vunpack.c.l.b16 %v5608
  %v5905 = vunpack.c.l.b16 %v5622
  %v5906 = vunpack.c.l.b16 %v5632
  %v5907 = vunpack.c.l.b16 %v5646
  %v5908 = vunpack.c.l.b16 %v5656
  %v5909 = vunpack.c.l.b16 %v5670
  %v5910 = vunpack.c.l.b16 %v5680
  %v5911 = vunpack.c.l.b16 %v5694
  %v5912 = vunpack.c.l.b16 %v5704
  %v5913 = vunpack.c.l.b16 %v5718
  %v5914 = vunpack.c.l.b16 %v5728
  %v5915 = vunpack.c.l.b16 %v5742
  %v5916 = vunpack.c.l.b16 %v5752
  %v5917 = vunpack.c.l.b16 %v5766
  %v5918 = vunpack.c.l.b16 %v5776
  %v5919 = vunpack.c.l.b16 %v5790
  %v5920 = vunpack.c.l.b16 %v5800
  %v5921 = vunpack.c.l.b16 %v5814
  %v5922 = vunpack.c.l.b16 %v5824
  %v5923 = vunpack.c.l.b16 %v5838
  %v5924 = vunpack.c.l.b16 %v5848
  %v5925 = vunpack.c.l.b16 %v5862
  %v5926 = vunpack.c.l.b16 %v5872
  %v5927 = vunpack.c.l.b16 %v5886
  %v5928 = vunpack.c.l.b16 %v5896
  %v5929 = vpack.c.b16 %v5898, %v5897
  %v5930 = vpack.c.b16 %v5900, %v5899
  %v5931 = vpack.c.b16 %v5902, %v5901
  %v5932 = vpack.c.b16 %v5904, %v5903
  %v5933 = vpack.c.b16 %v5906, %v5905
  %v5934 = vpack.c.b16 %v5908, %v5907
  %v5935 = vpack.c.b16 %v5910, %v5909
  %v5936 = vpack.c.b16 %v5912, %v5911
  %v5937 = vpack.c.b16 %v5914, %v5913
  %v5938 = vpack.c.b16 %v5916, %v5915
  %v5939 = vpack.c.b16 %v5918, %v5917
  %v5940 = vpack.c.b16 %v5920, %v5919
  %v5941 = vpack.c.b16 %v5922, %v5921
  %v5942 = vpack.c.b16 %v5924, %v5923
  %v5943 = vpack.c.b16 %v5926, %v5925
  %v5944 = vpack.c.b16 %v5928, %v5927
  %5945 = vrot.lane.b32.xlu0 %v5929, 56
  %v5946 = vpop.permute.xlu0 %5945
  %5947 = vrot.lane.b32.xlu0 %v5930, 56
  %v5948 = vpop.permute.xlu0 %5947
  %5949 = vrot.lane.b32.xlu0 %v5931, 56
  %v5950 = vpop.permute.xlu0 %5949
  %5951 = vrot.lane.b32.xlu0 %v5932, 56
  %v5952 = vpop.permute.xlu0 %5951
  %5953 = vrot.lane.b32.xlu0 %v5933, 56
  %v5954 = vpop.permute.xlu0 %5953
  %5955 = vrot.lane.b32.xlu0 %v5934, 56
  %v5956 = vpop.permute.xlu0 %5955
  %5957 = vrot.lane.b32.xlu0 %v5935, 56
  %v5958 = vpop.permute.xlu0 %5957
  %5959 = vrot.lane.b32.xlu0 %v5936, 56
  %v5960 = vpop.permute.xlu0 %5959
  %5961 = vrot.lane.b32.xlu0 %v5937, 56
  %v5962 = vpop.permute.xlu0 %5961
  %5963 = vrot.lane.b32.xlu0 %v5938, 56
  %v5964 = vpop.permute.xlu0 %5963
  %5965 = vrot.lane.b32.xlu0 %v5939, 56
  %v5966 = vpop.permute.xlu0 %5965
  %5967 = vrot.lane.b32.xlu0 %v5940, 56
  %v5968 = vpop.permute.xlu0 %5967
  %5969 = vrot.lane.b32.xlu0 %v5941, 56
  %v5970 = vpop.permute.xlu0 %5969
  %5971 = vrot.lane.b32.xlu0 %v5942, 56
  %v5972 = vpop.permute.xlu0 %5971
  %5973 = vrot.lane.b32.xlu0 %v5943, 56
  %v5974 = vpop.permute.xlu0 %5973
  %5975 = vrot.lane.b32.xlu0 %v5944, 56
  %v5976 = vpop.permute.xlu0 %5975
  %5993 = vst.msk [vmem:[#allocation2] sm:$0xff] %vm2789, %v5946
  %5994 = vst.msk [vmem:[#allocation2 + $0x8] sm:$0xff] %vm2789, %v5948
  %5995 = vst.msk [vmem:[#allocation2 + $0x10] sm:$0xff] %vm2789, %v5950
  %5996 = vst.msk [vmem:[#allocation2 + $0x18] sm:$0xff] %vm2789, %v5952
  %5997 = vst.msk [vmem:[#allocation2 + $0x20] sm:$0xff] %vm2789, %v5954
  %5998 = vst.msk [vmem:[#allocation2 + $0x28] sm:$0xff] %vm2789, %v5956
  %5999 = vst.msk [vmem:[#allocation2 + $0x30] sm:$0xff] %vm2789, %v5958
  %6000 = vst.msk [vmem:[#allocation2 + $0x38] sm:$0xff] %vm2789, %v5960
  %6001 = vst.msk [vmem:[#allocation2 + $0x40] sm:$0xff] %vm2789, %v5962
  %6002 = vst.msk [vmem:[#allocation2 + $0x48] sm:$0xff] %vm2789, %v5964
  %6003 = vst.msk [vmem:[#allocation2 + $0x50] sm:$0xff] %vm2789, %v5966
  %6004 = vst.msk [vmem:[#allocation2 + $0x58] sm:$0xff] %vm2789, %v5968
  %6005 = vst.msk [vmem:[#allocation2 + $0x60] sm:$0xff] %vm2789, %v5970
  %6006 = vst.msk [vmem:[#allocation2 + $0x68] sm:$0xff] %vm2789, %v5972
  %6007 = vst.msk [vmem:[#allocation2 + $0x70] sm:$0xff] %vm2789, %v5974
  %6008 = vst.msk [vmem:[#allocation2 + $0x78] sm:$0xff] %vm2789, %v5976
  %v6009 = vld [vmem:[%s5288] sm:$0xe]
  %v6010 = vld [vmem:[%s5288 + $0x4] sm:$0xf]
  %v6011 = vld [vmem:[%s5288 + $0x8] sm:$0x1]
  %v6012 = vld [vmem:[%s5288 + $0xc] sm:$0xe]
  %v6013 = vld [vmem:[%s5288 + $0x10] sm:$0xf]
  %v6014 = vld [vmem:[%s5288 + $0x14] sm:$0x1]
  %v6015 = vld [vmem:[%s5288 + $0x18] sm:$0xe]
  %v6016 = vld [vmem:[%s5288 + $0x1c] sm:$0xf]
  %v6017 = vld [vmem:[%s5288 + $0x20] sm:$0x1]
  %v6018 = vld [vmem:[%s5288 + $0x24] sm:$0xe]
  %v6019 = vld [vmem:[%s5288 + $0x28] sm:$0xf]
  %v6020 = vld [vmem:[%s5288 + $0x2c] sm:$0x1]
  %v6021 = vld [vmem:[%s5288 + $0x30] sm:$0xe]
  %v6022 = vld [vmem:[%s5288 + $0x34] sm:$0xf]
  %v6023 = vld [vmem:[%s5288 + $0x38] sm:$0x1]
  %v6024 = vld [vmem:[%s5288 + $0x3c] sm:$0xe]
  %v6025 = vld [vmem:[%s5288 + $0x40] sm:$0xf]
  %v6026 = vld [vmem:[%s5288 + $0x44] sm:$0x1]
  %v6027 = vld [vmem:[%s5288 + $0x48] sm:$0xe]
  %v6028 = vld [vmem:[%s5288 + $0x4c] sm:$0xf]
  %v6029 = vld [vmem:[%s5288 + $0x50] sm:$0x1]
  %v6030 = vld [vmem:[%s5288 + $0x54] sm:$0xe]
  %v6031 = vld [vmem:[%s5288 + $0x58] sm:$0xf]
  %v6032 = vld [vmem:[%s5288 + $0x5c] sm:$0x1]
  %v6033 = vld [vmem:[%s5288 + $0x60] sm:$0xe]
  %v6034 = vld [vmem:[%s5288 + $0x64] sm:$0xf]
  %v6035 = vld [vmem:[%s5288 + $0x68] sm:$0x1]
  %v6036 = vld [vmem:[%s5288 + $0x6c] sm:$0xe]
  %v6037 = vld [vmem:[%s5288 + $0x70] sm:$0xf]
  %v6038 = vld [vmem:[%s5288 + $0x74] sm:$0x1]
  %v6039 = vld [vmem:[%s5288 + $0x78] sm:$0xe]
  %v6040 = vld [vmem:[%s5288 + $0x7c] sm:$0xf]
  %v6041 = vld [vmem:[%s5288 + $0x80] sm:$0x1]
  %v6042 = vld [vmem:[%s5288 + $0x84] sm:$0xe]
  %v6043 = vld [vmem:[%s5288 + $0x88] sm:$0xf]
  %v6044 = vld [vmem:[%s5288 + $0x8c] sm:$0x1]
  %v6045 = vld [vmem:[%s5288 + $0x90] sm:$0xe]
  %v6046 = vld [vmem:[%s5288 + $0x94] sm:$0xf]
  %v6047 = vld [vmem:[%s5288 + $0x98] sm:$0x1]
  %v6048 = vld [vmem:[%s5288 + $0x9c] sm:$0xe]
  %v6049 = vld [vmem:[%s5288 + $0xa0] sm:$0xf]
  %v6050 = vld [vmem:[%s5288 + $0xa4] sm:$0x1]
  %v6051 = vld [vmem:[%s5288 + $0xa8] sm:$0xe]
  %v6052 = vld [vmem:[%s5288 + $0xac] sm:$0xf]
  %v6053 = vld [vmem:[%s5288 + $0xb0] sm:$0x1]
  %v6054 = vld [vmem:[%s5288 + $0xb4] sm:$0xe]
  %v6055 = vld [vmem:[%s5288 + $0xb8] sm:$0xf]
  %v6056 = vld [vmem:[%s5288 + $0xbc] sm:$0x1]
  %v6105 = vrot.slane %v6009, 5
  %v6106 = vrot.slane %v6105, 4
  %v6107 = vrot.slane %v6010, 5
  %v6108 = vsel %vm813, %v6106, %v6107
  %v6109 = vrot.slane %v6107, 4
  %v6110 = vrot.slane %v6011, 5
  %v6111 = vsel %vm813, %v6109, %v6110
  %v6112 = vrot.slane %v6012, 5
  %v6113 = vrot.slane %v6112, 4
  %v6114 = vrot.slane %v6013, 5
  %v6115 = vsel %vm813, %v6113, %v6114
  %v6116 = vrot.slane %v6114, 4
  %v6117 = vrot.slane %v6014, 5
  %v6118 = vsel %vm813, %v6116, %v6117
  %v6119 = vrot.slane %v6015, 5
  %v6120 = vrot.slane %v6119, 4
  %v6121 = vrot.slane %v6016, 5
  %v6122 = vsel %vm813, %v6120, %v6121
  %v6123 = vrot.slane %v6121, 4
  %v6124 = vrot.slane %v6017, 5
  %v6125 = vsel %vm813, %v6123, %v6124
  %v6126 = vrot.slane %v6018, 5
  %v6127 = vrot.slane %v6126, 4
  %v6128 = vrot.slane %v6019, 5
  %v6129 = vsel %vm813, %v6127, %v6128
  %v6130 = vrot.slane %v6128, 4
  %v6131 = vrot.slane %v6020, 5
  %v6132 = vsel %vm813, %v6130, %v6131
  %v6133 = vrot.slane %v6021, 5
  %v6134 = vrot.slane %v6133, 4
  %v6135 = vrot.slane %v6022, 5
  %v6136 = vsel %vm813, %v6134, %v6135
  %v6137 = vrot.slane %v6135, 4
  %v6138 = vrot.slane %v6023, 5
  %v6139 = vsel %vm813, %v6137, %v6138
  %v6140 = vrot.slane %v6024, 5
  %v6141 = vrot.slane %v6140, 4
  %v6142 = vrot.slane %v6025, 5
  %v6143 = vsel %vm813, %v6141, %v6142
  %v6144 = vrot.slane %v6142, 4
  %v6145 = vrot.slane %v6026, 5
  %v6146 = vsel %vm813, %v6144, %v6145
  %v6147 = vrot.slane %v6027, 5
  %v6148 = vrot.slane %v6147, 4
  %v6149 = vrot.slane %v6028, 5
  %v6150 = vsel %vm813, %v6148, %v6149
  %v6151 = vrot.slane %v6149, 4
  %v6152 = vrot.slane %v6029, 5
  %v6153 = vsel %vm813, %v6151, %v6152
  %v6154 = vrot.slane %v6030, 5
  %v6155 = vrot.slane %v6154, 4
  %v6156 = vrot.slane %v6031, 5
  %v6157 = vsel %vm813, %v6155, %v6156
  %v6158 = vrot.slane %v6156, 4
  %v6159 = vrot.slane %v6032, 5
  %v6160 = vsel %vm813, %v6158, %v6159
  %v6161 = vrot.slane %v6033, 5
  %v6162 = vrot.slane %v6161, 4
  %v6163 = vrot.slane %v6034, 5
  %v6164 = vsel %vm813, %v6162, %v6163
  %v6165 = vrot.slane %v6163, 4
  %v6166 = vrot.slane %v6035, 5
  %v6167 = vsel %vm813, %v6165, %v6166
  %v6168 = vrot.slane %v6036, 5
  %v6169 = vrot.slane %v6168, 4
  %v6170 = vrot.slane %v6037, 5
  %v6171 = vsel %vm813, %v6169, %v6170
  %v6172 = vrot.slane %v6170, 4
  %v6173 = vrot.slane %v6038, 5
  %v6174 = vsel %vm813, %v6172, %v6173
  %v6175 = vrot.slane %v6039, 5
  %v6176 = vrot.slane %v6175, 4
  %v6177 = vrot.slane %v6040, 5
  %v6178 = vsel %vm813, %v6176, %v6177
  %v6179 = vrot.slane %v6177, 4
  %v6180 = vrot.slane %v6041, 5
  %v6181 = vsel %vm813, %v6179, %v6180
  %v6182 = vrot.slane %v6042, 5
  %v6183 = vrot.slane %v6182, 4
  %v6184 = vrot.slane %v6043, 5
  %v6185 = vsel %vm813, %v6183, %v6184
  %v6186 = vrot.slane %v6184, 4
  %v6187 = vrot.slane %v6044, 5
  %v6188 = vsel %vm813, %v6186, %v6187
  %v6189 = vrot.slane %v6045, 5
  %v6190 = vrot.slane %v6189, 4
  %v6191 = vrot.slane %v6046, 5
  %v6192 = vsel %vm813, %v6190, %v6191
  %v6193 = vrot.slane %v6191, 4
  %v6194 = vrot.slane %v6047, 5
  %v6195 = vsel %vm813, %v6193, %v6194
  %v6196 = vrot.slane %v6048, 5
  %v6197 = vrot.slane %v6196, 4
  %v6198 = vrot.slane %v6049, 5
  %v6199 = vsel %vm813, %v6197, %v6198
  %v6200 = vrot.slane %v6198, 4
  %v6201 = vrot.slane %v6050, 5
  %v6202 = vsel %vm813, %v6200, %v6201
  %v6203 = vrot.slane %v6051, 5
  %v6204 = vrot.slane %v6203, 4
  %v6205 = vrot.slane %v6052, 5
  %v6206 = vsel %vm813, %v6204, %v6205
  %v6207 = vrot.slane %v6205, 4
  %v6208 = vrot.slane %v6053, 5
  %v6209 = vsel %vm813, %v6207, %v6208
  %v6210 = vrot.slane %v6054, 5
  %v6211 = vrot.slane %v6210, 4
  %v6212 = vrot.slane %v6055, 5
  %v6213 = vsel %vm813, %v6211, %v6212
  %v6214 = vrot.slane %v6212, 4
  %v6215 = vrot.slane %v6056, 5
  %v6216 = vsel %vm813, %v6214, %v6215
  %v6217 = vunpack.c.l.b16 %v6108
  %v6218 = vunpack.c.l.b16 %v6111
  %v6219 = vunpack.c.l.b16 %v6115
  %v6220 = vunpack.c.l.b16 %v6118
  %v6221 = vunpack.c.l.b16 %v6122
  %v6222 = vunpack.c.l.b16 %v6125
  %v6223 = vunpack.c.l.b16 %v6129
  %v6224 = vunpack.c.l.b16 %v6132
  %v6225 = vunpack.c.l.b16 %v6136
  %v6226 = vunpack.c.l.b16 %v6139
  %v6227 = vunpack.c.l.b16 %v6143
  %v6228 = vunpack.c.l.b16 %v6146
  %v6229 = vunpack.c.l.b16 %v6150
  %v6230 = vunpack.c.l.b16 %v6153
  %v6231 = vunpack.c.l.b16 %v6157
  %v6232 = vunpack.c.l.b16 %v6160
  %v6233 = vunpack.c.l.b16 %v6164
  %v6234 = vunpack.c.l.b16 %v6167
  %v6235 = vunpack.c.l.b16 %v6171
  %v6236 = vunpack.c.l.b16 %v6174
  %v6237 = vunpack.c.l.b16 %v6178
  %v6238 = vunpack.c.l.b16 %v6181
  %v6239 = vunpack.c.l.b16 %v6185
  %v6240 = vunpack.c.l.b16 %v6188
  %v6241 = vunpack.c.l.b16 %v6192
  %v6242 = vunpack.c.l.b16 %v6195
  %v6243 = vunpack.c.l.b16 %v6199
  %v6244 = vunpack.c.l.b16 %v6202
  %v6245 = vunpack.c.l.b16 %v6206
  %v6246 = vunpack.c.l.b16 %v6209
  %v6247 = vunpack.c.l.b16 %v6213
  %v6248 = vunpack.c.l.b16 %v6216
  %v6249 = vpack.c.b16 %v6218, %v6217
  %v6250 = vpack.c.b16 %v6220, %v6219
  %v6251 = vpack.c.b16 %v6222, %v6221
  %v6252 = vpack.c.b16 %v6224, %v6223
  %v6253 = vpack.c.b16 %v6226, %v6225
  %v6254 = vpack.c.b16 %v6228, %v6227
  %v6255 = vpack.c.b16 %v6230, %v6229
  %v6256 = vpack.c.b16 %v6232, %v6231
  %v6257 = vpack.c.b16 %v6234, %v6233
  %v6258 = vpack.c.b16 %v6236, %v6235
  %v6259 = vpack.c.b16 %v6238, %v6237
  %v6260 = vpack.c.b16 %v6240, %v6239
  %v6261 = vpack.c.b16 %v6242, %v6241
  %v6262 = vpack.c.b16 %v6244, %v6243
  %v6263 = vpack.c.b16 %v6246, %v6245
  %v6264 = vpack.c.b16 %v6248, %v6247
  %6265 = vrot.lane.b32.xlu0 %v6249, 64
  %v6266 = vpop.permute.xlu0 %6265
  %6267 = vrot.lane.b32.xlu0 %v6250, 64
  %v6268 = vpop.permute.xlu0 %6267
  %6269 = vrot.lane.b32.xlu0 %v6251, 64
  %v6270 = vpop.permute.xlu0 %6269
  %6271 = vrot.lane.b32.xlu0 %v6252, 64
  %v6272 = vpop.permute.xlu0 %6271
  %6273 = vrot.lane.b32.xlu0 %v6253, 64
  %v6274 = vpop.permute.xlu0 %6273
  %6275 = vrot.lane.b32.xlu0 %v6254, 64
  %v6276 = vpop.permute.xlu0 %6275
  %6277 = vrot.lane.b32.xlu0 %v6255, 64
  %v6278 = vpop.permute.xlu0 %6277
  %6279 = vrot.lane.b32.xlu0 %v6256, 64
  %v6280 = vpop.permute.xlu0 %6279
  %6281 = vrot.lane.b32.xlu0 %v6257, 64
  %v6282 = vpop.permute.xlu0 %6281
  %6283 = vrot.lane.b32.xlu0 %v6258, 64
  %v6284 = vpop.permute.xlu0 %6283
  %6285 = vrot.lane.b32.xlu0 %v6259, 64
  %v6286 = vpop.permute.xlu0 %6285
  %6287 = vrot.lane.b32.xlu0 %v6260, 64
  %v6288 = vpop.permute.xlu0 %6287
  %6289 = vrot.lane.b32.xlu0 %v6261, 64
  %v6290 = vpop.permute.xlu0 %6289
  %6291 = vrot.lane.b32.xlu0 %v6262, 64
  %v6292 = vpop.permute.xlu0 %6291
  %6293 = vrot.lane.b32.xlu0 %v6263, 64
  %v6294 = vpop.permute.xlu0 %6293
  %6295 = vrot.lane.b32.xlu0 %v6264, 64
  %v6296 = vpop.permute.xlu0 %6295
  %6313 = vst.msk [vmem:[#allocation2] sm:$0xff] %vm3110, %v6266
  %6314 = vst.msk [vmem:[#allocation2 + $0x8] sm:$0xff] %vm3110, %v6268
  %6315 = vst.msk [vmem:[#allocation2 + $0x10] sm:$0xff] %vm3110, %v6270
  %6316 = vst.msk [vmem:[#allocation2 + $0x18] sm:$0xff] %vm3110, %v6272
  %6317 = vst.msk [vmem:[#allocation2 + $0x20] sm:$0xff] %vm3110, %v6274
  %6318 = vst.msk [vmem:[#allocation2 + $0x28] sm:$0xff] %vm3110, %v6276
  %6319 = vst.msk [vmem:[#allocation2 + $0x30] sm:$0xff] %vm3110, %v6278
  %6320 = vst.msk [vmem:[#allocation2 + $0x38] sm:$0xff] %vm3110, %v6280
  %6321 = vst.msk [vmem:[#allocation2 + $0x40] sm:$0xff] %vm3110, %v6282
  %6322 = vst.msk [vmem:[#allocation2 + $0x48] sm:$0xff] %vm3110, %v6284
  %6323 = vst.msk [vmem:[#allocation2 + $0x50] sm:$0xff] %vm3110, %v6286
  %6324 = vst.msk [vmem:[#allocation2 + $0x58] sm:$0xff] %vm3110, %v6288
  %6325 = vst.msk [vmem:[#allocation2 + $0x60] sm:$0xff] %vm3110, %v6290
  %6326 = vst.msk [vmem:[#allocation2 + $0x68] sm:$0xff] %vm3110, %v6292
  %6327 = vst.msk [vmem:[#allocation2 + $0x70] sm:$0xff] %vm3110, %v6294
  %6328 = vst.msk [vmem:[#allocation2 + $0x78] sm:$0xff] %vm3110, %v6296
  %v6329 = vld [vmem:[#allocation2] sm:$0xff]
  %v6330 = vld [vmem:[#allocation2 + $0x8] sm:$0xff]
  %v6331 = vld [vmem:[#allocation2 + $0x10] sm:$0xff]
  %v6332 = vld [vmem:[#allocation2 + $0x18] sm:$0xff]
  %v6333 = vld [vmem:[#allocation2 + $0x20] sm:$0xff]
  %v6334 = vld [vmem:[#allocation2 + $0x28] sm:$0xff]
  %v6335 = vld [vmem:[#allocation2 + $0x30] sm:$0xff]
  %v6336 = vld [vmem:[#allocation2 + $0x38] sm:$0xff]
  %v6337 = vld [vmem:[#allocation2 + $0x40] sm:$0xff]
  %v6338 = vld [vmem:[#allocation2 + $0x48] sm:$0xff]
  %v6339 = vld [vmem:[#allocation2 + $0x50] sm:$0xff]
  %v6340 = vld [vmem:[#allocation2 + $0x58] sm:$0xff]
  %v6341 = vld [vmem:[#allocation2 + $0x60] sm:$0xff]
  %v6342 = vld [vmem:[#allocation2 + $0x68] sm:$0xff]
  %v6343 = vld [vmem:[#allocation2 + $0x70] sm:$0xff]
  %v6344 = vld [vmem:[#allocation2 + $0x78] sm:$0xff]
  %v6346 = vsel %vm3143, %v6329, 0
  %v6349 = vsel %vm3143, %v6330, 0
  %v6352 = vsel %vm3143, %v6331, 0
  %v6355 = vsel %vm3143, %v6332, 0
  %v6358 = vsel %vm3143, %v6333, 0
  %v6361 = vsel %vm3143, %v6334, 0
  %v6364 = vsel %vm3143, %v6335, 0
  %v6367 = vsel %vm3143, %v6336, 0
  %v6370 = vsel %vm3143, %v6337, 0
  %v6373 = vsel %vm3143, %v6338, 0
  %v6376 = vsel %vm3143, %v6339, 0
  %v6379 = vsel %vm3143, %v6340, 0
  %v6382 = vsel %vm3143, %v6341, 0
  %v6385 = vsel %vm3143, %v6342, 0
  %v6388 = vsel %vm3143, %v6343, 0
  %v6391 = vsel %vm3143, %v6344, 0
  %6393 = vmatprep.subr.bf16.mxu0 0
  %6394 = vmatpush1.bf16.xpose.msra.mxu0 %v6346
  %6395 = vmatprep.subr.bf16.mxu0 0
  %6396 = vmatpush1.bf16.xpose.msra.mxu0 %v6349
  %6397 = vmatprep.subr.bf16.mxu0 0
  %6398 = vmatpush1.bf16.xpose.msra.mxu0 %v6352
  %6399 = vmatprep.subr.bf16.mxu0 0
  %6400 = vmatpush1.bf16.xpose.msra.mxu0 %v6355
  %6401 = vmatprep.subr.bf16.mxu0 0
  %6402 = vmatpush1.bf16.xpose.msra.mxu0 %v6358
  %6403 = vmatprep.subr.bf16.mxu0 0
  %6404 = vmatpush1.bf16.xpose.msra.mxu0 %v6361
  %6405 = vmatprep.subr.bf16.mxu0 0
  %6406 = vmatpush1.bf16.xpose.msra.mxu0 %v6364
  %6407 = vmatprep.subr.bf16.mxu0 0
  %6408 = vmatpush1.bf16.xpose.msra.mxu0 %v6367
  %6409 = vmatprep.subr.bf16.mxu0 0
  %6410 = vmatpush1.bf16.xpose.msra.mxu0 %v6370
  %6411 = vmatprep.subr.bf16.mxu0 0
  %6412 = vmatpush1.bf16.xpose.msra.mxu0 %v6373
  %6413 = vmatprep.subr.bf16.mxu0 0
  %6414 = vmatpush1.bf16.xpose.msra.mxu0 %v6376
  %6415 = vmatprep.subr.bf16.mxu0 0
  %6416 = vmatpush1.bf16.xpose.msra.mxu0 %v6379
  %6417 = vmatprep.subr.bf16.mxu0 0
  %6418 = vmatpush1.bf16.xpose.msra.mxu0 %v6382
  %6419 = vmatprep.subr.bf16.mxu0 0
  %6420 = vmatpush1.bf16.xpose.msra.mxu0 %v6385
  %6421 = vmatprep.subr.bf16.mxu0 0
  %6422 = vmatpush1.bf16.xpose.msra.mxu0 %v6388
  %6423 = vmatprep.subr.bf16.mxu0 0
  %6424 = vmatpush1.bf16.xpose.msra.mxu0 %v6391
  %6425 = vmatprep.mubr.bf16.mxu0 0
  %6426 = vmatmul.mubr.bf16.gmra.mrb[0].mxu0 %v3145
  %v6427 = vpop.f32.mrb[0].mxu0
  %v6428 = vadd.f32 %v20, %v6427
  %v6429 = vpop.f32.mrb[0].mxu0
  %v6430 = vadd.f32 %v20, %v6429
  %v6431 = vpop.f32.mrb[0].mxu0
  %v6432 = vpop.f32.mrb[0].mxu0
  %6433 = vdwg.mxu0
  %s6434 = scalar_lea.vmem %s3, 16
  %6435 = vst [vmem:[%s6434] sm:$0xff] %v6428
  %6436 = vst [vmem:[%s6434 + $0x8] sm:$0xff] %v6430
  // Predicated region
  $region14: #{coord_conv2d.1} parent=0 // pred_check
    _
  $region15: #{coord_conv2d.1} parent=0 // pred_check_branch
    %6438 = sbr.rel (0) target = $region17
  $region16: #{coord_conv2d.1} parent=0 // pred_region
    _
  $region17: #{coord_conv2d.1} parent=0 // pred_fallthru
    _
  // Predicated region
  $region18: #{coord_conv2d.1} parent=0 // pred_check
    _
  $region19: #{coord_conv2d.1} parent=0 // pred_check_branch
    %6440 = sbr.rel (0) target = $region21
  $region20: #{coord_conv2d.1} parent=0 // pred_region
    _
  $region21: #{coord_conv2d.1} parent=0 // pred_fallthru
    _

</llo_original>
